<compile_context>
chip_gen: v7x
topology: tpu7x:2x2x1
jax: 0.10.0
libtpu: 0.0.40
codegen_flags: <defaults>
</compile_context>

<pallas_src>
import functools
import math

import jax
import jax.numpy as jnp
from jax import lax
from jax.experimental import pallas as pl
from jax.experimental.pallas import tpu as pltpu


MXU_DTYPE = jnp.bfloat16          # MXU input dtype (accumulation stays f32)
_LN_EPS = 1e-5
_M_TILE_CAP = 512                 # row-tile cap: keeps tiles well under 64 MiB VMEM on v7x
_VMEM_LIMIT = 48 * 1024 * 1024    # explicit scoped-VMEM budget (< v7x 64 MiB physical)


def _gelu_new(x):
    # GPT2 "gelu_new" (tanh approximation)
    return 0.5 * x * (1.0 + jnp.tanh(0.7978845608028654 * (x + 0.044715 * x * x * x)))


def _layernorm_f32(x, g, b):
    mean = jnp.mean(x, axis=-1, keepdims=True)
    var = jnp.mean(jnp.square(x - mean), axis=-1, keepdims=True)
    return (x - mean) * lax.rsqrt(var + _LN_EPS) * g + b


def _m_tiling(M):
    """Row tile size + number of tiles. Full-array block if small, else 512-row tiles."""
    if M <= _M_TILE_CAP:
        return M, 1
    return _M_TILE_CAP, pl.cdiv(M, _M_TILE_CAP)


def _compiler_params(n_axes):
    return pltpu.CompilerParams(
        dimension_semantics=("parallel",) * n_axes,
        vmem_limit_bytes=_VMEM_LIMIT,
    )


# ---------------------------------------------------------------------------
# Pallas kernels
# ---------------------------------------------------------------------------

def _linear_kernel(x_ref, w_ref, b_ref, o_ref, *, activation):
    x = x_ref[...].astype(MXU_DTYPE)
    y = jnp.dot(x, w_ref[...], preferred_element_type=jnp.float32) + b_ref[...]
    if activation == "gelu":
        y = _gelu_new(y)
    o_ref[...] = y.astype(o_ref.dtype)


def _linear_residual_kernel(x_ref, w_ref, b_ref, r_ref, o_ref):
    x = x_ref[...].astype(MXU_DTYPE)
    y = jnp.dot(x, w_ref[...], preferred_element_type=jnp.float32) + b_ref[...]
    o_ref[...] = (r_ref[...].astype(jnp.float32) + y).astype(o_ref.dtype)


def _ln_linear_kernel(x_ref, g_ref, bln_ref, w_ref, b_ref, o_ref, *, activation):
    x = _layernorm_f32(x_ref[...].astype(jnp.float32), g_ref[...], bln_ref[...])
    y = jnp.dot(x.astype(MXU_DTYPE), w_ref[...], preferred_element_type=jnp.float32) + b_ref[...]
    if activation == "gelu":
        y = _gelu_new(y)
    o_ref[...] = y.astype(o_ref.dtype)


def _mlp_block_kernel(h_ref, g_ref, bln_ref, fcw_ref, fcb_ref, pw_ref, pb_ref, o_ref):
    # out = h + proj(gelu(LN(h) @ fc_w + fc_b)) @ proj_w + proj_b   (all in one VMEM-resident tile)
    h = h_ref[...].astype(jnp.float32)
    x = _layernorm_f32(h, g_ref[...], bln_ref[...])
    a = jnp.dot(x.astype(MXU_DTYPE), fcw_ref[...], preferred_element_type=jnp.float32) + fcb_ref[...]
    a = _gelu_new(a)
    y = jnp.dot(a.astype(MXU_DTYPE), pw_ref[...], preferred_element_type=jnp.float32) + pb_ref[...]
    o_ref[...] = (h + y).astype(o_ref.dtype)


def _layernorm_kernel(x_ref, g_ref, b_ref, o_ref):
    o_ref[...] = _layernorm_f32(
        x_ref[...].astype(jnp.float32), g_ref[...], b_ref[...]).astype(o_ref.dtype)


def _attention_kernel(q_ref, k_ref, v_ref, mask_ref, o_ref, *, scale):
    # q/k/v blocks: [H, S, Dh] (all heads of one batch element per grid step).
    q = q_ref[...].astype(MXU_DTYPE)
    k = k_ref[...].astype(MXU_DTYPE)
    v = v_ref[...].astype(MXU_DTYPE)
    # contract on last dim directly (no explicit transpose / XLU relayout)
    s = lax.dot_general(q, k, (((2,), (2,)), ((0,), (0,))),
                        preferred_element_type=jnp.float32)          # [H, S, S]
    s = s * scale + mask_ref[...][None, :, :]                        # additive causal mask (f32)
    s = s - jnp.max(s, axis=-1, keepdims=True)
    p = jnp.exp(s)
    p = p * pl.reciprocal(jnp.sum(p, axis=-1, keepdims=True), approx=True)
    o = lax.dot_general(p.astype(MXU_DTYPE), v, (((2,), (1,)), ((0,), (0,))),
                        preferred_element_type=jnp.float32)          # [H, S, Dh]
    o_ref[...] = o.astype(o_ref.dtype)


# ---------------------------------------------------------------------------
# Pallas wrappers
# ---------------------------------------------------------------------------

def pallas_linear(x, w, b, activation=None, residual=None):
    """y = x @ w + b (optionally fused gelu OR fused residual add)."""
    orig_shape = x.shape
    K = orig_shape[-1]
    M = int(math.prod(orig_shape[:-1]))
    N = w.shape[1]
    x2 = x.reshape(M, K)
    TM, n_m = _m_tiling(M)

    in_specs = [
        pl.BlockSpec((TM, K), lambda i: (i, 0)),
        pl.BlockSpec((K, N), lambda i: (0, 0)),
        pl.BlockSpec((1, N), lambda i: (0, 0)),
    ]
    args = [x2, w.astype(MXU_DTYPE), b.reshape(1, N).astype(jnp.float32)]
    if residual is not None:
        in_specs.append(pl.BlockSpec((TM, N), lambda i: (i, 0)))
        args.append(residual.reshape(M, N))
        kernel = _linear_residual_kernel
    else:
        kernel = functools.partial(_linear_kernel, activation=activation)

    out = pl.pallas_call(
        kernel,
        out_shape=jax.ShapeDtypeStruct((M, N), jnp.float32),
        grid=(n_m,),
        in_specs=in_specs,
        out_specs=pl.BlockSpec((TM, N), lambda i: (i, 0)),
        compiler_params=_compiler_params(1),
    )(*args)
    return out.reshape(orig_shape[:-1] + (N,))


def pallas_ln_linear(x, gamma, beta, w, b, activation=None):
    """y = LayerNorm(x) @ w + b, LN fused into the matmul kernel."""
    orig_shape = x.shape
    K = orig_shape[-1]
    M = int(math.prod(orig_shape[:-1]))
    N = w.shape[1]
    x2 = x.reshape(M, K)
    TM, n_m = _m_tiling(M)

    out = pl.pallas_call(
        functools.partial(_ln_linear_kernel, activation=activation),
        out_shape=jax.ShapeDtypeStruct((M, N), jnp.float32),
        grid=(n_m,),
        in_specs=[
            pl.BlockSpec((TM, K), lambda i: (i, 0)),
            pl.BlockSpec((1, K), lambda i: (0, 0)),
            pl.BlockSpec((1, K), lambda i: (0, 0)),
            pl.BlockSpec((K, N), lambda i: (0, 0)),
            pl.BlockSpec((1, N), lambda i: (0, 0)),
        ],
        out_specs=pl.BlockSpec((TM, N), lambda i: (i, 0)),
        compiler_params=_compiler_params(1),
    )(x2,
      gamma.reshape(1, K).astype(jnp.float32),
      beta.reshape(1, K).astype(jnp.float32),
      w.astype(MXU_DTYPE),
      b.reshape(1, N).astype(jnp.float32))
    return out.reshape(orig_shape[:-1] + (N,))


def pallas_mlp_block(h, gamma, beta, fc_w, fc_b, proj_w, proj_b):
    """h + proj(gelu(LN(h) @ fc_w + fc_b)) — whole GPT2 MLP sub-block in one kernel."""
    orig_shape = h.shape
    E = orig_shape[-1]
    M = int(math.prod(orig_shape[:-1]))
    F = fc_w.shape[1]
    h2 = h.reshape(M, E)
    TM, n_m = _m_tiling(M)

    out = pl.pallas_call(
        _mlp_block_kernel,
        out_shape=jax.ShapeDtypeStruct((M, E), jnp.float32),
        grid=(n_m,),
        in_specs=[
            pl.BlockSpec((TM, E), lambda i: (i, 0)),
            pl.BlockSpec((1, E), lambda i: (0, 0)),
            pl.BlockSpec((1, E), lambda i: (0, 0)),
            pl.BlockSpec((E, F), lambda i: (0, 0)),
            pl.BlockSpec((1, F), lambda i: (0, 0)),
            pl.BlockSpec((F, E), lambda i: (0, 0)),
            pl.BlockSpec((1, E), lambda i: (0, 0)),
        ],
        out_specs=pl.BlockSpec((TM, E), lambda i: (i, 0)),
        compiler_params=_compiler_params(1),
    )(h2,
      gamma.reshape(1, E).astype(jnp.float32),
      beta.reshape(1, E).astype(jnp.float32),
      fc_w.astype(MXU_DTYPE),
      fc_b.reshape(1, F).astype(jnp.float32),
      proj_w.astype(MXU_DTYPE),
      proj_b.reshape(1, E).astype(jnp.float32))
    return out.reshape(orig_shape)


def pallas_layernorm(x, gamma, beta):
    orig_shape = x.shape
    D = orig_shape[-1]
    M = int(math.prod(orig_shape[:-1]))
    x2 = x.reshape(M, D)
    TM, n_m = _m_tiling(M)
    out = pl.pallas_call(
        _layernorm_kernel,
        out_shape=jax.ShapeDtypeStruct((M, D), jnp.float32),
        grid=(n_m,),
        in_specs=[
            pl.BlockSpec((TM, D), lambda i: (i, 0)),
            pl.BlockSpec((1, D), lambda i: (0, 0)),
            pl.BlockSpec((1, D), lambda i: (0, 0)),
        ],
        out_specs=pl.BlockSpec((TM, D), lambda i: (i, 0)),
        compiler_params=_compiler_params(1),
    )(x2, gamma.reshape(1, D).astype(jnp.float32), beta.reshape(1, D).astype(jnp.float32))
    return out.reshape(orig_shape)


def pallas_causal_attention(q, k, v, n_head):
    """q, k, v: [B, S, E]. Causal multi-head attention; all heads of one batch per grid step."""
    B, S, E = q.shape
    Dh = E // n_head
    scale = 1.0 / math.sqrt(Dh)

    def split_heads(t):  # [B, S, E] -> [B*H, S, Dh]
        return t.reshape(B, S, n_head, Dh).transpose(0, 2, 1, 3).reshape(B * n_head, S, Dh)

    qh, kh, vh = split_heads(q), split_heads(k), split_heads(v)

    # Additive causal mask built once outside the kernel; block index constant -> fetched once.
    col = jnp.arange(S)[None, :]
    row = jnp.arange(S)[:, None]
    mask = jnp.where(col <= row, 0.0, -1e30).astype(jnp.float32)

    out = pl.pallas_call(
        functools.partial(_attention_kernel, scale=scale),
        out_shape=jax.ShapeDtypeStruct((B * n_head, S, Dh), jnp.float32),
        grid=(B,),
        in_specs=[
            pl.BlockSpec((n_head, S, Dh), lambda b: (b, 0, 0)),
            pl.BlockSpec((n_head, S, Dh), lambda b: (b, 0, 0)),
            pl.BlockSpec((n_head, S, Dh), lambda b: (b, 0, 0)),
            pl.BlockSpec((S, S), lambda b: (0, 0)),
        ],
        out_specs=pl.BlockSpec((n_head, S, Dh), lambda b: (b, 0, 0)),
        compiler_params=_compiler_params(1),
    )(qh, kh, vh, mask)

    return out.reshape(B, n_head, S, Dh).transpose(0, 2, 1, 3).reshape(B, S, E)


# ---------------------------------------------------------------------------
# Model (parameter setup + forward glue)
# ---------------------------------------------------------------------------

def init_params(key, *, n_dims, n_positions, n_embd, n_layer, n_head,
                hidden_layer_size, n_in_intermediate):
    def nrm(k, shape, scale=0.02):
        return scale * jax.random.normal(k, shape, dtype=jnp.float32)

    keys = jax.random.split(key, 8 + 10 * n_layer)
    ki = iter(range(len(keys)))
    p = {}
    p["read_in_x_w"] = nrm(keys[next(ki)], (n_dims, n_embd))
    p["read_in_x_b"] = nrm(keys[next(ki)], (n_embd,))
    p["read_in_y_w"] = nrm(keys[next(ki)], (1, n_embd))
    p["read_in_y_b"] = nrm(keys[next(ki)], (n_embd,))
    p["read_in_h_w"] = nrm(keys[next(ki)], (hidden_layer_size, n_embd))
    p["read_in_h_b"] = nrm(keys[next(ki)], (n_embd,))
    p["read_out_w"] = nrm(keys[next(ki)], (n_embd, 1))
    p["read_out_b"] = jnp.zeros((1,), jnp.float32)
    p["read_out_h_w"] = nrm(keys[next(ki)], (n_embd, hidden_layer_size))
    p["read_out_h_b"] = jnp.zeros((hidden_layer_size,), jnp.float32)

    n_pos_cfg = (2 + n_in_intermediate) * n_positions
    kpe = jax.random.split(keys[-1], 1)[0]
    p["wpe"] = nrm(kpe, (n_pos_cfg, n_embd))

    blocks = []
    for l in range(n_layer):
        bk = jax.random.split(jax.random.fold_in(key, 1000 + l), 6)
        blk = {
            "ln1_g": jnp.ones((n_embd,), jnp.float32),
            "ln1_b": jnp.zeros((n_embd,), jnp.float32),
            "attn_w": nrm(bk[0], (n_embd, 3 * n_embd)),
            "attn_b": jnp.zeros((3 * n_embd,), jnp.float32),
            "attn_proj_w": nrm(bk[1], (n_embd, n_embd)),
            "attn_proj_b": jnp.zeros((n_embd,), jnp.float32),
            "ln2_g": jnp.ones((n_embd,), jnp.float32),
            "ln2_b": jnp.zeros((n_embd,), jnp.float32),
            "fc_w": nrm(bk[2], (n_embd, 4 * n_embd)),
            "fc_b": jnp.zeros((4 * n_embd,), jnp.float32),
            "proj_w": nrm(bk[3], (4 * n_embd, n_embd)),
            "proj_b": jnp.zeros((n_embd,), jnp.float32),
        }
        blocks.append(blk)
    p["blocks"] = blocks
    p["lnf_g"] = jnp.ones((n_embd,), jnp.float32)
    p["lnf_b"] = jnp.zeros((n_embd,), jnp.float32)
    return p


def gpt2_block(h, blk, n_head):
    # --- attention sub-block: LN1+QKV fused, attention, proj+residual fused ---
    qkv = pallas_ln_linear(h, blk["ln1_g"], blk["ln1_b"], blk["attn_w"], blk["attn_b"])
    q, k, v = jnp.split(qkv, 3, axis=-1)
    attn = pallas_causal_attention(q, k, v, n_head)
    h = pallas_linear(attn, blk["attn_proj_w"], blk["attn_proj_b"], residual=h)
    # --- MLP sub-block: LN2 + fc + gelu + proj + residual in one kernel ---
    h = pallas_mlp_block(h, blk["ln2_g"], blk["ln2_b"],
                         blk["fc_w"], blk["fc_b"], blk["proj_w"], blk["proj_b"])
    return h


def transformer_nn_forward(params, xs, ys, layer_activations, *,
                           n_embd, n_head, n_in_intermediate, n_out_intermediate,
                           knot1, knot2):
    """Mirrors TransformerNN.forward with loss_func = squared error (elementwise)."""
    B, P, _ = xs.shape
    x_idx_freq = n_in_intermediate + 2

    # _combine_embed
    xs_embed = pallas_linear(xs, params["read_in_x_w"], params["read_in_x_b"])
    stacked = [xs_embed]
    for i in range(n_in_intermediate):
        stacked.append(pallas_linear(layer_activations[i],
                                     params["read_in_h_w"], params["read_in_h_b"]))
    ys_embed = pallas_linear(ys.reshape(B, P, 1),
                             params["read_in_y_w"], params["read_in_y_b"])
    stacked.append(ys_embed)
    zs = jnp.stack(stacked, axis=2).reshape(B, len(stacked) * P, n_embd)

    # GPT2 backbone (inputs_embeds + learned positional embeddings, dropout=0)
    S = zs.shape[1]
    h = zs + params["wpe"][:S][None, :, :]
    for blk in params["blocks"]:
        h = gpt2_block(h, blk, n_head)
    output = pallas_layernorm(h, params["lnf_g"], params["lnf_b"])   # last_hidden_state

    def loss_func(a, b):  # elementwise squared error
        return (a - b) ** 2

    # Readout GEMVs (N=1 / N=hidden_layer_size) kept in plain XLA to avoid
    # 1-4 lane masked stores in a dedicated pallas_call (per perf review).
    losses = []
    for i in range(n_out_intermediate):
        pred_hidden = (jnp.einsum("bse,eh->bsh", output[:, i::x_idx_freq],
                                  params["read_out_h_w"]) + params["read_out_h_b"])
        losses.append(loss_func(pred_hidden, layer_activations[i]).sum(-1).mean())
    pred = (jnp.einsum("bse,eo->bso", output[:, n_out_intermediate::x_idx_freq],
                       params["read_out_w"]) + params["read_out_b"])
    losses.append(loss_func(pred[:, :, 0], ys).mean())

    out0 = sum(losses[knot2:]) / len(losses[knot2:])
    out1 = sum(losses[knot1:knot2]) / (knot2 - knot1)
    out2 = sum(losses[:knot1]) / knot1
    return out0, out1, out2


# ---------------------------------------------------------------------------
# Main
# ---------------------------------------------------------------------------

if __name__ == "__main__":
    # Small config consistent with the module (n_layer shrunk from 12 -> 2 for speed).
    n_dims = 4
    n_positions = 8          # points per sequence
    n_embd = 32
    n_layer = 2
    n_head = 4
    hidden_layer_size = 4
    n_in_intermediate = 2
    n_out_intermediate = 2   # = min(n_in_intermediate, n_out_intermediate)
    knot1, knot2 = 1, 2
    B = 2

    key = jax.random.PRNGKey(0)
    kp, kx, ky, ka0, ka1 = jax.random.split(key, 5)

    params = init_params(kp, n_dims=n_dims, n_positions=n_positions, n_embd=n_embd,
                         n_layer=n_layer, n_head=n_head,
                         hidden_layer_size=hidden_layer_size,
                         n_in_intermediate=n_in_intermediate)

    xs = jax.random.normal(kx, (B, n_positions, n_dims), dtype=jnp.float32)
    ys = jax.random.normal(ky, (B, n_positions), dtype=jnp.float32)
    layer_activations = [
        jax.random.normal(ka0, (B, n_positions, hidden_layer_size), dtype=jnp.float32),
        jax.random.normal(ka1, (B, n_positions, hidden_layer_size), dtype=jnp.float32),
    ]

    fwd = jax.jit(functools.partial(
        transformer_nn_forward,
        n_embd=n_embd, n_head=n_head,
        n_in_intermediate=n_in_intermediate, n_out_intermediate=n_out_intermediate,
        knot1=knot1, knot2=knot2))

    out = fwd(params, xs, ys, layer_activations)
    jax.block_until_ready(out)
    assert all(jnp.isfinite(o) for o in out)
    print("KERNEL_OK")
</pallas_src>

<mosaic_0001>
module attributes {stable_mosaic.version = 11 : i64} {
  func.func @_linear_kernel(%arg0: i32, %arg1: memref<16x4xf32, #tpu.memory_space<vmem>>, %arg2: memref<4x32xbf16, #tpu.memory_space<vmem>>, %arg3: memref<1x32xf32, #tpu.memory_space<vmem>>, %arg4: memref<16x32xf32, #tpu.memory_space<vmem>>) attributes {dimension_semantics = [#tpu.dimension_semantics<parallel>], iteration_bounds = array<i64: 1>, scalar_prefetch = 0 : i64, scratch_operands = 0 : i64, tpu.core_type = #tpu.core_type<tc>, window_params = [{transform_indices = @transform_0, window_bounds = array<i64: 16, 4>}, {pipeline_mode = #tpu.pipeline_mode<synchronous>, transform_indices = @transform_1, window_bounds = array<i64: 4, 32>}, {pipeline_mode = #tpu.pipeline_mode<synchronous>, transform_indices = @transform_2, window_bounds = array<i64: 1, 32>}, {transform_indices = @transform_3, window_bounds = array<i64: 16, 32>}]} {
    %c0 = arith.constant 0 : index
    %c0_0 = arith.constant 0 : index
    %0 = vector.load %arg1[%c0, %c0_0] : memref<16x4xf32, #tpu.memory_space<vmem>>, vector<16x4xf32>
    %1 = arith.truncf %0 : vector<16x4xf32> to vector<16x4xbf16>
    %c0_1 = arith.constant 0 : index
    %c0_2 = arith.constant 0 : index
    %2 = vector.load %arg2[%c0_1, %c0_2] : memref<4x32xbf16, #tpu.memory_space<vmem>>, vector<4x32xbf16>
    %cst = arith.constant dense<0.000000e+00> : vector<16x32xf32>
    %3 = tpu.matmul %1, %2, %cst {dimension_numbers = #tpu.dot_dimension_numbers<[1], [0], [0], [1], [0, 0, 1, 1], [], []>} : vector<16x4xbf16>, vector<4x32xbf16>, vector<16x32xf32> -> vector<16x32xf32>
    %c0_3 = arith.constant 0 : index
    %c0_4 = arith.constant 0 : index
    %4 = vector.load %arg3[%c0_3, %c0_4] : memref<1x32xf32, #tpu.memory_space<vmem>>, vector<1x32xf32>
    %5 = vector.broadcast %4 : vector<1x32xf32> to vector<16x32xf32>
    %6 = arith.addf %3, %5 : vector<16x32xf32>
    %c0_5 = arith.constant 0 : index
    %c0_6 = arith.constant 0 : index
    %7 = vector.load %arg4[%c0_5, %c0_6] : memref<16x32xf32, #tpu.memory_space<vmem>>, vector<16x32xf32>
    tpu.vector_store %arg4[%c0_5, %c0_6], %6 {strides = array<i32>} : memref<16x32xf32, #tpu.memory_space<vmem>>, vector<16x32xf32>,
    return
  }
  func.func @transform_0(%arg0: i32) -> (i32, i32) {
    %c0_i32 = arith.constant 0 : i32
    %c0_i32_0 = arith.constant 0 : i32
    return %arg0, %c0_i32 : i32, i32
  }
  func.func @transform_1(%arg0: i32) -> (i32, i32) {
    %c0_i32 = arith.constant 0 : i32
    %c0_i32_0 = arith.constant 0 : i32
    %c0_i32_1 = arith.constant 0 : i32
    return %c0_i32, %c0_i32_0 : i32, i32
  }
  func.func @transform_2(%arg0: i32) -> (i32, i32) {
    %c0_i32 = arith.constant 0 : i32
    %c0_i32_0 = arith.constant 0 : i32
    %c0_i32_1 = arith.constant 0 : i32
    return %c0_i32, %c0_i32_0 : i32, i32
  }
  func.func @transform_3(%arg0: i32) -> (i32, i32) {
    %c0_i32 = arith.constant 0 : i32
    %c0_i32_0 = arith.constant 0 : i32
    return %arg0, %c0_i32 : i32, i32
  }
}

module attributes {stable_mosaic.version = 11 : i64} {
  func.func @_linear_kernel(%arg0: i32, %arg1: memref<16x1xf32, #tpu.memory_space<vmem>>, %arg2: memref<1x32xbf16, #tpu.memory_space<vmem>>, %arg3: memref<1x32xf32, #tpu.memory_space<vmem>>, %arg4: memref<16x32xf32, #tpu.memory_space<vmem>>) attributes {dimension_semantics = [#tpu.dimension_semantics<parallel>], iteration_bounds = array<i64: 1>, scalar_prefetch = 0 : i64, scratch_operands = 0 : i64, tpu.core_type = #tpu.core_type<tc>, window_params = [{transform_indices = @transform_0, window_bounds = array<i64: 16, 1>}, {pipeline_mode = #tpu.pipeline_mode<synchronous>, transform_indices = @transform_1, window_bounds = array<i64: 1, 32>}, {pipeline_mode = #tpu.pipeline_mode<synchronous>, transform_indices = @transform_2, window_bounds = array<i64: 1, 32>}, {transform_indices = @transform_3, window_bounds = array<i64: 16, 32>}]} {
    %c0 = arith.constant 0 : index
    %c0_0 = arith.constant 0 : index
    %0 = vector.load %arg1[%c0, %c0_0] : memref<16x1xf32, #tpu.memory_space<vmem>>, vector<16x1xf32>
    %1 = arith.truncf %0 : vector<16x1xf32> to vector<16x1xbf16>
    %c0_1 = arith.constant 0 : index
    %c0_2 = arith.constant 0 : index
    %2 = vector.load %arg2[%c0_1, %c0_2] : memref<1x32xbf16, #tpu.memory_space<vmem>>, vector<1x32xbf16>
    %cst = arith.constant dense<0.000000e+00> : vector<16x32xf32>
    %3 = tpu.matmul %1, %2, %cst {dimension_numbers = #tpu.dot_dimension_numbers<[1], [0], [0], [1], [0, 0, 1, 1], [], []>} : vector<16x1xbf16>, vector<1x32xbf16>, vector<16x32xf32> -> vector<16x32xf32>
    %c0_3 = arith.constant 0 : index
    %c0_4 = arith.constant 0 : index
    %4 = vector.load %arg3[%c0_3, %c0_4] : memref<1x32xf32, #tpu.memory_space<vmem>>, vector<1x32xf32>
    %5 = vector.broadcast %4 : vector<1x32xf32> to vector<16x32xf32>
    %6 = arith.addf %3, %5 : vector<16x32xf32>
    %c0_5 = arith.constant 0 : index
    %c0_6 = arith.constant 0 : index
    %7 = vector.load %arg4[%c0_5, %c0_6] : memref<16x32xf32, #tpu.memory_space<vmem>>, vector<16x32xf32>
    tpu.vector_store %arg4[%c0_5, %c0_6], %6 {strides = array<i32>} : memref<16x32xf32, #tpu.memory_space<vmem>>, vector<16x32xf32>,
    return
  }
  func.func @transform_0(%arg0: i32) -> (i32, i32) {
    %c0_i32 = arith.constant 0 : i32
    %c0_i32_0 = arith.constant 0 : i32
    return %arg0, %c0_i32 : i32, i32
  }
  func.func @transform_1(%arg0: i32) -> (i32, i32) {
    %c0_i32 = arith.constant 0 : i32
    %c0_i32_0 = arith.constant 0 : i32
    %c0_i32_1 = arith.constant 0 : i32
    return %c0_i32, %c0_i32_0 : i32, i32
  }
  func.func @transform_2(%arg0: i32) -> (i32, i32) {
    %c0_i32 = arith.constant 0 : i32
    %c0_i32_0 = arith.constant 0 : i32
    %c0_i32_1 = arith.constant 0 : i32
    return %c0_i32, %c0_i32_0 : i32, i32
  }
  func.func @transform_3(%arg0: i32) -> (i32, i32) {
    %c0_i32 = arith.constant 0 : i32
    %c0_i32_0 = arith.constant 0 : i32
    return %arg0, %c0_i32 : i32, i32
  }
}

module attributes {stable_mosaic.version = 11 : i64} {
  func.func @_ln_linear_kernel(%arg0: i32, %arg1: memref<64x32xf32, #tpu.memory_space<vmem>>, %arg2: memref<1x32xf32, #tpu.memory_space<vmem>>, %arg3: memref<1x32xf32, #tpu.memory_space<vmem>>, %arg4: memref<32x96xbf16, #tpu.memory_space<vmem>>, %arg5: memref<1x96xf32, #tpu.memory_space<vmem>>, %arg6: memref<64x96xf32, #tpu.memory_space<vmem>>) attributes {dimension_semantics = [#tpu.dimension_semantics<parallel>], iteration_bounds = array<i64: 1>, scalar_prefetch = 0 : i64, scratch_operands = 0 : i64, tpu.core_type = #tpu.core_type<tc>, window_params = [{transform_indices = @transform_0, window_bounds = array<i64: 64, 32>}, {pipeline_mode = #tpu.pipeline_mode<synchronous>, transform_indices = @transform_1, window_bounds = array<i64: 1, 32>}, {pipeline_mode = #tpu.pipeline_mode<synchronous>, transform_indices = @transform_2, window_bounds = array<i64: 1, 32>}, {pipeline_mode = #tpu.pipeline_mode<synchronous>, transform_indices = @transform_3, window_bounds = array<i64: 32, 96>}, {pipeline_mode = #tpu.pipeline_mode<synchronous>, transform_indices = @transform_4, window_bounds = array<i64: 1, 96>}, {transform_indices = @transform_5, window_bounds = array<i64: 64, 96>}]} {
    %c0 = arith.constant 0 : index
    %c0_0 = arith.constant 0 : index
    %0 = vector.load %arg1[%c0, %c0_0] : memref<64x32xf32, #tpu.memory_space<vmem>>, vector<64x32xf32>
    %c0_1 = arith.constant 0 : index
    %c0_2 = arith.constant 0 : index
    %1 = vector.load %arg2[%c0_1, %c0_2] : memref<1x32xf32, #tpu.memory_space<vmem>>, vector<1x32xf32>
    %c0_3 = arith.constant 0 : index
    %c0_4 = arith.constant 0 : index
    %2 = vector.load %arg3[%c0_3, %c0_4] : memref<1x32xf32, #tpu.memory_space<vmem>>, vector<1x32xf32>
    %cst = arith.constant dense<0.000000e+00> : vector<64xf32>
    %3 = vector.multi_reduction <add>, %0, %cst [1] : vector<64x32xf32> to vector<64xf32>
    %4 = vector.shape_cast %3 : vector<64xf32> to vector<64x1xf32>
    %cst_5 = arith.constant 3.200000e+01 : f32
    %5 = vector.broadcast %cst_5 : f32 to vector<64x1xf32>
    %6 = arith.divf %4, %5 : vector<64x1xf32>
    %7 = vector.broadcast %6 : vector<64x1xf32> to vector<64x32xf32>
    %8 = arith.subf %0, %7 : vector<64x32xf32>
    %9 = arith.mulf %8, %8 : vector<64x32xf32>
    %cst_6 = arith.constant dense<0.000000e+00> : vector<64xf32>
    %10 = vector.multi_reduction <add>, %9, %cst_6 [1] : vector<64x32xf32> to vector<64xf32>
    %11 = vector.shape_cast %10 : vector<64xf32> to vector<64x1xf32>
    %cst_7 = arith.constant 3.200000e+01 : f32
    %12 = vector.broadcast %cst_7 : f32 to vector<64x1xf32>
    %13 = arith.divf %11, %12 : vector<64x1xf32>
    %14 = vector.broadcast %6 : vector<64x1xf32> to vector<64x32xf32>
    %15 = arith.subf %0, %14 : vector<64x32xf32>
    %cst_8 = arith.constant 9.99999974E-6 : f32
    %16 = vector.broadcast %cst_8 : f32 to vector<64x1xf32>
    %17 = arith.addf %13, %16 : vector<64x1xf32>
    %18 = math.rsqrt %17 : vector<64x1xf32>
    %19 = vector.broadcast %18 : vector<64x1xf32> to vector<64x32xf32>
    %20 = arith.mulf %15, %19 : vector<64x32xf32>
    %21 = vector.broadcast %1 : vector<1x32xf32> to vector<64x32xf32>
    %22 = arith.mulf %20, %21 : vector<64x32xf32>
    %23 = vector.broadcast %2 : vector<1x32xf32> to vector<64x32xf32>
    %24 = arith.addf %22, %23 : vector<64x32xf32>
    %25 = arith.truncf %24 : vector<64x32xf32> to vector<64x32xbf16>
    %c0_9 = arith.constant 0 : index
    %c0_10 = arith.constant 0 : index
    %26 = vector.load %arg4[%c0_9, %c0_10] : memref<32x96xbf16, #tpu.memory_space<vmem>>, vector<32x96xbf16>
    %cst_11 = arith.constant dense<0.000000e+00> : vector<64x96xf32>
    %27 = tpu.matmul %25, %26, %cst_11 {dimension_numbers = #tpu.dot_dimension_numbers<[1], [0], [0], [1], [0, 0, 1, 1], [], []>} : vector<64x32xbf16>, vector<32x96xbf16>, vector<64x96xf32> -> vector<64x96xf32>
    %c0_12 = arith.constant 0 : index
    %c0_13 = arith.constant 0 : index
    %28 = vector.load %arg5[%c0_12, %c0_13] : memref<1x96xf32, #tpu.memory_space<vmem>>, vector<1x96xf32>
    %29 = vector.broadcast %28 : vector<1x96xf32> to vector<64x96xf32>
    %30 = arith.addf %27, %29 : vector<64x96xf32>
    %c0_14 = arith.constant 0 : index
    %c0_15 = arith.constant 0 : index
    %31 = vector.load %arg6[%c0_14, %c0_15] : memref<64x96xf32, #tpu.memory_space<vmem>>, vector<64x96xf32>
    tpu.vector_store %arg6[%c0_14, %c0_15], %30 {strides = array<i32>} : memref<64x96xf32, #tpu.memory_space<vmem>>, vector<64x96xf32>,
    return
  }
  func.func @transform_0(%arg0: i32) -> (i32, i32) {
    %c0_i32 = arith.constant 0 : i32
    %c0_i32_0 = arith.constant 0 : i32
    return %arg0, %c0_i32 : i32, i32
  }
  func.func @transform_1(%arg0: i32) -> (i32, i32) {
    %c0_i32 = arith.constant 0 : i32
    %c0_i32_0 = arith.constant 0 : i32
    %c0_i32_1 = arith.constant 0 : i32
    return %c0_i32, %c0_i32_0 : i32, i32
  }
  func.func @transform_2(%arg0: i32) -> (i32, i32) {
    %c0_i32 = arith.constant 0 : i32
    %c0_i32_0 = arith.constant 0 : i32
    %c0_i32_1 = arith.constant 0 : i32
    return %c0_i32, %c0_i32_0 : i32, i32
  }
  func.func @transform_3(%arg0: i32) -> (i32, i32) {
    %c0_i32 = arith.constant 0 : i32
    %c0_i32_0 = arith.constant 0 : i32
    %c0_i32_1 = arith.constant 0 : i32
    return %c0_i32, %c0_i32_0 : i32, i32
  }
  func.func @transform_4(%arg0: i32) -> (i32, i32) {
    %c0_i32 = arith.constant 0 : i32
    %c0_i32_0 = arith.constant 0 : i32
    %c0_i32_1 = arith.constant 0 : i32
    return %c0_i32, %c0_i32_0 : i32, i32
  }
  func.func @transform_5(%arg0: i32) -> (i32, i32) {
    %c0_i32 = arith.constant 0 : i32
    %c0_i32_0 = arith.constant 0 : i32
    return %arg0, %c0_i32 : i32, i32
  }
}

module attributes {stable_mosaic.version = 11 : i64} {
  func.func @_attention_kernel(%arg0: i32, %arg1: memref<4x32x8xf32, #tpu.memory_space<vmem>>, %arg2: memref<4x32x8xf32, #tpu.memory_space<vmem>>, %arg3: memref<4x32x8xf32, #tpu.memory_space<vmem>>, %arg4: memref<32x32xf32, #tpu.memory_space<vmem>>, %arg5: memref<4x32x8xf32, #tpu.memory_space<vmem>>) attributes {dimension_semantics = [#tpu.dimension_semantics<parallel>], iteration_bounds = array<i64: 2>, scalar_prefetch = 0 : i64, scratch_operands = 0 : i64, tpu.core_type = #tpu.core_type<tc>, window_params = [{transform_indices = @transform_0, window_bounds = array<i64: 4, 32, 8>}, {transform_indices = @transform_1, window_bounds = array<i64: 4, 32, 8>}, {transform_indices = @transform_2, window_bounds = array<i64: 4, 32, 8>}, {pipeline_mode = #tpu.pipeline_mode<synchronous>, transform_indices = @transform_3, window_bounds = array<i64: 32, 32>}, {transform_indices = @transform_4, window_bounds = array<i64: 4, 32, 8>}]} {
    %c0 = arith.constant 0 : index
    %c0_0 = arith.constant 0 : index
    %c0_1 = arith.constant 0 : index
    %0 = vector.load %arg1[%c0, %c0_0, %c0_1] : memref<4x32x8xf32, #tpu.memory_space<vmem>>, vector<4x32x8xf32>
    %1 = arith.truncf %0 : vector<4x32x8xf32> to vector<4x32x8xbf16>
    %c0_2 = arith.constant 0 : index
    %c0_3 = arith.constant 0 : index
    %c0_4 = arith.constant 0 : index
    %2 = vector.load %arg2[%c0_2, %c0_3, %c0_4] : memref<4x32x8xf32, #tpu.memory_space<vmem>>, vector<4x32x8xf32>
    %3 = arith.truncf %2 : vector<4x32x8xf32> to vector<4x32x8xbf16>
    %c0_5 = arith.constant 0 : index
    %c0_6 = arith.constant 0 : index
    %c0_7 = arith.constant 0 : index
    %4 = vector.load %arg3[%c0_5, %c0_6, %c0_7] : memref<4x32x8xf32, #tpu.memory_space<vmem>>, vector<4x32x8xf32>
    %5 = arith.truncf %4 : vector<4x32x8xf32> to vector<4x32x8xbf16>
    %cst = arith.constant dense<0.000000e+00> : vector<4x32x32xf32>
    %6 = tpu.matmul %1, %3, %cst {dimension_numbers = #tpu.dot_dimension_numbers<[2], [2], [1], [1], [0, 0, 0, 1, 1, 1], [0], [0]>} : vector<4x32x8xbf16>, vector<4x32x8xbf16>, vector<4x32x32xf32> -> vector<4x32x32xf32>
    %cst_8 = arith.constant 0.353553385 : f32
    %7 = vector.broadcast %cst_8 : f32 to vector<4x32x32xf32>
    %8 = arith.mulf %6, %7 : vector<4x32x32xf32>
    %c0_9 = arith.constant 0 : index
    %c0_10 = arith.constant 0 : index
    %9 = vector.load %arg4[%c0_9, %c0_10] : memref<32x32xf32, #tpu.memory_space<vmem>>, vector<32x32xf32>
    %10 = vector.shape_cast %9 : vector<32x32xf32> to vector<1x32x32xf32>
    %11 = vector.broadcast %10 : vector<1x32x32xf32> to vector<4x32x32xf32>
    %12 = arith.addf %8, %11 : vector<4x32x32xf32>
    %cst_11 = arith.constant dense<0xFF800000> : vector<4x32xf32>
    %13 = vector.multi_reduction <maximumf>, %12, %cst_11 [2] : vector<4x32x32xf32> to vector<4x32xf32>
    %14 = vector.shape_cast %13 : vector<4x32xf32> to vector<4x32x1xf32>
    %15 = vector.broadcast %14 : vector<4x32x1xf32> to vector<4x32x32xf32>
    %16 = arith.subf %12, %15 : vector<4x32x32xf32>
    %17 = math.exp %16 : vector<4x32x32xf32>
    %cst_12 = arith.constant dense<0.000000e+00> : vector<4x32xf32>
    %18 = vector.multi_reduction <add>, %17, %cst_12 [2] : vector<4x32x32xf32> to vector<4x32xf32>
    %19 = vector.shape_cast %18 : vector<4x32xf32> to vector<4x32x1xf32>
    %20 = tpu.reciprocal %19 {approx = true} : vector<4x32x1xf32> -> vector<4x32x1xf32>
    %21 = vector.broadcast %20 : vector<4x32x1xf32> to vector<4x32x32xf32>
    %22 = arith.mulf %17, %21 : vector<4x32x32xf32>
    %23 = arith.truncf %22 : vector<4x32x32xf32> to vector<4x32x32xbf16>
    %cst_13 = arith.constant dense<0.000000e+00> : vector<4x32x8xf32>
    %24 = tpu.matmul %23, %5, %cst_13 {dimension_numbers = #tpu.dot_dimension_numbers<[2], [1], [1], [2], [0, 0, 0, 1, 1, 2], [0], [0]>} : vector<4x32x32xbf16>, vector<4x32x8xbf16>, vector<4x32x8xf32> -> vector<4x32x8xf32>
    %c0_14 = arith.constant 0 : index
    %c0_15 = arith.constant 0 : index
    %c0_16 = arith.constant 0 : index
    %25 = vector.load %arg5[%c0_14, %c0_15, %c0_16] : memref<4x32x8xf32, #tpu.memory_space<vmem>>, vector<4x32x8xf32>
    tpu.vector_store %arg5[%c0_14, %c0_15, %c0_16], %24 {strides = array<i32>} : memref<4x32x8xf32, #tpu.memory_space<vmem>>, vector<4x32x8xf32>,
    return
  }
  func.func @transform_0(%arg0: i32) -> (i32, i32, i32) {
    %c0_i32 = arith.constant 0 : i32
    %c0_i32_0 = arith.constant 0 : i32
    %c0_i32_1 = arith.constant 0 : i32
    return %arg0, %c0_i32, %c0_i32_0 : i32, i32, i32
  }
  func.func @transform_1(%arg0: i32) -> (i32, i32, i32) {
    %c0_i32 = arith.constant 0 : i32
    %c0_i32_0 = arith.constant 0 : i32
    %c0_i32_1 = arith.constant 0 : i32
    return %arg0, %c0_i32, %c0_i32_0 : i32, i32, i32
  }
  func.func @transform_2(%arg0: i32) -> (i32, i32, i32) {
    %c0_i32 = arith.constant 0 : i32
    %c0_i32_0 = arith.constant 0 : i32
    %c0_i32_1 = arith.constant 0 : i32
    return %arg0, %c0_i32, %c0_i32_0 : i32, i32, i32
  }
  func.func @transform_3(%arg0: i32) -> (i32, i32) {
    %c0_i32 = arith.constant 0 : i32
    %c0_i32_0 = arith.constant 0 : i32
    %c0_i32_1 = arith.constant 0 : i32
    return %c0_i32, %c0_i32_0 : i32, i32
  }
  func.func @transform_4(%arg0: i32) -> (i32, i32, i32) {
    %c0_i32 = arith.constant 0 : i32
    %c0_i32_0 = arith.constant 0 : i32
    %c0_i32_1 = arith.constant 0 : i32
    return %arg0, %c0_i32, %c0_i32_0 : i32, i32, i32
  }
}

module attributes {stable_mosaic.version = 11 : i64} {
  func.func @_layernorm_kernel(%arg0: i32, %arg1: memref<64x32xf32, #tpu.memory_space<vmem>>, %arg2: memref<1x32xf32, #tpu.memory_space<vmem>>, %arg3: memref<1x32xf32, #tpu.memory_space<vmem>>, %arg4: memref<64x32xf32, #tpu.memory_space<vmem>>) attributes {dimension_semantics = [#tpu.dimension_semantics<parallel>], iteration_bounds = array<i64: 1>, scalar_prefetch = 0 : i64, scratch_operands = 0 : i64, tpu.core_type = #tpu.core_type<tc>, window_params = [{transform_indices = @transform_0, window_bounds = array<i64: 64, 32>}, {pipeline_mode = #tpu.pipeline_mode<synchronous>, transform_indices = @transform_1, window_bounds = array<i64: 1, 32>}, {pipeline_mode = #tpu.pipeline_mode<synchronous>, transform_indices = @transform_2, window_bounds = array<i64: 1, 32>}, {transform_indices = @transform_3, window_bounds = array<i64: 64, 32>}]} {
    %c0 = arith.constant 0 : index
    %c0_0 = arith.constant 0 : index
    %0 = vector.load %arg1[%c0, %c0_0] : memref<64x32xf32, #tpu.memory_space<vmem>>, vector<64x32xf32>
    %c0_1 = arith.constant 0 : index
    %c0_2 = arith.constant 0 : index
    %1 = vector.load %arg2[%c0_1, %c0_2] : memref<1x32xf32, #tpu.memory_space<vmem>>, vector<1x32xf32>
    %c0_3 = arith.constant 0 : index
    %c0_4 = arith.constant 0 : index
    %2 = vector.load %arg3[%c0_3, %c0_4] : memref<1x32xf32, #tpu.memory_space<vmem>>, vector<1x32xf32>
    %cst = arith.constant dense<0.000000e+00> : vector<64xf32>
    %3 = vector.multi_reduction <add>, %0, %cst [1] : vector<64x32xf32> to vector<64xf32>
    %4 = vector.shape_cast %3 : vector<64xf32> to vector<64x1xf32>
    %cst_5 = arith.constant 3.200000e+01 : f32
    %5 = vector.broadcast %cst_5 : f32 to vector<64x1xf32>
    %6 = arith.divf %4, %5 : vector<64x1xf32>
    %7 = vector.broadcast %6 : vector<64x1xf32> to vector<64x32xf32>
    %8 = arith.subf %0, %7 : vector<64x32xf32>
    %9 = arith.mulf %8, %8 : vector<64x32xf32>
    %cst_6 = arith.constant dense<0.000000e+00> : vector<64xf32>
    %10 = vector.multi_reduction <add>, %9, %cst_6 [1] : vector<64x32xf32> to vector<64xf32>
    %11 = vector.shape_cast %10 : vector<64xf32> to vector<64x1xf32>
    %cst_7 = arith.constant 3.200000e+01 : f32
    %12 = vector.broadcast %cst_7 : f32 to vector<64x1xf32>
    %13 = arith.divf %11, %12 : vector<64x1xf32>
    %14 = vector.broadcast %6 : vector<64x1xf32> to vector<64x32xf32>
    %15 = arith.subf %0, %14 : vector<64x32xf32>
    %cst_8 = arith.constant 9.99999974E-6 : f32
    %16 = vector.broadcast %cst_8 : f32 to vector<64x1xf32>
    %17 = arith.addf %13, %16 : vector<64x1xf32>
    %18 = math.rsqrt %17 : vector<64x1xf32>
    %19 = vector.broadcast %18 : vector<64x1xf32> to vector<64x32xf32>
    %20 = arith.mulf %15, %19 : vector<64x32xf32>
    %21 = vector.broadcast %1 : vector<1x32xf32> to vector<64x32xf32>
    %22 = arith.mulf %20, %21 : vector<64x32xf32>
    %23 = vector.broadcast %2 : vector<1x32xf32> to vector<64x32xf32>
    %24 = arith.addf %22, %23 : vector<64x32xf32>
    %c0_9 = arith.constant 0 : index
    %c0_10 = arith.constant 0 : index
    %25 = vector.load %arg4[%c0_9, %c0_10] : memref<64x32xf32, #tpu.memory_space<vmem>>, vector<64x32xf32>
    tpu.vector_store %arg4[%c0_9, %c0_10], %24 {strides = array<i32>} : memref<64x32xf32, #tpu.memory_space<vmem>>, vector<64x32xf32>,
    return
  }
  func.func @transform_0(%arg0: i32) -> (i32, i32) {
    %c0_i32 = arith.constant 0 : i32
    %c0_i32_0 = arith.constant 0 : i32
    return %arg0, %c0_i32 : i32, i32
  }
  func.func @transform_1(%arg0: i32) -> (i32, i32) {
    %c0_i32 = arith.constant 0 : i32
    %c0_i32_0 = arith.constant 0 : i32
    %c0_i32_1 = arith.constant 0 : i32
    return %c0_i32, %c0_i32_0 : i32, i32
  }
  func.func @transform_2(%arg0: i32) -> (i32, i32) {
    %c0_i32 = arith.constant 0 : i32
    %c0_i32_0 = arith.constant 0 : i32
    %c0_i32_1 = arith.constant 0 : i32
    return %c0_i32, %c0_i32_0 : i32, i32
  }
  func.func @transform_3(%arg0: i32) -> (i32, i32) {
    %c0_i32 = arith.constant 0 : i32
    %c0_i32_0 = arith.constant 0 : i32
    return %arg0, %c0_i32 : i32, i32
  }
}

module attributes {stable_mosaic.version = 11 : i64} {
  func.func @_mlp_block_kernel(%arg0: i32, %arg1: memref<64x32xf32, #tpu.memory_space<vmem>>, %arg2: memref<1x32xf32, #tpu.memory_space<vmem>>, %arg3: memref<1x32xf32, #tpu.memory_space<vmem>>, %arg4: memref<32x128xbf16, #tpu.memory_space<vmem>>, %arg5: memref<1x128xf32, #tpu.memory_space<vmem>>, %arg6: memref<128x32xbf16, #tpu.memory_space<vmem>>, %arg7: memref<1x32xf32, #tpu.memory_space<vmem>>, %arg8: memref<64x32xf32, #tpu.memory_space<vmem>>) attributes {dimension_semantics = [#tpu.dimension_semantics<parallel>], iteration_bounds = array<i64: 1>, scalar_prefetch = 0 : i64, scratch_operands = 0 : i64, tpu.core_type = #tpu.core_type<tc>, window_params = [{transform_indices = @transform_0, window_bounds = array<i64: 64, 32>}, {pipeline_mode = #tpu.pipeline_mode<synchronous>, transform_indices = @transform_1, window_bounds = array<i64: 1, 32>}, {pipeline_mode = #tpu.pipeline_mode<synchronous>, transform_indices = @transform_2, window_bounds = array<i64: 1, 32>}, {pipeline_mode = #tpu.pipeline_mode<synchronous>, transform_indices = @transform_3, window_bounds = array<i64: 32, 128>}, {pipeline_mode = #tpu.pipeline_mode<synchronous>, transform_indices = @transform_4, window_bounds = array<i64: 1, 128>}, {pipeline_mode = #tpu.pipeline_mode<synchronous>, transform_indices = @transform_5, window_bounds = array<i64: 128, 32>}, {pipeline_mode = #tpu.pipeline_mode<synchronous>, transform_indices = @transform_6, window_bounds = array<i64: 1, 32>}, {transform_indices = @transform_7, window_bounds = array<i64: 64, 32>}]} {
    %c0 = arith.constant 0 : index
    %c0_0 = arith.constant 0 : index
    %0 = vector.load %arg1[%c0, %c0_0] : memref<64x32xf32, #tpu.memory_space<vmem>>, vector<64x32xf32>
    %c0_1 = arith.constant 0 : index
    %c0_2 = arith.constant 0 : index
    %1 = vector.load %arg2[%c0_1, %c0_2] : memref<1x32xf32, #tpu.memory_space<vmem>>, vector<1x32xf32>
    %c0_3 = arith.constant 0 : index
    %c0_4 = arith.constant 0 : index
    %2 = vector.load %arg3[%c0_3, %c0_4] : memref<1x32xf32, #tpu.memory_space<vmem>>, vector<1x32xf32>
    %cst = arith.constant dense<0.000000e+00> : vector<64xf32>
    %3 = vector.multi_reduction <add>, %0, %cst [1] : vector<64x32xf32> to vector<64xf32>
    %4 = vector.shape_cast %3 : vector<64xf32> to vector<64x1xf32>
    %cst_5 = arith.constant 3.200000e+01 : f32
    %5 = vector.broadcast %cst_5 : f32 to vector<64x1xf32>
    %6 = arith.divf %4, %5 : vector<64x1xf32>
    %7 = vector.broadcast %6 : vector<64x1xf32> to vector<64x32xf32>
    %8 = arith.subf %0, %7 : vector<64x32xf32>
    %9 = arith.mulf %8, %8 : vector<64x32xf32>
    %cst_6 = arith.constant dense<0.000000e+00> : vector<64xf32>
    %10 = vector.multi_reduction <add>, %9, %cst_6 [1] : vector<64x32xf32> to vector<64xf32>
    %11 = vector.shape_cast %10 : vector<64xf32> to vector<64x1xf32>
    %cst_7 = arith.constant 3.200000e+01 : f32
    %12 = vector.broadcast %cst_7 : f32 to vector<64x1xf32>
    %13 = arith.divf %11, %12 : vector<64x1xf32>
    %14 = vector.broadcast %6 : vector<64x1xf32> to vector<64x32xf32>
    %15 = arith.subf %0, %14 : vector<64x32xf32>
    %cst_8 = arith.constant 9.99999974E-6 : f32
    %16 = vector.broadcast %cst_8 : f32 to vector<64x1xf32>
    %17 = arith.addf %13, %16 : vector<64x1xf32>
    %18 = math.rsqrt %17 : vector<64x1xf32>
    %19 = vector.broadcast %18 : vector<64x1xf32> to vector<64x32xf32>
    %20 = arith.mulf %15, %19 : vector<64x32xf32>
    %21 = vector.broadcast %1 : vector<1x32xf32> to vector<64x32xf32>
    %22 = arith.mulf %20, %21 : vector<64x32xf32>
    %23 = vector.broadcast %2 : vector<1x32xf32> to vector<64x32xf32>
    %24 = arith.addf %22, %23 : vector<64x32xf32>
    %25 = arith.truncf %24 : vector<64x32xf32> to vector<64x32xbf16>
    %c0_9 = arith.constant 0 : index
    %c0_10 = arith.constant 0 : index
    %26 = vector.load %arg4[%c0_9, %c0_10] : memref<32x128xbf16, #tpu.memory_space<vmem>>, vector<32x128xbf16>
    %cst_11 = arith.constant dense<0.000000e+00> : vector<64x128xf32>
    %27 = tpu.matmul %25, %26, %cst_11 {dimension_numbers = #tpu.dot_dimension_numbers<[1], [0], [0], [1], [0, 0, 1, 1], [], []>} : vector<64x32xbf16>, vector<32x128xbf16>, vector<64x128xf32> -> vector<64x128xf32>
    %c0_12 = arith.constant 0 : index
    %c0_13 = arith.constant 0 : index
    %28 = vector.load %arg5[%c0_12, %c0_13] : memref<1x128xf32, #tpu.memory_space<vmem>>, vector<1x128xf32>
    %29 = vector.broadcast %28 : vector<1x128xf32> to vector<64x128xf32>
    %30 = arith.addf %27, %29 : vector<64x128xf32>
    %cst_14 = arith.constant 5.000000e-01 : f32
    %31 = vector.broadcast %cst_14 : f32 to vector<64x128xf32>
    %32 = arith.mulf %31, %30 : vector<64x128xf32>
    %cst_15 = arith.constant 4.471500e-02 : f32
    %33 = vector.broadcast %cst_15 : f32 to vector<64x128xf32>
    %34 = arith.mulf %33, %30 : vector<64x128xf32>
    %35 = arith.mulf %34, %30 : vector<64x128xf32>
    %36 = arith.mulf %35, %30 : vector<64x128xf32>
    %37 = arith.addf %30, %36 : vector<64x128xf32>
    %cst_16 = arith.constant 0.797884583 : f32
    %38 = vector.broadcast %cst_16 : f32 to vector<64x128xf32>
    %39 = arith.mulf %38, %37 : vector<64x128xf32>
    %40 = math.tanh %39 : vector<64x128xf32>
    %cst_17 = arith.constant 1.000000e+00 : f32
    %41 = vector.broadcast %cst_17 : f32 to vector<64x128xf32>
    %42 = arith.addf %41, %40 : vector<64x128xf32>
    %43 = arith.mulf %32, %42 : vector<64x128xf32>
    %44 = arith.truncf %43 : vector<64x128xf32> to vector<64x128xbf16>
    %c0_18 = arith.constant 0 : index
    %c0_19 = arith.constant 0 : index
    %45 = vector.load %arg6[%c0_18, %c0_19] : memref<128x32xbf16, #tpu.memory_space<vmem>>, vector<128x32xbf16>
    %cst_20 = arith.constant dense<0.000000e+00> : vector<64x32xf32>
    %46 = tpu.matmul %44, %45, %cst_20 {dimension_numbers = #tpu.dot_dimension_numbers<[1], [0], [0], [1], [0, 0, 1, 1], [], []>} : vector<64x128xbf16>, vector<128x32xbf16>, vector<64x32xf32> -> vector<64x32xf32>
    %c0_21 = arith.constant 0 : index
    %c0_22 = arith.constant 0 : index
    %47 = vector.load %arg7[%c0_21, %c0_22] : memref<1x32xf32, #tpu.memory_space<vmem>>, vector<1x32xf32>
    %48 = vector.broadcast %47 : vector<1x32xf32> to vector<64x32xf32>
    %49 = arith.addf %46, %48 : vector<64x32xf32>
    %50 = arith.addf %0, %49 : vector<64x32xf32>
    %c0_23 = arith.constant 0 : index
    %c0_24 = arith.constant 0 : index
    %51 = vector.load %arg8[%c0_23, %c0_24] : memref<64x32xf32, #tpu.memory_space<vmem>>, vector<64x32xf32>
    tpu.vector_store %arg8[%c0_23, %c0_24], %50 {strides = array<i32>} : memref<64x32xf32, #tpu.memory_space<vmem>>, vector<64x32xf32>,
    return
  }
  func.func @transform_0(%arg0: i32) -> (i32, i32) {
    %c0_i32 = arith.constant 0 : i32
    %c0_i32_0 = arith.constant 0 : i32
    return %arg0, %c0_i32 : i32, i32
  }
  func.func @transform_1(%arg0: i32) -> (i32, i32) {
    %c0_i32 = arith.constant 0 : i32
    %c0_i32_0 = arith.constant 0 : i32
    %c0_i32_1 = arith.constant 0 : i32
    return %c0_i32, %c0_i32_0 : i32, i32
  }
  func.func @transform_2(%arg0: i32) -> (i32, i32) {
    %c0_i32 = arith.constant 0 : i32
    %c0_i32_0 = arith.constant 0 : i32
    %c0_i32_1 = arith.constant 0 : i32
    return %c0_i32, %c0_i32_0 : i32, i32
  }
  func.func @transform_3(%arg0: i32) -> (i32, i32) {
    %c0_i32 = arith.constant 0 : i32
    %c0_i32_0 = arith.constant 0 : i32
    %c0_i32_1 = arith.constant 0 : i32
    return %c0_i32, %c0_i32_0 : i32, i32
  }
  func.func @transform_4(%arg0: i32) -> (i32, i32) {
    %c0_i32 = arith.constant 0 : i32
    %c0_i32_0 = arith.constant 0 : i32
    %c0_i32_1 = arith.constant 0 : i32
    return %c0_i32, %c0_i32_0 : i32, i32
  }
  func.func @transform_5(%arg0: i32) -> (i32, i32) {
    %c0_i32 = arith.constant 0 : i32
    %c0_i32_0 = arith.constant 0 : i32
    %c0_i32_1 = arith.constant 0 : i32
    return %c0_i32, %c0_i32_0 : i32, i32
  }
  func.func @transform_6(%arg0: i32) -> (i32, i32) {
    %c0_i32 = arith.constant 0 : i32
    %c0_i32_0 = arith.constant 0 : i32
    %c0_i32_1 = arith.constant 0 : i32
    return %c0_i32, %c0_i32_0 : i32, i32
  }
  func.func @transform_7(%arg0: i32) -> (i32, i32) {
    %c0_i32 = arith.constant 0 : i32
    %c0_i32_0 = arith.constant 0 : i32
    return %arg0, %c0_i32 : i32, i32
  }
}

module attributes {stable_mosaic.version = 11 : i64} {
  func.func @_linear_residual_kernel(%arg0: i32, %arg1: memref<64x32xf32, #tpu.memory_space<vmem>>, %arg2: memref<32x32xbf16, #tpu.memory_space<vmem>>, %arg3: memref<1x32xf32, #tpu.memory_space<vmem>>, %arg4: memref<64x32xf32, #tpu.memory_space<vmem>>, %arg5: memref<64x32xf32, #tpu.memory_space<vmem>>) attributes {dimension_semantics = [#tpu.dimension_semantics<parallel>], iteration_bounds = array<i64: 1>, scalar_prefetch = 0 : i64, scratch_operands = 0 : i64, tpu.core_type = #tpu.core_type<tc>, window_params = [{transform_indices = @transform_0, window_bounds = array<i64: 64, 32>}, {pipeline_mode = #tpu.pipeline_mode<synchronous>, transform_indices = @transform_1, window_bounds = array<i64: 32, 32>}, {pipeline_mode = #tpu.pipeline_mode<synchronous>, transform_indices = @transform_2, window_bounds = array<i64: 1, 32>}, {transform_indices = @transform_3, window_bounds = array<i64: 64, 32>}, {transform_indices = @transform_4, window_bounds = array<i64: 64, 32>}]} {
    %c0 = arith.constant 0 : index
    %c0_0 = arith.constant 0 : index
    %0 = vector.load %arg1[%c0, %c0_0] : memref<64x32xf32, #tpu.memory_space<vmem>>, vector<64x32xf32>
    %1 = arith.truncf %0 : vector<64x32xf32> to vector<64x32xbf16>
    %c0_1 = arith.constant 0 : index
    %c0_2 = arith.constant 0 : index
    %2 = vector.load %arg2[%c0_1, %c0_2] : memref<32x32xbf16, #tpu.memory_space<vmem>>, vector<32x32xbf16>
    %cst = arith.constant dense<0.000000e+00> : vector<64x32xf32>
    %3 = tpu.matmul %1, %2, %cst {dimension_numbers = #tpu.dot_dimension_numbers<[1], [0], [0], [1], [0, 0, 1, 1], [], []>} : vector<64x32xbf16>, vector<32x32xbf16>, vector<64x32xf32> -> vector<64x32xf32>
    %c0_3 = arith.constant 0 : index
    %c0_4 = arith.constant 0 : index
    %4 = vector.load %arg3[%c0_3, %c0_4] : memref<1x32xf32, #tpu.memory_space<vmem>>, vector<1x32xf32>
    %5 = vector.broadcast %4 : vector<1x32xf32> to vector<64x32xf32>
    %6 = arith.addf %3, %5 : vector<64x32xf32>
    %c0_5 = arith.constant 0 : index
    %c0_6 = arith.constant 0 : index
    %7 = vector.load %arg4[%c0_5, %c0_6] : memref<64x32xf32, #tpu.memory_space<vmem>>, vector<64x32xf32>
    %8 = arith.addf %7, %6 : vector<64x32xf32>
    %c0_7 = arith.constant 0 : index
    %c0_8 = arith.constant 0 : index
    %9 = vector.load %arg5[%c0_7, %c0_8] : memref<64x32xf32, #tpu.memory_space<vmem>>, vector<64x32xf32>
    tpu.vector_store %arg5[%c0_7, %c0_8], %8 {strides = array<i32>} : memref<64x32xf32, #tpu.memory_space<vmem>>, vector<64x32xf32>,
    return
  }
  func.func @transform_0(%arg0: i32) -> (i32, i32) {
    %c0_i32 = arith.constant 0 : i32
    %c0_i32_0 = arith.constant 0 : i32
    return %arg0, %c0_i32 : i32, i32
  }
  func.func @transform_1(%arg0: i32) -> (i32, i32) {
    %c0_i32 = arith.constant 0 : i32
    %c0_i32_0 = arith.constant 0 : i32
    %c0_i32_1 = arith.constant 0 : i32
    return %c0_i32, %c0_i32_0 : i32, i32
  }
  func.func @transform_2(%arg0: i32) -> (i32, i32) {
    %c0_i32 = arith.constant 0 : i32
    %c0_i32_0 = arith.constant 0 : i32
    %c0_i32_1 = arith.constant 0 : i32
    return %c0_i32, %c0_i32_0 : i32, i32
  }
  func.func @transform_3(%arg0: i32) -> (i32, i32) {
    %c0_i32 = arith.constant 0 : i32
    %c0_i32_0 = arith.constant 0 : i32
    return %arg0, %c0_i32 : i32, i32
  }
  func.func @transform_4(%arg0: i32) -> (i32, i32) {
    %c0_i32 = arith.constant 0 : i32
    %c0_i32_0 = arith.constant 0 : i32
    return %arg0, %c0_i32 : i32, i32
  }
}

</mosaic_0001>

<llo_original>
// kernel: transformer_nn_forward.15
$region0: #{transformer_nn_forward.15}
  #allocation0 [shape = 'u32[]', space=smem, size = 0x4, offset = 0x4, fixed_abs, tag = 'smem constant byte address 0x4 - core index']
  #allocation1 [shape = 'u32[144,128]{1,0:T(1,128)}', space=vmem, size = 0x12000, scoped, tag = 'internal scratch']
  %s0 = inlined_call_operand.vmem [shape: f32[16,4], index: 0, kind: input, shape index: {}]
  %s1 = inlined_call_operand.vmem [shape: bf16[4,32], index: 1, kind: input, shape index: {}]
  %s2 = inlined_call_operand.vmem [shape: f32[1,32], index: 2, kind: input, shape index: {}]
  %s3 = inlined_call_operand.vmem [shape: f32[16,32], index: 3, kind: output, shape index: {}]
  %s4 = sld [smem:[#allocation0]]
  $region22: #{transformer_nn_forward.15} parent=0
    _
  %s6 = ssub.s32 1, %s4
  %s7 = scalar_select 0, %s6, %s4
  // Predicated region
  $region2: #{transformer_nn_forward.15} parent=0 // pred_check
    _
  $region3: #{transformer_nn_forward.15} parent=0 // pred_check_branch
    %9 = sbr.rel (0) target = $region5
  $region4: #{transformer_nn_forward.15} parent=0 // pred_region
    _
  $region5: #{transformer_nn_forward.15} parent=0 // pred_fallthru
    _
  // Predicated region
  $region6: #{transformer_nn_forward.15} parent=0 // pred_check
    _
  $region7: #{transformer_nn_forward.15} parent=0 // pred_check_branch
    %11 = sbr.rel (0) target = $region9
  $region8: #{transformer_nn_forward.15} parent=0 // pred_region
    _
  $region9: #{transformer_nn_forward.15} parent=0 // pred_fallthru
    _
  // Predicated region
  $region10: #{transformer_nn_forward.15} parent=0 // pred_check
    _
  $region11: #{transformer_nn_forward.15} parent=0 // pred_check_branch
    %13 = sbr.rel (0) target = $region13
  $region12: #{transformer_nn_forward.15} parent=0 // pred_region
    _
  $region13: #{transformer_nn_forward.15} parent=0 // pred_fallthru
    _
  %v15 = vld [vmem:[%s0] sm:$0xff]
  %v16 = vld [vmem:[%s0 + $0x8] sm:$0xff]
  %v17 = vpack.c.bf16 %v16, %v15
  %v18 = vld [vmem:[%s1] sm:$0x3]
  %v19 = vld [vmem:[%s2] sm:$0x1]
  %v21 = vlaneseq
  %v22 = vshrl.u32 %v21, 7
  %v23 = vsub.s32 0, %v22
  %v24 = vrot.slane %v19, %v23
  %vm26 = vcmask 31744
  %v28 = vsel %vm26, %v17, 0
  %vm30 = vcmask 1041408
  %v32 = vsel %vm30, %v18, 0
  %34 = vmatprep.subr.bf16.mxu0 0
  %35 = vmatpush1.bf16.msra.mxu0 %v32
  %36 = vmatprep.subr.bf16.mxu0 0
  %37 = vmatpush1.bf16.msra.mxu0 0
  %38 = vmatprep.subr.bf16.mxu0 0
  %39 = vmatpush1.bf16.msra.mxu0 0
  %40 = vmatprep.subr.bf16.mxu0 0
  %41 = vmatpush1.bf16.msra.mxu0 0
  %42 = vmatprep.subr.bf16.mxu0 0
  %43 = vmatpush1.bf16.msra.mxu0 0
  %44 = vmatprep.subr.bf16.mxu0 0
  %45 = vmatpush1.bf16.msra.mxu0 0
  %46 = vmatprep.subr.bf16.mxu0 0
  %47 = vmatpush1.bf16.msra.mxu0 0
  %48 = vmatprep.subr.bf16.mxu0 0
  %49 = vmatpush1.bf16.msra.mxu0 0
  %50 = vmatprep.subr.bf16.mxu0 0
  %51 = vmatpush1.bf16.msra.mxu0 0
  %52 = vmatprep.subr.bf16.mxu0 0
  %53 = vmatpush1.bf16.msra.mxu0 0
  %54 = vmatprep.subr.bf16.mxu0 0
  %55 = vmatpush1.bf16.msra.mxu0 0
  %56 = vmatprep.subr.bf16.mxu0 0
  %57 = vmatpush1.bf16.msra.mxu0 0
  %58 = vmatprep.subr.bf16.mxu0 0
  %59 = vmatpush1.bf16.msra.mxu0 0
  %60 = vmatprep.subr.bf16.mxu0 0
  %61 = vmatpush1.bf16.msra.mxu0 0
  %62 = vmatprep.subr.bf16.mxu0 0
  %63 = vmatpush1.bf16.msra.mxu0 0
  %64 = vmatprep.subr.bf16.mxu0 0
  %65 = vmatpush1.bf16.msra.mxu0 0
  %66 = vmatprep.mubr.bf16.mxu0 0
  %67 = vmatmul.mubr.bf16.gmra.mrb[0].mxu0 %v28
  %v68 = vpop.f32.mrb[0].mxu0
  %v69 = vadd.f32 %v24, %v68
  %v70 = vpop.f32.mrb[0].mxu0
  %v71 = vpop.f32.mrb[0].mxu0
  %v72 = vadd.f32 %v24, %v71
  %v73 = vpop.f32.mrb[0].mxu0
  %74 = vdwg.mxu0
  %vm75 = vcmask 261120
  %76 = vst.msk [vmem:[%s3] sm:$0xff] %vm75, %v69
  %77 = vst.msk [vmem:[%s3 + $0x8] sm:$0xff] %vm75, %v72
  // Predicated region
  $region14: #{transformer_nn_forward.15} parent=0 // pred_check
    _
  $region15: #{transformer_nn_forward.15} parent=0 // pred_check_branch
    %79 = sbr.rel (0) target = $region17
  $region16: #{transformer_nn_forward.15} parent=0 // pred_region
    _
  $region17: #{transformer_nn_forward.15} parent=0 // pred_fallthru
    _
  // Predicated region
  $region18: #{transformer_nn_forward.15} parent=0 // pred_check
    _
  $region19: #{transformer_nn_forward.15} parent=0 // pred_check_branch
    %81 = sbr.rel (0) target = $region21
  $region20: #{transformer_nn_forward.15} parent=0 // pred_region
    _
  $region21: #{transformer_nn_forward.15} parent=0 // pred_fallthru
    _

// kernel: transformer_nn_forward.16
$region0: #{transformer_nn_forward.16}
  #allocation0 [shape = 'u32[]', space=smem, size = 0x4, offset = 0x4, fixed_abs, tag = 'smem constant byte address 0x4 - core index']
  #allocation1 [shape = 'u32[144,128]{1,0:T(1,128)}', space=vmem, size = 0x12000, scoped, tag = 'internal scratch']
  %s0 = inlined_call_operand.vmem [shape: f32[16,1], index: 0, kind: input, shape index: {}]
  %s1 = inlined_call_operand.vmem [shape: bf16[1,32], index: 1, kind: input, shape index: {}]
  %s2 = inlined_call_operand.vmem [shape: f32[1,32], index: 2, kind: input, shape index: {}]
  %s3 = inlined_call_operand.vmem [shape: f32[16,32], index: 3, kind: output, shape index: {}]
  %s4 = sld [smem:[#allocation0]]
  $region22: #{transformer_nn_forward.16} parent=0
    _
  %s6 = ssub.s32 1, %s4
  %s7 = scalar_select 0, %s6, %s4
  // Predicated region
  $region2: #{transformer_nn_forward.16} parent=0 // pred_check
    _
  $region3: #{transformer_nn_forward.16} parent=0 // pred_check_branch
    %9 = sbr.rel (0) target = $region5
  $region4: #{transformer_nn_forward.16} parent=0 // pred_region
    _
  $region5: #{transformer_nn_forward.16} parent=0 // pred_fallthru
    _
  // Predicated region
  $region6: #{transformer_nn_forward.16} parent=0 // pred_check
    _
  $region7: #{transformer_nn_forward.16} parent=0 // pred_check_branch
    %11 = sbr.rel (0) target = $region9
  $region8: #{transformer_nn_forward.16} parent=0 // pred_region
    _
  $region9: #{transformer_nn_forward.16} parent=0 // pred_fallthru
    _
  // Predicated region
  $region10: #{transformer_nn_forward.16} parent=0 // pred_check
    _
  $region11: #{transformer_nn_forward.16} parent=0 // pred_check_branch
    %13 = sbr.rel (0) target = $region13
  $region12: #{transformer_nn_forward.16} parent=0 // pred_region
    _
  $region13: #{transformer_nn_forward.16} parent=0 // pred_fallthru
    _
  %v15 = vld [vmem:[%s0] sm:$0xff]
  %v16 = vld [vmem:[%s0 + $0x8] sm:$0xff]
  %v17 = vpack.c.bf16 %v16, %v15
  %v18 = vld [vmem:[%s1] sm:$0x1]
  %v19 = vld [vmem:[%s2] sm:$0x1]
  %v21 = vlaneseq
  %v22 = vshrl.u32 %v21, 7
  %v23 = vsub.s32 0, %v22
  %v24 = vrot.slane %v19, %v23
  %vm26 = vcmask 7168
  %v28 = vsel %vm26, %v17, 0
  %vm30 = vcmask 1040384
  %v31 = vsel 0, 4294967295, 65535
  %v32 = vsel %vm30, %v31, 0
  %v34 = vand.u32 %v18, %v32
  %36 = vmatprep.subr.bf16.mxu0 0
  %37 = vmatpush1.bf16.msra.mxu0 %v34
  %38 = vmatprep.subr.bf16.mxu0 0
  %39 = vmatpush1.bf16.msra.mxu0 0
  %40 = vmatprep.subr.bf16.mxu0 0
  %41 = vmatpush1.bf16.msra.mxu0 0
  %42 = vmatprep.subr.bf16.mxu0 0
  %43 = vmatpush1.bf16.msra.mxu0 0
  %44 = vmatprep.subr.bf16.mxu0 0
  %45 = vmatpush1.bf16.msra.mxu0 0
  %46 = vmatprep.subr.bf16.mxu0 0
  %47 = vmatpush1.bf16.msra.mxu0 0
  %48 = vmatprep.subr.bf16.mxu0 0
  %49 = vmatpush1.bf16.msra.mxu0 0
  %50 = vmatprep.subr.bf16.mxu0 0
  %51 = vmatpush1.bf16.msra.mxu0 0
  %52 = vmatprep.subr.bf16.mxu0 0
  %53 = vmatpush1.bf16.msra.mxu0 0
  %54 = vmatprep.subr.bf16.mxu0 0
  %55 = vmatpush1.bf16.msra.mxu0 0
  %56 = vmatprep.subr.bf16.mxu0 0
  %57 = vmatpush1.bf16.msra.mxu0 0
  %58 = vmatprep.subr.bf16.mxu0 0
  %59 = vmatpush1.bf16.msra.mxu0 0
  %60 = vmatprep.subr.bf16.mxu0 0
  %61 = vmatpush1.bf16.msra.mxu0 0
  %62 = vmatprep.subr.bf16.mxu0 0
  %63 = vmatpush1.bf16.msra.mxu0 0
  %64 = vmatprep.subr.bf16.mxu0 0
  %65 = vmatpush1.bf16.msra.mxu0 0
  %66 = vmatprep.subr.bf16.mxu0 0
  %67 = vmatpush1.bf16.msra.mxu0 0
  %68 = vmatprep.mubr.bf16.mxu0 0
  %69 = vmatmul.mubr.bf16.gmra.mrb[0].mxu0 %v28
  %v70 = vpop.f32.mrb[0].mxu0
  %v71 = vadd.f32 %v24, %v70
  %v72 = vpop.f32.mrb[0].mxu0
  %v73 = vpop.f32.mrb[0].mxu0
  %v74 = vadd.f32 %v24, %v73
  %v75 = vpop.f32.mrb[0].mxu0
  %76 = vdwg.mxu0
  %vm77 = vcmask 261120
  %78 = vst.msk [vmem:[%s3] sm:$0xff] %vm77, %v71
  %79 = vst.msk [vmem:[%s3 + $0x8] sm:$0xff] %vm77, %v74
  // Predicated region
  $region14: #{transformer_nn_forward.16} parent=0 // pred_check
    _
  $region15: #{transformer_nn_forward.16} parent=0 // pred_check_branch
    %81 = sbr.rel (0) target = $region17
  $region16: #{transformer_nn_forward.16} parent=0 // pred_region
    _
  $region17: #{transformer_nn_forward.16} parent=0 // pred_fallthru
    _
  // Predicated region
  $region18: #{transformer_nn_forward.16} parent=0 // pred_check
    _
  $region19: #{transformer_nn_forward.16} parent=0 // pred_check_branch
    %83 = sbr.rel (0) target = $region21
  $region20: #{transformer_nn_forward.16} parent=0 // pred_region
    _
  $region21: #{transformer_nn_forward.16} parent=0 // pred_fallthru
    _

// kernel: transformer_nn_forward.17
$region0: #{transformer_nn_forward.17}
  #allocation0 [shape = 'u32[]', space=smem, size = 0x4, offset = 0x4, fixed_abs, tag = 'smem constant byte address 0x4 - core index']
  #allocation1 [shape = 'u32[144,128]{1,0:T(1,128)}', space=vmem, size = 0x12000, scoped, tag = 'internal scratch']
  %s0 = inlined_call_operand.vmem [shape: f32[64,32], index: 0, kind: input, shape index: {}]
  %s1 = inlined_call_operand.vmem [shape: f32[1,32], index: 1, kind: input, shape index: {}]
  %s2 = inlined_call_operand.vmem [shape: f32[1,32], index: 2, kind: input, shape index: {}]
  %s3 = inlined_call_operand.vmem [shape: bf16[32,96], index: 3, kind: input, shape index: {}]
  %s4 = inlined_call_operand.vmem [shape: f32[1,96], index: 4, kind: input, shape index: {}]
  %s5 = inlined_call_operand.vmem [shape: f32[64,96], index: 5, kind: output, shape index: {}]
  %s6 = sld [smem:[#allocation0]]
  $region30: #{transformer_nn_forward.17} parent=0
    _
  %s8 = ssub.s32 1, %s6
  %s9 = scalar_select 0, %s8, %s6
  // Predicated region
  $region2: #{transformer_nn_forward.17} parent=0 // pred_check
    _
  $region3: #{transformer_nn_forward.17} parent=0 // pred_check_branch
    %11 = sbr.rel (0) target = $region5
  $region4: #{transformer_nn_forward.17} parent=0 // pred_region
    _
  $region5: #{transformer_nn_forward.17} parent=0 // pred_fallthru
    _
  // Predicated region
  $region6: #{transformer_nn_forward.17} parent=0 // pred_check
    _
  $region7: #{transformer_nn_forward.17} parent=0 // pred_check_branch
    %13 = sbr.rel (0) target = $region9
  $region8: #{transformer_nn_forward.17} parent=0 // pred_region
    _
  $region9: #{transformer_nn_forward.17} parent=0 // pred_fallthru
    _
  // Predicated region
  $region10: #{transformer_nn_forward.17} parent=0 // pred_check
    _
  $region11: #{transformer_nn_forward.17} parent=0 // pred_check_branch
    %15 = sbr.rel (0) target = $region13
  $region12: #{transformer_nn_forward.17} parent=0 // pred_region
    _
  $region13: #{transformer_nn_forward.17} parent=0 // pred_fallthru
    _
  // Predicated region
  $region14: #{transformer_nn_forward.17} parent=0 // pred_check
    _
  $region15: #{transformer_nn_forward.17} parent=0 // pred_check_branch
    %17 = sbr.rel (0) target = $region17
  $region16: #{transformer_nn_forward.17} parent=0 // pred_region
    _
  $region17: #{transformer_nn_forward.17} parent=0 // pred_fallthru
    _
  // Predicated region
  $region18: #{transformer_nn_forward.17} parent=0 // pred_check
    _
  $region19: #{transformer_nn_forward.17} parent=0 // pred_check_branch
    %19 = sbr.rel (0) target = $region21
  $region20: #{transformer_nn_forward.17} parent=0 // pred_region
    _
  $region21: #{transformer_nn_forward.17} parent=0 // pred_fallthru
    _
  %v21 = vld [vmem:[%s0] sm:$0xff]
  %v22 = vld [vmem:[%s0 + $0x8] sm:$0xff]
  %v23 = vld [vmem:[%s0 + $0x10] sm:$0xff]
  %v24 = vld [vmem:[%s0 + $0x18] sm:$0xff]
  %v25 = vld [vmem:[%s0 + $0x20] sm:$0xff]
  %v26 = vld [vmem:[%s0 + $0x28] sm:$0xff]
  %v27 = vld [vmem:[%s0 + $0x30] sm:$0xff]
  %v28 = vld [vmem:[%s0 + $0x38] sm:$0xff]
  %v29 = vld [vmem:[%s1] sm:$0x1]
  %v30 = vld [vmem:[%s2] sm:$0x1]
  %vm31 = vcmask 261120
  %v32 = vsel %vm31, %v21, 0.0
  %33 = vadd.xlane.f32.xlu0 %v32
  %v34 = vpop.xlane.xlu0 %33
  %v35 = vsel %vm31, %v22, 0.0
  %36 = vadd.xlane.f32.xlu0 %v35
  %v37 = vpop.xlane.xlu0 %36
  %v38 = vsel %vm31, %v23, 0.0
  %39 = vadd.xlane.f32.xlu0 %v38
  %v40 = vpop.xlane.xlu0 %39
  %v41 = vsel %vm31, %v24, 0.0
  %42 = vadd.xlane.f32.xlu0 %v41
  %v43 = vpop.xlane.xlu0 %42
  %v44 = vsel %vm31, %v25, 0.0
  %45 = vadd.xlane.f32.xlu0 %v44
  %v46 = vpop.xlane.xlu0 %45
  %v47 = vsel %vm31, %v26, 0.0
  %48 = vadd.xlane.f32.xlu0 %v47
  %v49 = vpop.xlane.xlu0 %48
  %v50 = vsel %vm31, %v27, 0.0
  %51 = vadd.xlane.f32.xlu0 %v50
  %v52 = vpop.xlane.xlu0 %51
  %v53 = vsel %vm31, %v28, 0.0
  %54 = vadd.xlane.f32.xlu0 %v53
  %v55 = vpop.xlane.xlu0 %54
  %v56 = vrcp.pop 32.0
  %v57 = vmul.f32 %v34, %v56
  %v58 = vmul.f32 %v37, %v56
  %v59 = vmul.f32 %v40, %v56
  %v60 = vmul.f32 %v43, %v56
  %v61 = vmul.f32 %v46, %v56
  %v62 = vmul.f32 %v49, %v56
  %v63 = vmul.f32 %v52, %v56
  %v64 = vmul.f32 %v55, %v56
  %v65 = vsub.f32 %v21, %v57
  %v66 = vsub.f32 %v22, %v58
  %v67 = vsub.f32 %v23, %v59
  %v68 = vsub.f32 %v24, %v60
  %v69 = vsub.f32 %v25, %v61
  %v70 = vsub.f32 %v26, %v62
  %v71 = vsub.f32 %v27, %v63
  %v72 = vsub.f32 %v28, %v64
  %v73 = vmul.f32 %v65, %v65
  %v74 = vmul.f32 %v66, %v66
  %v75 = vmul.f32 %v67, %v67
  %v76 = vmul.f32 %v68, %v68
  %v77 = vmul.f32 %v69, %v69
  %v78 = vmul.f32 %v70, %v70
  %v79 = vmul.f32 %v71, %v71
  %v80 = vmul.f32 %v72, %v72
  %v81 = vsel %vm31, %v73, 0.0
  %82 = vadd.xlane.f32.xlu0 %v81
  %v83 = vpop.xlane.xlu0 %82
  %v84 = vsel %vm31, %v74, 0.0
  %85 = vadd.xlane.f32.xlu0 %v84
  %v86 = vpop.xlane.xlu0 %85
  %v87 = vsel %vm31, %v75, 0.0
  %88 = vadd.xlane.f32.xlu0 %v87
  %v89 = vpop.xlane.xlu0 %88
  %v90 = vsel %vm31, %v76, 0.0
  %91 = vadd.xlane.f32.xlu0 %v90
  %v92 = vpop.xlane.xlu0 %91
  %v93 = vsel %vm31, %v77, 0.0
  %94 = vadd.xlane.f32.xlu0 %v93
  %v95 = vpop.xlane.xlu0 %94
  %v96 = vsel %vm31, %v78, 0.0
  %97 = vadd.xlane.f32.xlu0 %v96
  %v98 = vpop.xlane.xlu0 %97
  %v99 = vsel %vm31, %v79, 0.0
  %100 = vadd.xlane.f32.xlu0 %v99
  %v101 = vpop.xlane.xlu0 %100
  %v102 = vsel %vm31, %v80, 0.0
  %103 = vadd.xlane.f32.xlu0 %v102
  %v104 = vpop.xlane.xlu0 %103
  %v105 = vmul.f32 %v83, %v56
  %v106 = vmul.f32 %v86, %v56
  %v107 = vmul.f32 %v89, %v56
  %v108 = vmul.f32 %v92, %v56
  %v109 = vmul.f32 %v95, %v56
  %v110 = vmul.f32 %v98, %v56
  %v111 = vmul.f32 %v101, %v56
  %v112 = vmul.f32 %v104, %v56
  %v113 = vadd.f32 %v105, 1e-05
  %v114 = vadd.f32 %v106, 1e-05
  %v115 = vadd.f32 %v107, 1e-05
  %v116 = vadd.f32 %v108, 1e-05
  %v117 = vadd.f32 %v109, 1e-05
  %v118 = vadd.f32 %v110, 1e-05
  %v119 = vadd.f32 %v111, 1e-05
  %v120 = vadd.f32 %v112, 1e-05
  %v121 = vrsqrt.pop %v113
  %v122 = vrsqrt.pop %v114
  %v123 = vrsqrt.pop %v115
  %v124 = vrsqrt.pop %v116
  %v125 = vrsqrt.pop %v117
  %v126 = vrsqrt.pop %v118
  %v127 = vrsqrt.pop %v119
  %v128 = vrsqrt.pop %v120
  %v129 = vmul.f32 %v65, %v121
  %v130 = vmul.f32 %v66, %v122
  %v131 = vmul.f32 %v67, %v123
  %v132 = vmul.f32 %v68, %v124
  %v133 = vmul.f32 %v69, %v125
  %v134 = vmul.f32 %v70, %v126
  %v135 = vmul.f32 %v71, %v127
  %v136 = vmul.f32 %v72, %v128
  %v138 = vlaneseq
  %v139 = vshrl.u32 %v138, 7
  %v140 = vsub.s32 0, %v139
  %v141 = vrot.slane %v29, %v140
  %v143 = vmul.f32 %v129, %v141
  %v144 = vmul.f32 %v130, %v141
  %v145 = vmul.f32 %v131, %v141
  %v146 = vmul.f32 %v132, %v141
  %v147 = vmul.f32 %v133, %v141
  %v148 = vmul.f32 %v134, %v141
  %v149 = vmul.f32 %v135, %v141
  %v150 = vmul.f32 %v136, %v141
  %v152 = vlaneseq
  %v153 = vshrl.u32 %v152, 7
  %v154 = vsub.s32 0, %v153
  %v155 = vrot.slane %v30, %v154
  %v157 = vadd.f32 %v143, %v155
  %v158 = vadd.f32 %v144, %v155
  %v159 = vadd.f32 %v145, %v155
  %v160 = vadd.f32 %v146, %v155
  %v161 = vadd.f32 %v147, %v155
  %v162 = vadd.f32 %v148, %v155
  %v163 = vadd.f32 %v149, %v155
  %v164 = vadd.f32 %v150, %v155
  %v165 = vpack.c.bf16 %v158, %v157
  %v166 = vpack.c.bf16 %v160, %v159
  %v167 = vpack.c.bf16 %v162, %v161
  %v168 = vpack.c.bf16 %v164, %v163
  %v169 = vld [vmem:[%s3] sm:$0xf]
  %v170 = vld [vmem:[%s3 + $0x4] sm:$0xf]
  %v171 = vld [vmem:[%s3 + $0x8] sm:$0xf]
  %v172 = vld [vmem:[%s3 + $0xc] sm:$0xf]
  %v173 = vld [vmem:[%s4] sm:$0x1]
  %v175 = vlaneseq
  %v176 = vshrl.u32 %v175, 7
  %v177 = vsub.s32 0, %v176
  %v178 = vrot.slane %v173, %v177
  %v184 = vunpack.c.l.b16 %v169
  %v185 = vunpack.c.l.b16 %v170
  %v186 = vunpack.c.l.b16 %v171
  %v187 = vunpack.c.l.b16 %v172
  %v188 = vpack.c.b16 %v185, %v184
  %v189 = vpack.c.b16 %v187, %v186
  %v193 = vsel %vm31, %v165, 0
  %v196 = vsel %vm31, %v166, 0
  %v199 = vsel %vm31, %v167, 0
  %v202 = vsel %vm31, %v168, 0
  %204 = vmatprep.subr.bf16.mxu0 0
  %205 = vmatpush1.bf16.msra.mxu0 %v188
  %206 = vmatprep.subr.bf16.mxu0 0
  %207 = vmatpush1.bf16.msra.mxu0 %v189
  %208 = vmatprep.subr.bf16.mxu0 0
  %209 = vmatpush1.bf16.msra.mxu0 0
  %210 = vmatprep.subr.bf16.mxu0 0
  %211 = vmatpush1.bf16.msra.mxu0 0
  %212 = vmatprep.subr.bf16.mxu0 0
  %213 = vmatpush1.bf16.msra.mxu0 0
  %214 = vmatprep.subr.bf16.mxu0 0
  %215 = vmatpush1.bf16.msra.mxu0 0
  %216 = vmatprep.subr.bf16.mxu0 0
  %217 = vmatpush1.bf16.msra.mxu0 0
  %218 = vmatprep.subr.bf16.mxu0 0
  %219 = vmatpush1.bf16.msra.mxu0 0
  %220 = vmatprep.subr.bf16.mxu0 0
  %221 = vmatpush1.bf16.msra.mxu0 0
  %222 = vmatprep.subr.bf16.mxu0 0
  %223 = vmatpush1.bf16.msra.mxu0 0
  %224 = vmatprep.subr.bf16.mxu0 0
  %225 = vmatpush1.bf16.msra.mxu0 0
  %226 = vmatprep.subr.bf16.mxu0 0
  %227 = vmatpush1.bf16.msra.mxu0 0
  %228 = vmatprep.subr.bf16.mxu0 0
  %229 = vmatpush1.bf16.msra.mxu0 0
  %230 = vmatprep.subr.bf16.mxu0 0
  %231 = vmatpush1.bf16.msra.mxu0 0
  %232 = vmatprep.subr.bf16.mxu0 0
  %233 = vmatpush1.bf16.msra.mxu0 0
  %234 = vmatprep.subr.bf16.mxu0 0
  %235 = vmatpush1.bf16.msra.mxu0 0
  %236 = vmatprep.mubr.bf16.mxu0 0
  %237 = vmatmul.mubr.bf16.gmra.mrb[0].mxu0 %v193
  %v238 = vpop.f32.mrb[0].mxu0
  %v239 = vadd.f32 %v178, %v238
  %v240 = vpop.f32.mrb[0].mxu0
  %v241 = vpop.f32.mrb[0].mxu0
  %v242 = vadd.f32 %v178, %v241
  %v243 = vpop.f32.mrb[0].mxu0
  %244 = vmatprep.mubr.bf16.mxu0 0
  %245 = vmatmul.mubr.bf16.gmra.mrb[0].mxu0 %v196
  %v246 = vpop.f32.mrb[0].mxu0
  %v247 = vadd.f32 %v178, %v246
  %v248 = vpop.f32.mrb[0].mxu0
  %v249 = vpop.f32.mrb[0].mxu0
  %v250 = vadd.f32 %v178, %v249
  %v251 = vpop.f32.mrb[0].mxu0
  %252 = vmatprep.mubr.bf16.mxu0 0
  %253 = vmatmul.mubr.bf16.gmra.mrb[0].mxu0 %v199
  %v254 = vpop.f32.mrb[0].mxu0
  %v255 = vadd.f32 %v178, %v254
  %v256 = vpop.f32.mrb[0].mxu0
  %v257 = vpop.f32.mrb[0].mxu0
  %v258 = vadd.f32 %v178, %v257
  %v259 = vpop.f32.mrb[0].mxu0
  %260 = vmatprep.mubr.bf16.mxu0 0
  %261 = vmatmul.mubr.bf16.gmra.mrb[0].mxu0 %v202
  %v262 = vpop.f32.mrb[0].mxu0
  %v263 = vadd.f32 %v178, %v262
  %v264 = vpop.f32.mrb[0].mxu0
  %v265 = vpop.f32.mrb[0].mxu0
  %v266 = vadd.f32 %v178, %v265
  %v267 = vpop.f32.mrb[0].mxu0
  %268 = vdwg.mxu0
  %vm269 = vcmask 785408
  %270 = vst.msk [vmem:[%s5] sm:$0xff] %vm269, %v239
  %271 = vst.msk [vmem:[%s5 + $0x8] sm:$0xff] %vm269, %v242
  %272 = vst.msk [vmem:[%s5 + $0x10] sm:$0xff] %vm269, %v247
  %273 = vst.msk [vmem:[%s5 + $0x18] sm:$0xff] %vm269, %v250
  %274 = vst.msk [vmem:[%s5 + $0x20] sm:$0xff] %vm269, %v255
  %275 = vst.msk [vmem:[%s5 + $0x28] sm:$0xff] %vm269, %v258
  %276 = vst.msk [vmem:[%s5 + $0x30] sm:$0xff] %vm269, %v263
  %277 = vst.msk [vmem:[%s5 + $0x38] sm:$0xff] %vm269, %v266
  // Predicated region
  $region22: #{transformer_nn_forward.17} parent=0 // pred_check
    _
  $region23: #{transformer_nn_forward.17} parent=0 // pred_check_branch
    %279 = sbr.rel (0) target = $region25
  $region24: #{transformer_nn_forward.17} parent=0 // pred_region
    _
  $region25: #{transformer_nn_forward.17} parent=0 // pred_fallthru
    _
  // Predicated region
  $region26: #{transformer_nn_forward.17} parent=0 // pred_check
    _
  $region27: #{transformer_nn_forward.17} parent=0 // pred_check_branch
    %281 = sbr.rel (0) target = $region29
  $region28: #{transformer_nn_forward.17} parent=0 // pred_region
    _
  $region29: #{transformer_nn_forward.17} parent=0 // pred_fallthru
    _

// kernel: transformer_nn_forward.25
$region0: #{transformer_nn_forward.25}
  #allocation0 [shape = 'u32[]', space=smem, size = 0x4, offset = 0x4, fixed_abs, tag = 'smem constant byte address 0x4 - core index']
  #allocation1 [shape = 'u32[144,128]{1,0:T(1,128)}', space=vmem, size = 0x12000, scoped, tag = 'internal scratch']
  %s0 = inlined_call_operand.vmem [shape: f32[64,32], index: 0, kind: input, shape index: {}]
  %s1 = inlined_call_operand.vmem [shape: f32[1,32], index: 1, kind: input, shape index: {}]
  %s2 = inlined_call_operand.vmem [shape: f32[1,32], index: 2, kind: input, shape index: {}]
  %s3 = inlined_call_operand.vmem [shape: f32[64,32], index: 3, kind: output, shape index: {}]
  %s4 = sld [smem:[#allocation0]]
  $region22: #{transformer_nn_forward.25} parent=0
    _
  %s6 = ssub.s32 1, %s4
  %s7 = scalar_select 0, %s6, %s4
  // Predicated region
  $region2: #{transformer_nn_forward.25} parent=0 // pred_check
    _
  $region3: #{transformer_nn_forward.25} parent=0 // pred_check_branch
    %9 = sbr.rel (0) target = $region5
  $region4: #{transformer_nn_forward.25} parent=0 // pred_region
    _
  $region5: #{transformer_nn_forward.25} parent=0 // pred_fallthru
    _
  // Predicated region
  $region6: #{transformer_nn_forward.25} parent=0 // pred_check
    _
  $region7: #{transformer_nn_forward.25} parent=0 // pred_check_branch
    %11 = sbr.rel (0) target = $region9
  $region8: #{transformer_nn_forward.25} parent=0 // pred_region
    _
  $region9: #{transformer_nn_forward.25} parent=0 // pred_fallthru
    _
  // Predicated region
  $region10: #{transformer_nn_forward.25} parent=0 // pred_check
    _
  $region11: #{transformer_nn_forward.25} parent=0 // pred_check_branch
    %13 = sbr.rel (0) target = $region13
  $region12: #{transformer_nn_forward.25} parent=0 // pred_region
    _
  $region13: #{transformer_nn_forward.25} parent=0 // pred_fallthru
    _
  %v14 = vld [vmem:[%s0] sm:$0xff]
  %v15 = vld [vmem:[%s0 + $0x8] sm:$0xff]
  %v16 = vld [vmem:[%s0 + $0x10] sm:$0xff]
  %v17 = vld [vmem:[%s0 + $0x18] sm:$0xff]
  %v18 = vld [vmem:[%s0 + $0x20] sm:$0xff]
  %v19 = vld [vmem:[%s0 + $0x28] sm:$0xff]
  %v20 = vld [vmem:[%s0 + $0x30] sm:$0xff]
  %v21 = vld [vmem:[%s0 + $0x38] sm:$0xff]
  %v22 = vld [vmem:[%s1] sm:$0x1]
  %v23 = vld [vmem:[%s2] sm:$0x1]
  %vm24 = vcmask 261120
  %v25 = vsel %vm24, %v14, 0.0
  %26 = vadd.xlane.f32.xlu0 %v25
  %v27 = vpop.xlane.xlu0 %26
  %v28 = vsel %vm24, %v15, 0.0
  %29 = vadd.xlane.f32.xlu0 %v28
  %v30 = vpop.xlane.xlu0 %29
  %v31 = vsel %vm24, %v16, 0.0
  %32 = vadd.xlane.f32.xlu0 %v31
  %v33 = vpop.xlane.xlu0 %32
  %v34 = vsel %vm24, %v17, 0.0
  %35 = vadd.xlane.f32.xlu0 %v34
  %v36 = vpop.xlane.xlu0 %35
  %v37 = vsel %vm24, %v18, 0.0
  %38 = vadd.xlane.f32.xlu0 %v37
  %v39 = vpop.xlane.xlu0 %38
  %v40 = vsel %vm24, %v19, 0.0
  %41 = vadd.xlane.f32.xlu0 %v40
  %v42 = vpop.xlane.xlu0 %41
  %v43 = vsel %vm24, %v20, 0.0
  %44 = vadd.xlane.f32.xlu0 %v43
  %v45 = vpop.xlane.xlu0 %44
  %v46 = vsel %vm24, %v21, 0.0
  %47 = vadd.xlane.f32.xlu0 %v46
  %v48 = vpop.xlane.xlu0 %47
  %v49 = vrcp.pop 32.0
  %v50 = vmul.f32 %v27, %v49
  %v51 = vmul.f32 %v30, %v49
  %v52 = vmul.f32 %v33, %v49
  %v53 = vmul.f32 %v36, %v49
  %v54 = vmul.f32 %v39, %v49
  %v55 = vmul.f32 %v42, %v49
  %v56 = vmul.f32 %v45, %v49
  %v57 = vmul.f32 %v48, %v49
  %v58 = vsub.f32 %v14, %v50
  %v59 = vsub.f32 %v15, %v51
  %v60 = vsub.f32 %v16, %v52
  %v61 = vsub.f32 %v17, %v53
  %v62 = vsub.f32 %v18, %v54
  %v63 = vsub.f32 %v19, %v55
  %v64 = vsub.f32 %v20, %v56
  %v65 = vsub.f32 %v21, %v57
  %v66 = vmul.f32 %v58, %v58
  %v67 = vmul.f32 %v59, %v59
  %v68 = vmul.f32 %v60, %v60
  %v69 = vmul.f32 %v61, %v61
  %v70 = vmul.f32 %v62, %v62
  %v71 = vmul.f32 %v63, %v63
  %v72 = vmul.f32 %v64, %v64
  %v73 = vmul.f32 %v65, %v65
  %v74 = vsel %vm24, %v66, 0.0
  %75 = vadd.xlane.f32.xlu0 %v74
  %v76 = vpop.xlane.xlu0 %75
  %v77 = vsel %vm24, %v67, 0.0
  %78 = vadd.xlane.f32.xlu0 %v77
  %v79 = vpop.xlane.xlu0 %78
  %v80 = vsel %vm24, %v68, 0.0
  %81 = vadd.xlane.f32.xlu0 %v80
  %v82 = vpop.xlane.xlu0 %81
  %v83 = vsel %vm24, %v69, 0.0
  %84 = vadd.xlane.f32.xlu0 %v83
  %v85 = vpop.xlane.xlu0 %84
  %v86 = vsel %vm24, %v70, 0.0
  %87 = vadd.xlane.f32.xlu0 %v86
  %v88 = vpop.xlane.xlu0 %87
  %v89 = vsel %vm24, %v71, 0.0
  %90 = vadd.xlane.f32.xlu0 %v89
  %v91 = vpop.xlane.xlu0 %90
  %v92 = vsel %vm24, %v72, 0.0
  %93 = vadd.xlane.f32.xlu0 %v92
  %v94 = vpop.xlane.xlu0 %93
  %v95 = vsel %vm24, %v73, 0.0
  %96 = vadd.xlane.f32.xlu0 %v95
  %v97 = vpop.xlane.xlu0 %96
  %v98 = vmul.f32 %v76, %v49
  %v99 = vmul.f32 %v79, %v49
  %v100 = vmul.f32 %v82, %v49
  %v101 = vmul.f32 %v85, %v49
  %v102 = vmul.f32 %v88, %v49
  %v103 = vmul.f32 %v91, %v49
  %v104 = vmul.f32 %v94, %v49
  %v105 = vmul.f32 %v97, %v49
  %v106 = vadd.f32 %v98, 1e-05
  %v107 = vadd.f32 %v99, 1e-05
  %v108 = vadd.f32 %v100, 1e-05
  %v109 = vadd.f32 %v101, 1e-05
  %v110 = vadd.f32 %v102, 1e-05
  %v111 = vadd.f32 %v103, 1e-05
  %v112 = vadd.f32 %v104, 1e-05
  %v113 = vadd.f32 %v105, 1e-05
  %v114 = vrsqrt.pop %v106
  %v115 = vrsqrt.pop %v107
  %v116 = vrsqrt.pop %v108
  %v117 = vrsqrt.pop %v109
  %v118 = vrsqrt.pop %v110
  %v119 = vrsqrt.pop %v111
  %v120 = vrsqrt.pop %v112
  %v121 = vrsqrt.pop %v113
  %v122 = vmul.f32 %v58, %v114
  %v123 = vmul.f32 %v59, %v115
  %v124 = vmul.f32 %v60, %v116
  %v125 = vmul.f32 %v61, %v117
  %v126 = vmul.f32 %v62, %v118
  %v127 = vmul.f32 %v63, %v119
  %v128 = vmul.f32 %v64, %v120
  %v129 = vmul.f32 %v65, %v121
  %v131 = vlaneseq
  %v132 = vshrl.u32 %v131, 7
  %v133 = vsub.s32 0, %v132
  %v134 = vrot.slane %v22, %v133
  %v136 = vmul.f32 %v122, %v134
  %v137 = vmul.f32 %v123, %v134
  %v138 = vmul.f32 %v124, %v134
  %v139 = vmul.f32 %v125, %v134
  %v140 = vmul.f32 %v126, %v134
  %v141 = vmul.f32 %v127, %v134
  %v142 = vmul.f32 %v128, %v134
  %v143 = vmul.f32 %v129, %v134
  %v145 = vlaneseq
  %v146 = vshrl.u32 %v145, 7
  %v147 = vsub.s32 0, %v146
  %v148 = vrot.slane %v23, %v147
  %v150 = vadd.f32 %v136, %v148
  %v151 = vadd.f32 %v137, %v148
  %v152 = vadd.f32 %v138, %v148
  %v153 = vadd.f32 %v139, %v148
  %v154 = vadd.f32 %v140, %v148
  %v155 = vadd.f32 %v141, %v148
  %v156 = vadd.f32 %v142, %v148
  %v157 = vadd.f32 %v143, %v148
  %158 = vst.msk [vmem:[%s3] sm:$0xff] %vm24, %v150
  %159 = vst.msk [vmem:[%s3 + $0x8] sm:$0xff] %vm24, %v151
  %160 = vst.msk [vmem:[%s3 + $0x10] sm:$0xff] %vm24, %v152
  %161 = vst.msk [vmem:[%s3 + $0x18] sm:$0xff] %vm24, %v153
  %162 = vst.msk [vmem:[%s3 + $0x20] sm:$0xff] %vm24, %v154
  %163 = vst.msk [vmem:[%s3 + $0x28] sm:$0xff] %vm24, %v155
  %164 = vst.msk [vmem:[%s3 + $0x30] sm:$0xff] %vm24, %v156
  %165 = vst.msk [vmem:[%s3 + $0x38] sm:$0xff] %vm24, %v157
  // Predicated region
  $region14: #{transformer_nn_forward.25} parent=0 // pred_check
    _
  $region15: #{transformer_nn_forward.25} parent=0 // pred_check_branch
    %167 = sbr.rel (0) target = $region17
  $region16: #{transformer_nn_forward.25} parent=0 // pred_region
    _
  $region17: #{transformer_nn_forward.25} parent=0 // pred_fallthru
    _
  // Predicated region
  $region18: #{transformer_nn_forward.25} parent=0 // pred_check
    _
  $region19: #{transformer_nn_forward.25} parent=0 // pred_check_branch
    %169 = sbr.rel (0) target = $region21
  $region20: #{transformer_nn_forward.25} parent=0 // pred_region
    _
  $region21: #{transformer_nn_forward.25} parent=0 // pred_fallthru
    _

// kernel: transformer_nn_forward.18
$region0: #{transformer_nn_forward.18}
  #allocation0 [shape = 'u32[]', space=smem, size = 0x4, offset = 0x4, fixed_abs, tag = 'smem constant byte address 0x4 - core index']
  #allocation1 [shape = 'u32[144,128]{1,0:T(1,128)}', space=vmem, size = 0x12000, scoped, tag = 'internal scratch']
  %s0 = inlined_call_operand.vmem [shape: f32[8,32,8], index: 0, kind: input, shape index: {}]
  %s1 = inlined_call_operand.vmem [shape: f32[8,32,8], index: 1, kind: input, shape index: {}]
  %s2 = inlined_call_operand.vmem [shape: f32[8,32,8], index: 2, kind: input, shape index: {}]
  %s3 = inlined_call_operand.vmem [shape: f32[32,32], index: 3, kind: input, shape index: {}]
  %s4 = inlined_call_operand.vmem [shape: f32[8,32,8], index: 4, kind: output, shape index: {}]
  %s5 = sld [smem:[#allocation0]]
  $region49: #{transformer_nn_forward.18} parent=0
    _
  %s7 = ssub.s32 1, %s5
  %s8 = scalar_select 0, %s7, %s5
  loop: start=0, step=1, limit=4
  $region2: #{transformer_nn_forward.18} parent=0 // loop_pre_header
    _
  $region3: #{transformer_nn_forward.18} parent=0 // loop_header
    %s10 = sphi 0, %s14
    %p11 = scmp.ge.s32.totalorder %s10, 4
    %s20 = sphi 0, %s22
    %s23 = sphi 0, %s20
    %s24 = sphi 0, %s23
    %s40 = sphi 0, %s24
    %s46 = sphi 0, %s48
    %s49 = sphi 0, %s46
    %s50 = sphi 0, %s49
    %s66 = sphi 0, %s50
    %s72 = sphi 0, %s74
    %s75 = sphi 0, %s72
    %s76 = sphi 0, %s75
    %s92 = sphi 0, %s76
    %s96 = sphi 0, %s96
    %s98 = sphi 0, %s96
    %s99 = sphi 0, %s98
    %s113 = sphi 0, %s99
    %s119 = sphi 0, %s121
    %s122 = sphi 0, %s119
    %s123 = sphi 0, %s122
    %s139 = sphi 0, %s123
  $region4: #{transformer_nn_forward.18} parent=0 // loop_header_branch
    %13 = sbr.rel (%p11) target = $region8
  $region5: #{transformer_nn_forward.18} parent=0 // loop_body
    %s15 = ssub.s32 %s10, 1
    %s16 = ssub.s32 %s10, 2
    %s17 = sadd.s32 %s10, 1
    %s18 = ssub.s32 %s10, %s17
    %p19 = scmp.eq.s32.totalorder %s18, 0
    %s21 = sadd.s32 %s20, 1
    %s22 = scalar_select %p19, %s20, %s21
    %p25 = pneg %p19
    %p26 = scmp.eq.s32.totalorder %s10, 1
    %p27 = por %p25, %p26
    %p28 = scmp.ne.s32.totalorder %s20, %s23
    %p29 = scmp.eq.s32.totalorder %s10, 0
    %p30 = por %p28, %p29
    %p31 = scmp.ne.s32.totalorder %s20, %s23
    %p32 = scmp.eq.s32.totalorder %s15, 1
    %p33 = por %p31, %p32
    %p34 = scmp.ne.s32.totalorder %s23, %s24
    %p35 = scmp.eq.s32.totalorder %s15, 0
    %p36 = por %p34, %p35
    %p37 = scmp.ne.s32.totalorder %s23, %s24
    %p38 = scmp.eq.s32.totalorder %s16, 1
    %p39 = por %p37, %p38
    %p41 = scmp.ne.s32.totalorder %s24, %s40
    %p42 = scmp.eq.s32.totalorder %s16, 0
    %p43 = por %p41, %p42
    %s44 = ssub.s32 %s10, %s17
    %p45 = scmp.eq.s32.totalorder %s44, 0
    %s47 = sadd.s32 %s46, 1
    %s48 = scalar_select %p45, %s46, %s47
    %p51 = pneg %p45
    %p52 = scmp.eq.s32.totalorder %s10, 1
    %p53 = por %p51, %p52
    %p54 = scmp.ne.s32.totalorder %s46, %s49
    %p55 = scmp.eq.s32.totalorder %s10, 0
    %p56 = por %p54, %p55
    %p57 = scmp.ne.s32.totalorder %s46, %s49
    %p58 = scmp.eq.s32.totalorder %s15, 1
    %p59 = por %p57, %p58
    %p60 = scmp.ne.s32.totalorder %s49, %s50
    %p61 = scmp.eq.s32.totalorder %s15, 0
    %p62 = por %p60, %p61
    %p63 = scmp.ne.s32.totalorder %s49, %s50
    %p64 = scmp.eq.s32.totalorder %s16, 1
    %p65 = por %p63, %p64
    %p67 = scmp.ne.s32.totalorder %s50, %s66
    %p68 = scmp.eq.s32.totalorder %s16, 0
    %p69 = por %p67, %p68
    %s70 = ssub.s32 %s10, %s17
    %p71 = scmp.eq.s32.totalorder %s70, 0
    %s73 = sadd.s32 %s72, 1
    %s74 = scalar_select %p71, %s72, %s73
    %p77 = pneg %p71
    %p78 = scmp.eq.s32.totalorder %s10, 1
    %p79 = por %p77, %p78
    %p80 = scmp.ne.s32.totalorder %s72, %s75
    %p81 = scmp.eq.s32.totalorder %s10, 0
    %p82 = por %p80, %p81
    %p83 = scmp.ne.s32.totalorder %s72, %s75
    %p84 = scmp.eq.s32.totalorder %s15, 1
    %p85 = por %p83, %p84
    %p86 = scmp.ne.s32.totalorder %s75, %s76
    %p87 = scmp.eq.s32.totalorder %s15, 0
    %p88 = por %p86, %p87
    %p89 = scmp.ne.s32.totalorder %s75, %s76
    %p90 = scmp.eq.s32.totalorder %s16, 1
    %p91 = por %p89, %p90
    %p93 = scmp.ne.s32.totalorder %s76, %s92
    %p94 = scmp.eq.s32.totalorder %s16, 0
    %p95 = por %p93, %p94
    %s97 = sadd.s32 %s96, 1
    %p100 = scmp.eq.s32.totalorder %s10, 1
    %p101 = scmp.ne.s32.totalorder %s96, %s98
    %p102 = scmp.eq.s32.totalorder %s10, 0
    %p103 = por %p101, %p102
    %p104 = scmp.ne.s32.totalorder %s96, %s98
    %p105 = scmp.eq.s32.totalorder %s15, 1
    %p106 = por %p104, %p105
    %p107 = scmp.ne.s32.totalorder %s98, %s99
    %p108 = scmp.eq.s32.totalorder %s15, 0
    %p109 = por %p107, %p108
    %p110 = scmp.ne.s32.totalorder %s98, %s99
    %p111 = scmp.eq.s32.totalorder %s16, 1
    %p112 = por %p110, %p111
    %p114 = scmp.ne.s32.totalorder %s99, %s113
    %p115 = scmp.eq.s32.totalorder %s16, 0
    %p116 = por %p114, %p115
    %s117 = ssub.s32 %s10, %s17
    %p118 = scmp.eq.s32.totalorder %s117, 0
    %s120 = sadd.s32 %s119, 1
    %s121 = scalar_select %p118, %s119, %s120
    %p124 = pneg %p118
    %p125 = scmp.eq.s32.totalorder %s10, 1
    %p126 = por %p124, %p125
    %p127 = scmp.ne.s32.totalorder %s119, %s122
    %p128 = scmp.eq.s32.totalorder %s10, 0
    %p129 = por %p127, %p128
    %p130 = scmp.ne.s32.totalorder %s119, %s122
    %p131 = scmp.eq.s32.totalorder %s15, 1
    %p132 = por %p130, %p131
    %p133 = scmp.ne.s32.totalorder %s122, %s123
    %p134 = scmp.eq.s32.totalorder %s15, 0
    %p135 = por %p133, %p134
    %p136 = scmp.ne.s32.totalorder %s122, %s123
    %p137 = scmp.eq.s32.totalorder %s16, 1
    %p138 = por %p136, %p137
    %p140 = scmp.ne.s32.totalorder %s123, %s139
    %p141 = scmp.eq.s32.totalorder %s16, 0
    %p142 = por %p140, %p141
    %p143 = scmp.le.s32.totalorder 1, %s10
    %p144 = scmp.lt.s32.totalorder %s10, 3
    %p145 = pnand %p143, %p144
    %p146 = pneg %p145
    // Predicated region
    $region9: #{transformer_nn_forward.18} parent=5 // pred_check
      _
    $region10: #{transformer_nn_forward.18} parent=5 // pred_check_branch
      %148 = sbr.rel (%p145) target = $region12
    $region11: #{transformer_nn_forward.18} parent=5 // pred_region
      %s149 = ssub.s32 %s10, 1
      // Predicated region
      $region13: #{transformer_nn_forward.18} parent=11 // pred_check
        %p150 = pneg %p109
      $region14: #{transformer_nn_forward.18} parent=11 // pred_check_branch
        %152 = sbr.rel (%p150) target = $region16
      $region15: #{transformer_nn_forward.18} parent=11 // pred_region
        _
      $region16: #{transformer_nn_forward.18} parent=11 // pred_fallthru
        _
    $region12: #{transformer_nn_forward.18} parent=5 // pred_fallthru
      _
    %p153 = scmp.lt.s32.totalorder %s10, 2
    // Predicated region
    $region17: #{transformer_nn_forward.18} parent=5 // pred_check
      %p154 = pneg %p153
    $region18: #{transformer_nn_forward.18} parent=5 // pred_check_branch
      %156 = sbr.rel (%p154) target = $region20
    $region19: #{transformer_nn_forward.18} parent=5 // pred_region
      // Predicated region
      $region21: #{transformer_nn_forward.18} parent=19 // pred_check
        %p157 = pneg %p30
      $region22: #{transformer_nn_forward.18} parent=19 // pred_check_branch
        %159 = sbr.rel (%p157) target = $region24
      $region23: #{transformer_nn_forward.18} parent=19 // pred_region
        %s160 = smul.u32 4, %s10
        %p161 = scmp.lt.s32.totalorder %s160, 7
        %s162 = scalar_select %p161, %s160, 7
        %s163 = smul.addr %s162, 4
        %s164 = smul.addr %s163, 8
        %s165 = scalar_lea.vmem %s0, %s164
        %s166 = smul.u32 4, %s10
      $region24: #{transformer_nn_forward.18} parent=19 // pred_fallthru
        _
      // Predicated region
      $region25: #{transformer_nn_forward.18} parent=19 // pred_check
        %p167 = pneg %p56
      $region26: #{transformer_nn_forward.18} parent=19 // pred_check_branch
        %169 = sbr.rel (%p167) target = $region28
      $region27: #{transformer_nn_forward.18} parent=19 // pred_region
        %s170 = smul.u32 4, %s10
        %p171 = scmp.lt.s32.totalorder %s170, 7
        %s172 = scalar_select %p171, %s170, 7
        %s173 = smul.addr %s172, 4
        %s174 = smul.addr %s173, 8
        %s175 = scalar_lea.vmem %s1, %s174
        %s176 = smul.u32 4, %s10
      $region28: #{transformer_nn_forward.18} parent=19 // pred_fallthru
        _
      // Predicated region
      $region29: #{transformer_nn_forward.18} parent=19 // pred_check
        %p177 = pneg %p82
      $region30: #{transformer_nn_forward.18} parent=19 // pred_check_branch
        %179 = sbr.rel (%p177) target = $region32
      $region31: #{transformer_nn_forward.18} parent=19 // pred_region
        %s180 = smul.u32 4, %s10
        %p181 = scmp.lt.s32.totalorder %s180, 7
        %s182 = scalar_select %p181, %s180, 7
        %s183 = smul.addr %s182, 4
        %s184 = smul.addr %s183, 8
        %s185 = scalar_lea.vmem %s2, %s184
        %s186 = smul.u32 4, %s10
      $region32: #{transformer_nn_forward.18} parent=19 // pred_fallthru
        _
    $region20: #{transformer_nn_forward.18} parent=5 // pred_fallthru
      _
    %p187 = scmp.le.s32.totalorder 1, %s10
    %p188 = scmp.lt.s32.totalorder %s10, 3
    %p189 = pnand %p187, %p188
    %p190 = pneg %p189
    // Predicated region
    $region33: #{transformer_nn_forward.18} parent=5 // pred_check
      _
    $region34: #{transformer_nn_forward.18} parent=5 // pred_check_branch
      %192 = sbr.rel (%p189) target = $region36
    $region35: #{transformer_nn_forward.18} parent=5 // pred_region
      %s193 = ssub.s32 %s10, 1
      %s194 = smul.u32 4, %s15
      %p195 = scmp.lt.s32.totalorder %s194, 7
      %s196 = scalar_select %p195, %s194, 7
      %s197 = smul.addr %s196, 4
      %s198 = smul.addr %s197, 8
      %s199 = scalar_lea.vmem %s0, %s198
      %p200 = pneg %p36
      %p201 = pneg %p33
      %s202 = smul.u32 4, %s15
      %p203 = scmp.lt.s32.totalorder %s202, 7
      %s204 = scalar_select %p203, %s202, 7
      %s205 = smul.addr %s204, 4
      %s206 = smul.addr %s205, 8
      %s207 = scalar_lea.vmem %s1, %s206
      %p208 = pneg %p62
      %p209 = pneg %p59
      %s210 = smul.u32 4, %s15
      %p211 = scmp.lt.s32.totalorder %s210, 7
      %s212 = scalar_select %p211, %s210, 7
      %s213 = smul.addr %s212, 4
      %s214 = smul.addr %s213, 8
      %s215 = scalar_lea.vmem %s2, %s214
      %p216 = pneg %p88
      %p217 = pneg %p85
      %p218 = pneg %p109
      %p219 = pneg %p106
      %p220 = pneg %p135
      %p221 = pneg %p132
      %s222 = smul.u32 4, %s15
      %p223 = scmp.lt.s32.totalorder %s222, 7
      %s224 = scalar_select %p223, %s222, 7
      %s225 = smul.addr %s224, 4
      %s226 = smul.addr %s225, 8
      %s227 = scalar_lea.vmem %s4, %s226
      %s228 = smul.u32 4, %s15
      %p229 = scmp.lt.s32.totalorder %s228, 7
      %s230 = scalar_select %p229, %s228, 7
      %s231 = smul.addr %s230, 4
      %s232 = smul.addr %s231, 8
      %s233 = scalar_lea.vmem %s0, %s232
      %s234 = smul.u32 4, %s15
      %s235 = smul.u32 4, %s15
      %p236 = scmp.lt.s32.totalorder %s235, 7
      %s237 = scalar_select %p236, %s235, 7
      %s238 = smul.addr %s237, 4
      %s239 = smul.addr %s238, 8
      %s240 = scalar_lea.vmem %s1, %s239
      %s241 = smul.u32 4, %s15
      %s242 = smul.u32 4, %s15
      %p243 = scmp.lt.s32.totalorder %s242, 7
      %s244 = scalar_select %p243, %s242, 7
      %s245 = smul.addr %s244, 4
      %s246 = smul.addr %s245, 8
      %s247 = scalar_lea.vmem %s2, %s246
      %s248 = smul.u32 4, %s15
      %s249 = smul.u32 4, %s15
      %p250 = scmp.lt.s32.totalorder %s249, 7
      %s251 = scalar_select %p250, %s249, 7
      %s252 = smul.addr %s251, 4
      %s253 = smul.addr %s252, 8
      %s254 = scalar_lea.vmem %s4, %s253
      %s255 = smul.u32 4, %s15
      %v257 = vld [vmem:[%s233] sm:$0xff]
      %v258 = vld [vmem:[%s233 + $0x8] sm:$0xff]
      %v259 = vld [vmem:[%s233 + $0x10] sm:$0xff]
      %v260 = vld [vmem:[%s233 + $0x18] sm:$0xff]
      %v261 = vld [vmem:[%s233 + $0x20] sm:$0xff]
      %v262 = vld [vmem:[%s233 + $0x28] sm:$0xff]
      %v263 = vld [vmem:[%s233 + $0x30] sm:$0xff]
      %v264 = vld [vmem:[%s233 + $0x38] sm:$0xff]
      %v265 = vld [vmem:[%s233 + $0x40] sm:$0xff]
      %v266 = vld [vmem:[%s233 + $0x48] sm:$0xff]
      %v267 = vld [vmem:[%s233 + $0x50] sm:$0xff]
      %v268 = vld [vmem:[%s233 + $0x58] sm:$0xff]
      %v269 = vld [vmem:[%s233 + $0x60] sm:$0xff]
      %v270 = vld [vmem:[%s233 + $0x68] sm:$0xff]
      %v271 = vld [vmem:[%s233 + $0x70] sm:$0xff]
      %v272 = vld [vmem:[%s233 + $0x78] sm:$0xff]
      %v273 = vpack.c.bf16 %v258, %v257
      %v274 = vpack.c.bf16 %v260, %v259
      %v275 = vpack.c.bf16 %v262, %v261
      %v276 = vpack.c.bf16 %v264, %v263
      %v277 = vpack.c.bf16 %v266, %v265
      %v278 = vpack.c.bf16 %v268, %v267
      %v279 = vpack.c.bf16 %v270, %v269
      %v280 = vpack.c.bf16 %v272, %v271
      %v281 = vld [vmem:[%s240] sm:$0xff]
      %v282 = vld [vmem:[%s240 + $0x8] sm:$0xff]
      %v283 = vld [vmem:[%s240 + $0x10] sm:$0xff]
      %v284 = vld [vmem:[%s240 + $0x18] sm:$0xff]
      %v285 = vld [vmem:[%s240 + $0x20] sm:$0xff]
      %v286 = vld [vmem:[%s240 + $0x28] sm:$0xff]
      %v287 = vld [vmem:[%s240 + $0x30] sm:$0xff]
      %v288 = vld [vmem:[%s240 + $0x38] sm:$0xff]
      %v289 = vld [vmem:[%s240 + $0x40] sm:$0xff]
      %v290 = vld [vmem:[%s240 + $0x48] sm:$0xff]
      %v291 = vld [vmem:[%s240 + $0x50] sm:$0xff]
      %v292 = vld [vmem:[%s240 + $0x58] sm:$0xff]
      %v293 = vld [vmem:[%s240 + $0x60] sm:$0xff]
      %v294 = vld [vmem:[%s240 + $0x68] sm:$0xff]
      %v295 = vld [vmem:[%s240 + $0x70] sm:$0xff]
      %v296 = vld [vmem:[%s240 + $0x78] sm:$0xff]
      %v297 = vpack.c.bf16 %v282, %v281
      %v298 = vpack.c.bf16 %v284, %v283
      %v299 = vpack.c.bf16 %v286, %v285
      %v300 = vpack.c.bf16 %v288, %v287
      %v301 = vpack.c.bf16 %v290, %v289
      %v302 = vpack.c.bf16 %v292, %v291
      %v303 = vpack.c.bf16 %v294, %v293
      %v304 = vpack.c.bf16 %v296, %v295
      %v305 = vld [vmem:[%s247] sm:$0xff]
      %v306 = vld [vmem:[%s247 + $0x8] sm:$0xff]
      %v307 = vld [vmem:[%s247 + $0x10] sm:$0xff]
      %v308 = vld [vmem:[%s247 + $0x18] sm:$0xff]
      %v309 = vld [vmem:[%s247 + $0x20] sm:$0xff]
      %v310 = vld [vmem:[%s247 + $0x28] sm:$0xff]
      %v311 = vld [vmem:[%s247 + $0x30] sm:$0xff]
      %v312 = vld [vmem:[%s247 + $0x38] sm:$0xff]
      %v313 = vld [vmem:[%s247 + $0x40] sm:$0xff]
      %v314 = vld [vmem:[%s247 + $0x48] sm:$0xff]
      %v315 = vld [vmem:[%s247 + $0x50] sm:$0xff]
      %v316 = vld [vmem:[%s247 + $0x58] sm:$0xff]
      %v317 = vld [vmem:[%s247 + $0x60] sm:$0xff]
      %v318 = vld [vmem:[%s247 + $0x68] sm:$0xff]
      %v319 = vld [vmem:[%s247 + $0x70] sm:$0xff]
      %v320 = vld [vmem:[%s247 + $0x78] sm:$0xff]
      %v321 = vpack.c.bf16 %v306, %v305
      %v322 = vpack.c.bf16 %v308, %v307
      %v323 = vpack.c.bf16 %v310, %v309
      %v324 = vpack.c.bf16 %v312, %v311
      %v325 = vpack.c.bf16 %v314, %v313
      %v326 = vpack.c.bf16 %v316, %v315
      %v327 = vpack.c.bf16 %v318, %v317
      %v328 = vpack.c.bf16 %v320, %v319
      %vm329 = vcmask 64512
      %v331 = vsel %vm329, %v273, 0
      %v334 = vsel %vm329, %v274, 0
      %v337 = vsel %vm329, %v297, 0
      %v340 = vsel %vm329, %v298, 0
      %342 = vmatprep.subr.bf16.mxu0 0
      %343 = vmatpush1.bf16.xpose.msra.mxu0 %v337
      %344 = vmatprep.subr.bf16.mxu0 0
      %345 = vmatpush1.bf16.xpose.msra.mxu0 %v340
      %346 = vmatprep.subr.bf16.mxu0 0
      %347 = vmatpush1.bf16.xpose.msra.mxu0 0
      %348 = vmatprep.subr.bf16.mxu0 0
      %349 = vmatpush1.bf16.xpose.msra.mxu0 0
      %350 = vmatprep.subr.bf16.mxu0 0
      %351 = vmatpush1.bf16.xpose.msra.mxu0 0
      %352 = vmatprep.subr.bf16.mxu0 0
      %353 = vmatpush1.bf16.xpose.msra.mxu0 0
      %354 = vmatprep.subr.bf16.mxu0 0
      %355 = vmatpush1.bf16.xpose.msra.mxu0 0
      %356 = vmatprep.subr.bf16.mxu0 0
      %357 = vmatpush1.bf16.xpose.msra.mxu0 0
      %358 = vmatprep.subr.bf16.mxu0 0
      %359 = vmatpush1.bf16.xpose.msra.mxu0 0
      %360 = vmatprep.subr.bf16.mxu0 0
      %361 = vmatpush1.bf16.xpose.msra.mxu0 0
      %362 = vmatprep.subr.bf16.mxu0 0
      %363 = vmatpush1.bf16.xpose.msra.mxu0 0
      %364 = vmatprep.subr.bf16.mxu0 0
      %365 = vmatpush1.bf16.xpose.msra.mxu0 0
      %366 = vmatprep.subr.bf16.mxu0 0
      %367 = vmatpush1.bf16.xpose.msra.mxu0 0
      %368 = vmatprep.subr.bf16.mxu0 0
      %369 = vmatpush1.bf16.xpose.msra.mxu0 0
      %370 = vmatprep.subr.bf16.mxu0 0
      %371 = vmatpush1.bf16.xpose.msra.mxu0 0
      %372 = vmatprep.subr.bf16.mxu0 0
      %373 = vmatpush1.bf16.xpose.msra.mxu0 0
      %374 = vmatprep.mubr.bf16.mxu0 0
      %375 = vmatmul.mubr.bf16.gmra.mrb[0].mxu0 %v331
      %v376 = vpop.f32.mrb[0].mxu0
      %v377 = vadd.f32 0.0, %v376
      %v378 = vpop.f32.mrb[0].mxu0
      %v379 = vpop.f32.mrb[0].mxu0
      %v380 = vadd.f32 0.0, %v379
      %v381 = vpop.f32.mrb[0].mxu0
      %382 = vmatprep.mubr.bf16.mxu0 0
      %383 = vmatmul.mubr.bf16.gmra.mrb[0].mxu0 %v334
      %v384 = vpop.f32.mrb[0].mxu0
      %v385 = vadd.f32 0.0, %v384
      %v386 = vpop.f32.mrb[0].mxu0
      %v387 = vpop.f32.mrb[0].mxu0
      %v388 = vadd.f32 0.0, %v387
      %v389 = vpop.f32.mrb[0].mxu0
      %390 = vdwg.mxu0
      %v392 = vsel %vm329, %v275, 0
      %v395 = vsel %vm329, %v276, 0
      %v398 = vsel %vm329, %v299, 0
      %v401 = vsel %vm329, %v300, 0
      %403 = vmatprep.subr.bf16.mxu0 0
      %404 = vmatpush1.bf16.xpose.msra.mxu0 %v398
      %405 = vmatprep.subr.bf16.mxu0 0
      %406 = vmatpush1.bf16.xpose.msra.mxu0 %v401
      %407 = vmatprep.subr.bf16.mxu0 0
      %408 = vmatpush1.bf16.xpose.msra.mxu0 0
      %409 = vmatprep.subr.bf16.mxu0 0
      %410 = vmatpush1.bf16.xpose.msra.mxu0 0
      %411 = vmatprep.subr.bf16.mxu0 0
      %412 = vmatpush1.bf16.xpose.msra.mxu0 0
      %413 = vmatprep.subr.bf16.mxu0 0
      %414 = vmatpush1.bf16.xpose.msra.mxu0 0
      %415 = vmatprep.subr.bf16.mxu0 0
      %416 = vmatpush1.bf16.xpose.msra.mxu0 0
      %417 = vmatprep.subr.bf16.mxu0 0
      %418 = vmatpush1.bf16.xpose.msra.mxu0 0
      %419 = vmatprep.subr.bf16.mxu0 0
      %420 = vmatpush1.bf16.xpose.msra.mxu0 0
      %421 = vmatprep.subr.bf16.mxu0 0
      %422 = vmatpush1.bf16.xpose.msra.mxu0 0
      %423 = vmatprep.subr.bf16.mxu0 0
      %424 = vmatpush1.bf16.xpose.msra.mxu0 0
      %425 = vmatprep.subr.bf16.mxu0 0
      %426 = vmatpush1.bf16.xpose.msra.mxu0 0
      %427 = vmatprep.subr.bf16.mxu0 0
      %428 = vmatpush1.bf16.xpose.msra.mxu0 0
      %429 = vmatprep.subr.bf16.mxu0 0
      %430 = vmatpush1.bf16.xpose.msra.mxu0 0
      %431 = vmatprep.subr.bf16.mxu0 0
      %432 = vmatpush1.bf16.xpose.msra.mxu0 0
      %433 = vmatprep.subr.bf16.mxu0 0
      %434 = vmatpush1.bf16.xpose.msra.mxu0 0
      %435 = vmatprep.mubr.bf16.mxu0 0
      %436 = vmatmul.mubr.bf16.gmra.mrb[0].mxu0 %v392
      %v437 = vpop.f32.mrb[0].mxu0
      %v438 = vadd.f32 0.0, %v437
      %v439 = vpop.f32.mrb[0].mxu0
      %v440 = vpop.f32.mrb[0].mxu0
      %v441 = vadd.f32 0.0, %v440
      %v442 = vpop.f32.mrb[0].mxu0
      %443 = vmatprep.mubr.bf16.mxu0 0
      %444 = vmatmul.mubr.bf16.gmra.mrb[0].mxu0 %v395
      %v445 = vpop.f32.mrb[0].mxu0
      %v446 = vadd.f32 0.0, %v445
      %v447 = vpop.f32.mrb[0].mxu0
      %v448 = vpop.f32.mrb[0].mxu0
      %v449 = vadd.f32 0.0, %v448
      %v450 = vpop.f32.mrb[0].mxu0
      %451 = vdwg.mxu0
      %v453 = vsel %vm329, %v277, 0
      %v456 = vsel %vm329, %v278, 0
      %v459 = vsel %vm329, %v301, 0
      %v462 = vsel %vm329, %v302, 0
      %464 = vmatprep.subr.bf16.mxu0 0
      %465 = vmatpush1.bf16.xpose.msra.mxu0 %v459
      %466 = vmatprep.subr.bf16.mxu0 0
      %467 = vmatpush1.bf16.xpose.msra.mxu0 %v462
      %468 = vmatprep.subr.bf16.mxu0 0
      %469 = vmatpush1.bf16.xpose.msra.mxu0 0
      %470 = vmatprep.subr.bf16.mxu0 0
      %471 = vmatpush1.bf16.xpose.msra.mxu0 0
      %472 = vmatprep.subr.bf16.mxu0 0
      %473 = vmatpush1.bf16.xpose.msra.mxu0 0
      %474 = vmatprep.subr.bf16.mxu0 0
      %475 = vmatpush1.bf16.xpose.msra.mxu0 0
      %476 = vmatprep.subr.bf16.mxu0 0
      %477 = vmatpush1.bf16.xpose.msra.mxu0 0
      %478 = vmatprep.subr.bf16.mxu0 0
      %479 = vmatpush1.bf16.xpose.msra.mxu0 0
      %480 = vmatprep.subr.bf16.mxu0 0
      %481 = vmatpush1.bf16.xpose.msra.mxu0 0
      %482 = vmatprep.subr.bf16.mxu0 0
      %483 = vmatpush1.bf16.xpose.msra.mxu0 0
      %484 = vmatprep.subr.bf16.mxu0 0
      %485 = vmatpush1.bf16.xpose.msra.mxu0 0
      %486 = vmatprep.subr.bf16.mxu0 0
      %487 = vmatpush1.bf16.xpose.msra.mxu0 0
      %488 = vmatprep.subr.bf16.mxu0 0
      %489 = vmatpush1.bf16.xpose.msra.mxu0 0
      %490 = vmatprep.subr.bf16.mxu0 0
      %491 = vmatpush1.bf16.xpose.msra.mxu0 0
      %492 = vmatprep.subr.bf16.mxu0 0
      %493 = vmatpush1.bf16.xpose.msra.mxu0 0
      %494 = vmatprep.subr.bf16.mxu0 0
      %495 = vmatpush1.bf16.xpose.msra.mxu0 0
      %496 = vmatprep.mubr.bf16.mxu0 0
      %497 = vmatmul.mubr.bf16.gmra.mrb[0].mxu0 %v453
      %v498 = vpop.f32.mrb[0].mxu0
      %v499 = vadd.f32 0.0, %v498
      %v500 = vpop.f32.mrb[0].mxu0
      %v501 = vpop.f32.mrb[0].mxu0
      %v502 = vadd.f32 0.0, %v501
      %v503 = vpop.f32.mrb[0].mxu0
      %504 = vmatprep.mubr.bf16.mxu0 0
      %505 = vmatmul.mubr.bf16.gmra.mrb[0].mxu0 %v456
      %v506 = vpop.f32.mrb[0].mxu0
      %v507 = vadd.f32 0.0, %v506
      %v508 = vpop.f32.mrb[0].mxu0
      %v509 = vpop.f32.mrb[0].mxu0
      %v510 = vadd.f32 0.0, %v509
      %v511 = vpop.f32.mrb[0].mxu0
      %512 = vdwg.mxu0
      %v514 = vsel %vm329, %v279, 0
      %v517 = vsel %vm329, %v280, 0
      %v520 = vsel %vm329, %v303, 0
      %v523 = vsel %vm329, %v304, 0
      %525 = vmatprep.subr.bf16.mxu0 0
      %526 = vmatpush1.bf16.xpose.msra.mxu0 %v520
      %527 = vmatprep.subr.bf16.mxu0 0
      %528 = vmatpush1.bf16.xpose.msra.mxu0 %v523
      %529 = vmatprep.subr.bf16.mxu0 0
      %530 = vmatpush1.bf16.xpose.msra.mxu0 0
      %531 = vmatprep.subr.bf16.mxu0 0
      %532 = vmatpush1.bf16.xpose.msra.mxu0 0
      %533 = vmatprep.subr.bf16.mxu0 0
      %534 = vmatpush1.bf16.xpose.msra.mxu0 0
      %535 = vmatprep.subr.bf16.mxu0 0
      %536 = vmatpush1.bf16.xpose.msra.mxu0 0
      %537 = vmatprep.subr.bf16.mxu0 0
      %538 = vmatpush1.bf16.xpose.msra.mxu0 0
      %539 = vmatprep.subr.bf16.mxu0 0
      %540 = vmatpush1.bf16.xpose.msra.mxu0 0
      %541 = vmatprep.subr.bf16.mxu0 0
      %542 = vmatpush1.bf16.xpose.msra.mxu0 0
      %543 = vmatprep.subr.bf16.mxu0 0
      %544 = vmatpush1.bf16.xpose.msra.mxu0 0
      %545 = vmatprep.subr.bf16.mxu0 0
      %546 = vmatpush1.bf16.xpose.msra.mxu0 0
      %547 = vmatprep.subr.bf16.mxu0 0
      %548 = vmatpush1.bf16.xpose.msra.mxu0 0
      %549 = vmatprep.subr.bf16.mxu0 0
      %550 = vmatpush1.bf16.xpose.msra.mxu0 0
      %551 = vmatprep.subr.bf16.mxu0 0
      %552 = vmatpush1.bf16.xpose.msra.mxu0 0
      %553 = vmatprep.subr.bf16.mxu0 0
      %554 = vmatpush1.bf16.xpose.msra.mxu0 0
      %555 = vmatprep.subr.bf16.mxu0 0
      %556 = vmatpush1.bf16.xpose.msra.mxu0 0
      %557 = vmatprep.mubr.bf16.mxu0 0
      %558 = vmatmul.mubr.bf16.gmra.mrb[0].mxu0 %v514
      %v559 = vpop.f32.mrb[0].mxu0
      %v560 = vadd.f32 0.0, %v559
      %v561 = vpop.f32.mrb[0].mxu0
      %v562 = vpop.f32.mrb[0].mxu0
      %v563 = vadd.f32 0.0, %v562
      %v564 = vpop.f32.mrb[0].mxu0
      %565 = vmatprep.mubr.bf16.mxu0 0
      %566 = vmatmul.mubr.bf16.gmra.mrb[0].mxu0 %v517
      %v567 = vpop.f32.mrb[0].mxu0
      %v568 = vadd.f32 0.0, %v567
      %v569 = vpop.f32.mrb[0].mxu0
      %v570 = vpop.f32.mrb[0].mxu0
      %v571 = vadd.f32 0.0, %v570
      %v572 = vpop.f32.mrb[0].mxu0
      %573 = vdwg.mxu0
      %v574 = vmul.f32 %v377, 0.35355338
      %v575 = vmul.f32 %v380, 0.35355338
      %v576 = vmul.f32 %v385, 0.35355338
      %v577 = vmul.f32 %v388, 0.35355338
      %v578 = vmul.f32 %v438, 0.35355338
      %v579 = vmul.f32 %v441, 0.35355338
      %v580 = vmul.f32 %v446, 0.35355338
      %v581 = vmul.f32 %v449, 0.35355338
      %v582 = vmul.f32 %v499, 0.35355338
      %v583 = vmul.f32 %v502, 0.35355338
      %v584 = vmul.f32 %v507, 0.35355338
      %v585 = vmul.f32 %v510, 0.35355338
      %v586 = vmul.f32 %v560, 0.35355338
      %v587 = vmul.f32 %v563, 0.35355338
      %v588 = vmul.f32 %v568, 0.35355338
      %v589 = vmul.f32 %v571, 0.35355338
      %v590 = vld [vmem:[%s3] sm:$0xff]
      %v591 = vld [vmem:[%s3 + $0x8] sm:$0xff]
      %v592 = vld [vmem:[%s3 + $0x10] sm:$0xff]
      %v593 = vld [vmem:[%s3 + $0x18] sm:$0xff]
      %v594 = vadd.f32 %v574, %v590
      %v595 = vadd.f32 %v575, %v591
      %v596 = vadd.f32 %v576, %v592
      %v597 = vadd.f32 %v577, %v593
      %v598 = vadd.f32 %v578, %v590
      %v599 = vadd.f32 %v579, %v591
      %v600 = vadd.f32 %v580, %v592
      %v601 = vadd.f32 %v581, %v593
      %v602 = vadd.f32 %v582, %v590
      %v603 = vadd.f32 %v583, %v591
      %v604 = vadd.f32 %v584, %v592
      %v605 = vadd.f32 %v585, %v593
      %v606 = vadd.f32 %v586, %v590
      %v607 = vadd.f32 %v587, %v591
      %v608 = vadd.f32 %v588, %v592
      %v609 = vadd.f32 %v589, %v593
      %vm610 = vcmask 261120
      %v611 = vsel %vm610, %v594, -inf
      %612 = vmax.xlane.f32.xlu0 %v611
      %v613 = vpop.xlane.xlu0 %612
      %v614 = vsel %vm610, %v595, -inf
      %615 = vmax.xlane.f32.xlu0 %v614
      %v616 = vpop.xlane.xlu0 %615
      %v617 = vsel %vm610, %v596, -inf
      %618 = vmax.xlane.f32.xlu0 %v617
      %v619 = vpop.xlane.xlu0 %618
      %v620 = vsel %vm610, %v597, -inf
      %621 = vmax.xlane.f32.xlu0 %v620
      %v622 = vpop.xlane.xlu0 %621
      %v623 = vsel %vm610, %v598, -inf
      %624 = vmax.xlane.f32.xlu0 %v623
      %v625 = vpop.xlane.xlu0 %624
      %v626 = vsel %vm610, %v599, -inf
      %627 = vmax.xlane.f32.xlu0 %v626
      %v628 = vpop.xlane.xlu0 %627
      %v629 = vsel %vm610, %v600, -inf
      %630 = vmax.xlane.f32.xlu0 %v629
      %v631 = vpop.xlane.xlu0 %630
      %v632 = vsel %vm610, %v601, -inf
      %633 = vmax.xlane.f32.xlu0 %v632
      %v634 = vpop.xlane.xlu0 %633
      %v635 = vsel %vm610, %v602, -inf
      %636 = vmax.xlane.f32.xlu0 %v635
      %v637 = vpop.xlane.xlu0 %636
      %v638 = vsel %vm610, %v603, -inf
      %639 = vmax.xlane.f32.xlu0 %v638
      %v640 = vpop.xlane.xlu0 %639
      %v641 = vsel %vm610, %v604, -inf
      %642 = vmax.xlane.f32.xlu0 %v641
      %v643 = vpop.xlane.xlu0 %642
      %v644 = vsel %vm610, %v605, -inf
      %645 = vmax.xlane.f32.xlu0 %v644
      %v646 = vpop.xlane.xlu0 %645
      %v647 = vsel %vm610, %v606, -inf
      %648 = vmax.xlane.f32.xlu0 %v647
      %v649 = vpop.xlane.xlu0 %648
      %v650 = vsel %vm610, %v607, -inf
      %651 = vmax.xlane.f32.xlu0 %v650
      %v652 = vpop.xlane.xlu0 %651
      %v653 = vsel %vm610, %v608, -inf
      %654 = vmax.xlane.f32.xlu0 %v653
      %v655 = vpop.xlane.xlu0 %654
      %v656 = vsel %vm610, %v609, -inf
      %657 = vmax.xlane.f32.xlu0 %v656
      %v658 = vpop.xlane.xlu0 %657
      %v659 = vsub.f32 %v594, %v613
      %v660 = vsub.f32 %v595, %v616
      %v661 = vsub.f32 %v596, %v619
      %v662 = vsub.f32 %v597, %v622
      %v663 = vsub.f32 %v598, %v625
      %v664 = vsub.f32 %v599, %v628
      %v665 = vsub.f32 %v600, %v631
      %v666 = vsub.f32 %v601, %v634
      %v667 = vsub.f32 %v602, %v637
      %v668 = vsub.f32 %v603, %v640
      %v669 = vsub.f32 %v604, %v643
      %v670 = vsub.f32 %v605, %v646
      %v671 = vsub.f32 %v606, %v649
      %v672 = vsub.f32 %v607, %v652
      %v673 = vsub.f32 %v608, %v655
      %v674 = vsub.f32 %v609, %v658
      %v675 = vmul.f32 %v659, 1.442695
      %v676 = vpow.pop %v675
      %v677 = vmul.f32 %v660, 1.442695
      %v678 = vpow.pop %v677
      %v679 = vmul.f32 %v661, 1.442695
      %v680 = vpow.pop %v679
      %v681 = vmul.f32 %v662, 1.442695
      %v682 = vpow.pop %v681
      %v683 = vmul.f32 %v663, 1.442695
      %v684 = vpow.pop %v683
      %v685 = vmul.f32 %v664, 1.442695
      %v686 = vpow.pop %v685
      %v687 = vmul.f32 %v665, 1.442695
      %v688 = vpow.pop %v687
      %v689 = vmul.f32 %v666, 1.442695
      %v690 = vpow.pop %v689
      %v691 = vmul.f32 %v667, 1.442695
      %v692 = vpow.pop %v691
      %v693 = vmul.f32 %v668, 1.442695
      %v694 = vpow.pop %v693
      %v695 = vmul.f32 %v669, 1.442695
      %v696 = vpow.pop %v695
      %v697 = vmul.f32 %v670, 1.442695
      %v698 = vpow.pop %v697
      %v699 = vmul.f32 %v671, 1.442695
      %v700 = vpow.pop %v699
      %v701 = vmul.f32 %v672, 1.442695
      %v702 = vpow.pop %v701
      %v703 = vmul.f32 %v673, 1.442695
      %v704 = vpow.pop %v703
      %v705 = vmul.f32 %v674, 1.442695
      %v706 = vpow.pop %v705
      %v707 = vsel %vm610, %v676, 0.0
      %708 = vadd.xlane.f32.xlu0 %v707
      %v709 = vpop.xlane.xlu0 %708
      %v710 = vsel %vm610, %v678, 0.0
      %711 = vadd.xlane.f32.xlu0 %v710
      %v712 = vpop.xlane.xlu0 %711
      %v713 = vsel %vm610, %v680, 0.0
      %714 = vadd.xlane.f32.xlu0 %v713
      %v715 = vpop.xlane.xlu0 %714
      %v716 = vsel %vm610, %v682, 0.0
      %717 = vadd.xlane.f32.xlu0 %v716
      %v718 = vpop.xlane.xlu0 %717
      %v719 = vsel %vm610, %v684, 0.0
      %720 = vadd.xlane.f32.xlu0 %v719
      %v721 = vpop.xlane.xlu0 %720
      %v722 = vsel %vm610, %v686, 0.0
      %723 = vadd.xlane.f32.xlu0 %v722
      %v724 = vpop.xlane.xlu0 %723
      %v725 = vsel %vm610, %v688, 0.0
      %726 = vadd.xlane.f32.xlu0 %v725
      %v727 = vpop.xlane.xlu0 %726
      %v728 = vsel %vm610, %v690, 0.0
      %729 = vadd.xlane.f32.xlu0 %v728
      %v730 = vpop.xlane.xlu0 %729
      %v731 = vsel %vm610, %v692, 0.0
      %732 = vadd.xlane.f32.xlu0 %v731
      %v733 = vpop.xlane.xlu0 %732
      %v734 = vsel %vm610, %v694, 0.0
      %735 = vadd.xlane.f32.xlu0 %v734
      %v736 = vpop.xlane.xlu0 %735
      %v737 = vsel %vm610, %v696, 0.0
      %738 = vadd.xlane.f32.xlu0 %v737
      %v739 = vpop.xlane.xlu0 %738
      %v740 = vsel %vm610, %v698, 0.0
      %741 = vadd.xlane.f32.xlu0 %v740
      %v742 = vpop.xlane.xlu0 %741
      %v743 = vsel %vm610, %v700, 0.0
      %744 = vadd.xlane.f32.xlu0 %v743
      %v745 = vpop.xlane.xlu0 %744
      %v746 = vsel %vm610, %v702, 0.0
      %747 = vadd.xlane.f32.xlu0 %v746
      %v748 = vpop.xlane.xlu0 %747
      %v749 = vsel %vm610, %v704, 0.0
      %750 = vadd.xlane.f32.xlu0 %v749
      %v751 = vpop.xlane.xlu0 %750
      %v752 = vsel %vm610, %v706, 0.0
      %753 = vadd.xlane.f32.xlu0 %v752
      %v754 = vpop.xlane.xlu0 %753
      %v755 = vrcp.pop %v709
      %v756 = vrcp.pop %v712
      %v757 = vrcp.pop %v715
      %v758 = vrcp.pop %v718
      %v759 = vrcp.pop %v721
      %v760 = vrcp.pop %v724
      %v761 = vrcp.pop %v727
      %v762 = vrcp.pop %v730
      %v763 = vrcp.pop %v733
      %v764 = vrcp.pop %v736
      %v765 = vrcp.pop %v739
      %v766 = vrcp.pop %v742
      %v767 = vrcp.pop %v745
      %v768 = vrcp.pop %v748
      %v769 = vrcp.pop %v751
      %v770 = vrcp.pop %v754
      %v771 = vmul.f32 %v676, %v755
      %v772 = vmul.f32 %v678, %v756
      %v773 = vmul.f32 %v680, %v757
      %v774 = vmul.f32 %v682, %v758
      %v775 = vmul.f32 %v684, %v759
      %v776 = vmul.f32 %v686, %v760
      %v777 = vmul.f32 %v688, %v761
      %v778 = vmul.f32 %v690, %v762
      %v779 = vmul.f32 %v692, %v763
      %v780 = vmul.f32 %v694, %v764
      %v781 = vmul.f32 %v696, %v765
      %v782 = vmul.f32 %v698, %v766
      %v783 = vmul.f32 %v700, %v767
      %v784 = vmul.f32 %v702, %v768
      %v785 = vmul.f32 %v704, %v769
      %v786 = vmul.f32 %v706, %v770
      %v787 = vpack.c.bf16 %v772, %v771
      %v788 = vpack.c.bf16 %v774, %v773
      %v789 = vpack.c.bf16 %v776, %v775
      %v790 = vpack.c.bf16 %v778, %v777
      %v791 = vpack.c.bf16 %v780, %v779
      %v792 = vpack.c.bf16 %v782, %v781
      %v793 = vpack.c.bf16 %v784, %v783
      %v794 = vpack.c.bf16 %v786, %v785
      %v796 = vsel %vm610, %v787, 0
      %v799 = vsel %vm610, %v788, 0
      %801 = vmatprep.subr.bf16.mxu0 0
      %802 = vmatpush1.bf16.msra.mxu0 %v321
      %803 = vmatprep.subr.bf16.mxu0 0
      %804 = vmatpush1.bf16.msra.mxu0 %v322
      %805 = vmatprep.subr.bf16.mxu0 0
      %806 = vmatpush1.bf16.msra.mxu0 0
      %807 = vmatprep.subr.bf16.mxu0 0
      %808 = vmatpush1.bf16.msra.mxu0 0
      %809 = vmatprep.subr.bf16.mxu0 0
      %810 = vmatpush1.bf16.msra.mxu0 0
      %811 = vmatprep.subr.bf16.mxu0 0
      %812 = vmatpush1.bf16.msra.mxu0 0
      %813 = vmatprep.subr.bf16.mxu0 0
      %814 = vmatpush1.bf16.msra.mxu0 0
      %815 = vmatprep.subr.bf16.mxu0 0
      %816 = vmatpush1.bf16.msra.mxu0 0
      %817 = vmatprep.subr.bf16.mxu0 0
      %818 = vmatpush1.bf16.msra.mxu0 0
      %819 = vmatprep.subr.bf16.mxu0 0
      %820 = vmatpush1.bf16.msra.mxu0 0
      %821 = vmatprep.subr.bf16.mxu0 0
      %822 = vmatpush1.bf16.msra.mxu0 0
      %823 = vmatprep.subr.bf16.mxu0 0
      %824 = vmatpush1.bf16.msra.mxu0 0
      %825 = vmatprep.subr.bf16.mxu0 0
      %826 = vmatpush1.bf16.msra.mxu0 0
      %827 = vmatprep.subr.bf16.mxu0 0
      %828 = vmatpush1.bf16.msra.mxu0 0
      %829 = vmatprep.subr.bf16.mxu0 0
      %830 = vmatpush1.bf16.msra.mxu0 0
      %831 = vmatprep.subr.bf16.mxu0 0
      %832 = vmatpush1.bf16.msra.mxu0 0
      %833 = vmatprep.mubr.bf16.mxu0 0
      %834 = vmatmul.mubr.bf16.gmra.mrb[0].mxu0 %v796
      %v835 = vpop.f32.mrb[0].mxu0
      %v836 = vadd.f32 0.0, %v835
      %v837 = vpop.f32.mrb[0].mxu0
      %v838 = vpop.f32.mrb[0].mxu0
      %v839 = vadd.f32 0.0, %v838
      %v840 = vpop.f32.mrb[0].mxu0
      %841 = vmatprep.mubr.bf16.mxu0 0
      %842 = vmatmul.mubr.bf16.gmra.mrb[0].mxu0 %v799
      %v843 = vpop.f32.mrb[0].mxu0
      %v844 = vadd.f32 0.0, %v843
      %v845 = vpop.f32.mrb[0].mxu0
      %v846 = vpop.f32.mrb[0].mxu0
      %v847 = vadd.f32 0.0, %v846
      %v848 = vpop.f32.mrb[0].mxu0
      %849 = vdwg.mxu0
      %v851 = vsel %vm610, %v789, 0
      %v854 = vsel %vm610, %v790, 0
      %856 = vmatprep.subr.bf16.mxu0 0
      %857 = vmatpush1.bf16.msra.mxu0 %v323
      %858 = vmatprep.subr.bf16.mxu0 0
      %859 = vmatpush1.bf16.msra.mxu0 %v324
      %860 = vmatprep.subr.bf16.mxu0 0
      %861 = vmatpush1.bf16.msra.mxu0 0
      %862 = vmatprep.subr.bf16.mxu0 0
      %863 = vmatpush1.bf16.msra.mxu0 0
      %864 = vmatprep.subr.bf16.mxu0 0
      %865 = vmatpush1.bf16.msra.mxu0 0
      %866 = vmatprep.subr.bf16.mxu0 0
      %867 = vmatpush1.bf16.msra.mxu0 0
      %868 = vmatprep.subr.bf16.mxu0 0
      %869 = vmatpush1.bf16.msra.mxu0 0
      %870 = vmatprep.subr.bf16.mxu0 0
      %871 = vmatpush1.bf16.msra.mxu0 0
      %872 = vmatprep.subr.bf16.mxu0 0
      %873 = vmatpush1.bf16.msra.mxu0 0
      %874 = vmatprep.subr.bf16.mxu0 0
      %875 = vmatpush1.bf16.msra.mxu0 0
      %876 = vmatprep.subr.bf16.mxu0 0
      %877 = vmatpush1.bf16.msra.mxu0 0
      %878 = vmatprep.subr.bf16.mxu0 0
      %879 = vmatpush1.bf16.msra.mxu0 0
      %880 = vmatprep.subr.bf16.mxu0 0
      %881 = vmatpush1.bf16.msra.mxu0 0
      %882 = vmatprep.subr.bf16.mxu0 0
      %883 = vmatpush1.bf16.msra.mxu0 0
      %884 = vmatprep.subr.bf16.mxu0 0
      %885 = vmatpush1.bf16.msra.mxu0 0
      %886 = vmatprep.subr.bf16.mxu0 0
      %887 = vmatpush1.bf16.msra.mxu0 0
      %888 = vmatprep.mubr.bf16.mxu0 0
      %889 = vmatmul.mubr.bf16.gmra.mrb[0].mxu0 %v851
      %v890 = vpop.f32.mrb[0].mxu0
      %v891 = vadd.f32 0.0, %v890
      %v892 = vpop.f32.mrb[0].mxu0
      %v893 = vpop.f32.mrb[0].mxu0
      %v894 = vadd.f32 0.0, %v893
      %v895 = vpop.f32.mrb[0].mxu0
      %896 = vmatprep.mubr.bf16.mxu0 0
      %897 = vmatmul.mubr.bf16.gmra.mrb[0].mxu0 %v854
      %v898 = vpop.f32.mrb[0].mxu0
      %v899 = vadd.f32 0.0, %v898
      %v900 = vpop.f32.mrb[0].mxu0
      %v901 = vpop.f32.mrb[0].mxu0
      %v902 = vadd.f32 0.0, %v901
      %v903 = vpop.f32.mrb[0].mxu0
      %904 = vdwg.mxu0
      %v906 = vsel %vm610, %v791, 0
      %v909 = vsel %vm610, %v792, 0
      %911 = vmatprep.subr.bf16.mxu0 0
      %912 = vmatpush1.bf16.msra.mxu0 %v325
      %913 = vmatprep.subr.bf16.mxu0 0
      %914 = vmatpush1.bf16.msra.mxu0 %v326
      %915 = vmatprep.subr.bf16.mxu0 0
      %916 = vmatpush1.bf16.msra.mxu0 0
      %917 = vmatprep.subr.bf16.mxu0 0
      %918 = vmatpush1.bf16.msra.mxu0 0
      %919 = vmatprep.subr.bf16.mxu0 0
      %920 = vmatpush1.bf16.msra.mxu0 0
      %921 = vmatprep.subr.bf16.mxu0 0
      %922 = vmatpush1.bf16.msra.mxu0 0
      %923 = vmatprep.subr.bf16.mxu0 0
      %924 = vmatpush1.bf16.msra.mxu0 0
      %925 = vmatprep.subr.bf16.mxu0 0
      %926 = vmatpush1.bf16.msra.mxu0 0
      %927 = vmatprep.subr.bf16.mxu0 0
      %928 = vmatpush1.bf16.msra.mxu0 0
      %929 = vmatprep.subr.bf16.mxu0 0
      %930 = vmatpush1.bf16.msra.mxu0 0
      %931 = vmatprep.subr.bf16.mxu0 0
      %932 = vmatpush1.bf16.msra.mxu0 0
      %933 = vmatprep.subr.bf16.mxu0 0
      %934 = vmatpush1.bf16.msra.mxu0 0
      %935 = vmatprep.subr.bf16.mxu0 0
      %936 = vmatpush1.bf16.msra.mxu0 0
      %937 = vmatprep.subr.bf16.mxu0 0
      %938 = vmatpush1.bf16.msra.mxu0 0
      %939 = vmatprep.subr.bf16.mxu0 0
      %940 = vmatpush1.bf16.msra.mxu0 0
      %941 = vmatprep.subr.bf16.mxu0 0
      %942 = vmatpush1.bf16.msra.mxu0 0
      %943 = vmatprep.mubr.bf16.mxu0 0
      %944 = vmatmul.mubr.bf16.gmra.mrb[0].mxu0 %v906
      %v945 = vpop.f32.mrb[0].mxu0
      %v946 = vadd.f32 0.0, %v945
      %v947 = vpop.f32.mrb[0].mxu0
      %v948 = vpop.f32.mrb[0].mxu0
      %v949 = vadd.f32 0.0, %v948
      %v950 = vpop.f32.mrb[0].mxu0
      %951 = vmatprep.mubr.bf16.mxu0 0
      %952 = vmatmul.mubr.bf16.gmra.mrb[0].mxu0 %v909
      %v953 = vpop.f32.mrb[0].mxu0
      %v954 = vadd.f32 0.0, %v953
      %v955 = vpop.f32.mrb[0].mxu0
      %v956 = vpop.f32.mrb[0].mxu0
      %v957 = vadd.f32 0.0, %v956
      %v958 = vpop.f32.mrb[0].mxu0
      %959 = vdwg.mxu0
      %v961 = vsel %vm610, %v793, 0
      %v964 = vsel %vm610, %v794, 0
      %966 = vmatprep.subr.bf16.mxu0 0
      %967 = vmatpush1.bf16.msra.mxu0 %v327
      %968 = vmatprep.subr.bf16.mxu0 0
      %969 = vmatpush1.bf16.msra.mxu0 %v328
      %970 = vmatprep.subr.bf16.mxu0 0
      %971 = vmatpush1.bf16.msra.mxu0 0
      %972 = vmatprep.subr.bf16.mxu0 0
      %973 = vmatpush1.bf16.msra.mxu0 0
      %974 = vmatprep.subr.bf16.mxu0 0
      %975 = vmatpush1.bf16.msra.mxu0 0
      %976 = vmatprep.subr.bf16.mxu0 0
      %977 = vmatpush1.bf16.msra.mxu0 0
      %978 = vmatprep.subr.bf16.mxu0 0
      %979 = vmatpush1.bf16.msra.mxu0 0
      %980 = vmatprep.subr.bf16.mxu0 0
      %981 = vmatpush1.bf16.msra.mxu0 0
      %982 = vmatprep.subr.bf16.mxu0 0
      %983 = vmatpush1.bf16.msra.mxu0 0
      %984 = vmatprep.subr.bf16.mxu0 0
      %985 = vmatpush1.bf16.msra.mxu0 0
      %986 = vmatprep.subr.bf16.mxu0 0
      %987 = vmatpush1.bf16.msra.mxu0 0
      %988 = vmatprep.subr.bf16.mxu0 0
      %989 = vmatpush1.bf16.msra.mxu0 0
      %990 = vmatprep.subr.bf16.mxu0 0
      %991 = vmatpush1.bf16.msra.mxu0 0
      %992 = vmatprep.subr.bf16.mxu0 0
      %993 = vmatpush1.bf16.msra.mxu0 0
      %994 = vmatprep.subr.bf16.mxu0 0
      %995 = vmatpush1.bf16.msra.mxu0 0
      %996 = vmatprep.subr.bf16.mxu0 0
      %997 = vmatpush1.bf16.msra.mxu0 0
      %998 = vmatprep.mubr.bf16.mxu0 0
      %999 = vmatmul.mubr.bf16.gmra.mrb[0].mxu0 %v961
      %v1000 = vpop.f32.mrb[0].mxu0
      %v1001 = vadd.f32 0.0, %v1000
      %v1002 = vpop.f32.mrb[0].mxu0
      %v1003 = vpop.f32.mrb[0].mxu0
      %v1004 = vadd.f32 0.0, %v1003
      %v1005 = vpop.f32.mrb[0].mxu0
      %1006 = vmatprep.mubr.bf16.mxu0 0
      %1007 = vmatmul.mubr.bf16.gmra.mrb[0].mxu0 %v964
      %v1008 = vpop.f32.mrb[0].mxu0
      %v1009 = vadd.f32 0.0, %v1008
      %v1010 = vpop.f32.mrb[0].mxu0
      %v1011 = vpop.f32.mrb[0].mxu0
      %v1012 = vadd.f32 0.0, %v1011
      %v1013 = vpop.f32.mrb[0].mxu0
      %1014 = vdwg.mxu0
      %1015 = vst.msk [vmem:[%s254] sm:$0xff] %vm329, %v836
      %1016 = vst.msk [vmem:[%s254 + $0x8] sm:$0xff] %vm329, %v839
      %1017 = vst.msk [vmem:[%s254 + $0x10] sm:$0xff] %vm329, %v844
      %1018 = vst.msk [vmem:[%s254 + $0x18] sm:$0xff] %vm329, %v847
      %1019 = vst.msk [vmem:[%s254 + $0x20] sm:$0xff] %vm329, %v891
      %1020 = vst.msk [vmem:[%s254 + $0x28] sm:$0xff] %vm329, %v894
      %1021 = vst.msk [vmem:[%s254 + $0x30] sm:$0xff] %vm329, %v899
      %1022 = vst.msk [vmem:[%s254 + $0x38] sm:$0xff] %vm329, %v902
      %1023 = vst.msk [vmem:[%s254 + $0x40] sm:$0xff] %vm329, %v946
      %1024 = vst.msk [vmem:[%s254 + $0x48] sm:$0xff] %vm329, %v949
      %1025 = vst.msk [vmem:[%s254 + $0x50] sm:$0xff] %vm329, %v954
      %1026 = vst.msk [vmem:[%s254 + $0x58] sm:$0xff] %vm329, %v957
      %1027 = vst.msk [vmem:[%s254 + $0x60] sm:$0xff] %vm329, %v1001
      %1028 = vst.msk [vmem:[%s254 + $0x68] sm:$0xff] %vm329, %v1004
      %1029 = vst.msk [vmem:[%s254 + $0x70] sm:$0xff] %vm329, %v1009
      %1030 = vst.msk [vmem:[%s254 + $0x78] sm:$0xff] %vm329, %v1012
      %s1031 = smul.u32 4, %s15
      %p1032 = scmp.lt.s32.totalorder %s1031, 7
      %s1033 = scalar_select %p1032, %s1031, 7
      %s1034 = smul.addr %s1033, 4
      %s1035 = smul.addr %s1034, 8
      %s1036 = scalar_lea.vmem %s4, %s1035
      // Predicated region
      $region37: #{transformer_nn_forward.18} parent=35 // pred_check
        %p1037 = pneg %p132
      $region38: #{transformer_nn_forward.18} parent=35 // pred_check_branch
        %1039 = sbr.rel (%p1037) target = $region40
      $region39: #{transformer_nn_forward.18} parent=35 // pred_region
        %s1040 = smul.u32 4, %s15
      $region40: #{transformer_nn_forward.18} parent=35 // pred_fallthru
        _
    $region36: #{transformer_nn_forward.18} parent=5 // pred_fallthru
      _
    %p1041 = scmp.le.s32.totalorder 2, %s10
    // Predicated region
    $region41: #{transformer_nn_forward.18} parent=5 // pred_check
      %p1042 = pneg %p1041
    $region42: #{transformer_nn_forward.18} parent=5 // pred_check_branch
      %1044 = sbr.rel (%p1042) target = $region44
    $region43: #{transformer_nn_forward.18} parent=5 // pred_region
      %s1045 = ssub.s32 %s10, 2
      // Predicated region
      $region45: #{transformer_nn_forward.18} parent=43 // pred_check
        %p1046 = pneg %p138
      $region46: #{transformer_nn_forward.18} parent=43 // pred_check_branch
        %1048 = sbr.rel (%p1046) target = $region48
      $region47: #{transformer_nn_forward.18} parent=43 // pred_region
        %s1049 = smul.u32 4, %s16
        %p1050 = scmp.lt.s32.totalorder %s1049, 7
        %s1051 = scalar_select %p1050, %s1049, 7
        %s1052 = smul.addr %s1051, 4
        %s1053 = smul.addr %s1052, 8
        %s1054 = scalar_lea.vmem %s4, %s1053
      $region48: #{transformer_nn_forward.18} parent=43 // pred_fallthru
        _
    $region44: #{transformer_nn_forward.18} parent=5 // pred_fallthru
      _
  $region6: #{transformer_nn_forward.18} parent=0 // loop_footer
    %s14 = sadd.s32 1, %s10
  $region7: #{transformer_nn_forward.18} parent=0 // loop_footer_branch
    %9 = sbr.rel target = $region3
  $region8: #{transformer_nn_forward.18} parent=0 // loop_exit
    _

// kernel: transformer_nn_forward.19
$region0: #{transformer_nn_forward.19}
  #allocation0 [shape = 'u32[]', space=smem, size = 0x4, offset = 0x4, fixed_abs, tag = 'smem constant byte address 0x4 - core index']
  #allocation1 [shape = 'u32[144,128]{1,0:T(1,128)}', space=vmem, size = 0x12000, scoped, tag = 'internal scratch']
  %s0 = inlined_call_operand.vmem [shape: f32[64,32], index: 0, kind: input, shape index: {}]
  %s1 = inlined_call_operand.vmem [shape: bf16[32,32], index: 1, kind: input, shape index: {}]
  %s2 = inlined_call_operand.vmem [shape: f32[1,32], index: 2, kind: input, shape index: {}]
  %s3 = inlined_call_operand.vmem [shape: f32[64,32], index: 3, kind: input, shape index: {}]
  %s4 = inlined_call_operand.vmem [shape: f32[64,32], index: 4, kind: output, shape index: {}]
  %s5 = sld [smem:[#allocation0]]
  $region26: #{transformer_nn_forward.19} parent=0
    _
  %s7 = ssub.s32 1, %s5
  %s8 = scalar_select 0, %s7, %s5
  // Predicated region
  $region2: #{transformer_nn_forward.19} parent=0 // pred_check
    _
  $region3: #{transformer_nn_forward.19} parent=0 // pred_check_branch
    %10 = sbr.rel (0) target = $region5
  $region4: #{transformer_nn_forward.19} parent=0 // pred_region
    _
  $region5: #{transformer_nn_forward.19} parent=0 // pred_fallthru
    _
  // Predicated region
  $region6: #{transformer_nn_forward.19} parent=0 // pred_check
    _
  $region7: #{transformer_nn_forward.19} parent=0 // pred_check_branch
    %12 = sbr.rel (0) target = $region9
  $region8: #{transformer_nn_forward.19} parent=0 // pred_region
    _
  $region9: #{transformer_nn_forward.19} parent=0 // pred_fallthru
    _
  // Predicated region
  $region10: #{transformer_nn_forward.19} parent=0 // pred_check
    _
  $region11: #{transformer_nn_forward.19} parent=0 // pred_check_branch
    %14 = sbr.rel (0) target = $region13
  $region12: #{transformer_nn_forward.19} parent=0 // pred_region
    _
  $region13: #{transformer_nn_forward.19} parent=0 // pred_fallthru
    _
  // Predicated region
  $region14: #{transformer_nn_forward.19} parent=0 // pred_check
    _
  $region15: #{transformer_nn_forward.19} parent=0 // pred_check_branch
    %16 = sbr.rel (0) target = $region17
  $region16: #{transformer_nn_forward.19} parent=0 // pred_region
    _
  $region17: #{transformer_nn_forward.19} parent=0 // pred_fallthru
    _
  %v18 = vld [vmem:[%s0] sm:$0xff]
  %v19 = vld [vmem:[%s0 + $0x8] sm:$0xff]
  %v20 = vld [vmem:[%s0 + $0x10] sm:$0xff]
  %v21 = vld [vmem:[%s0 + $0x18] sm:$0xff]
  %v22 = vld [vmem:[%s0 + $0x20] sm:$0xff]
  %v23 = vld [vmem:[%s0 + $0x28] sm:$0xff]
  %v24 = vld [vmem:[%s0 + $0x30] sm:$0xff]
  %v25 = vld [vmem:[%s0 + $0x38] sm:$0xff]
  %v26 = vpack.c.bf16 %v19, %v18
  %v27 = vpack.c.bf16 %v21, %v20
  %v28 = vpack.c.bf16 %v23, %v22
  %v29 = vpack.c.bf16 %v25, %v24
  %v30 = vld [vmem:[%s1] sm:$0xf]
  %v31 = vld [vmem:[%s1 + $0x4] sm:$0xf]
  %v32 = vld [vmem:[%s1 + $0x8] sm:$0xf]
  %v33 = vld [vmem:[%s1 + $0xc] sm:$0xf]
  %v34 = vld [vmem:[%s2] sm:$0x1]
  %v36 = vlaneseq
  %v37 = vshrl.u32 %v36, 7
  %v38 = vsub.s32 0, %v37
  %v39 = vrot.slane %v34, %v38
  %v45 = vunpack.c.l.b16 %v30
  %v46 = vunpack.c.l.b16 %v31
  %v47 = vunpack.c.l.b16 %v32
  %v48 = vunpack.c.l.b16 %v33
  %v49 = vpack.c.b16 %v46, %v45
  %v50 = vpack.c.b16 %v48, %v47
  %vm53 = vcmask 261120
  %v55 = vsel %vm53, %v26, 0
  %v58 = vsel %vm53, %v27, 0
  %v61 = vsel %vm53, %v28, 0
  %v64 = vsel %vm53, %v29, 0
  %66 = vmatprep.subr.bf16.mxu0 0
  %67 = vmatpush1.bf16.msra.mxu0 %v49
  %68 = vmatprep.subr.bf16.mxu0 0
  %69 = vmatpush1.bf16.msra.mxu0 %v50
  %70 = vmatprep.subr.bf16.mxu0 0
  %71 = vmatpush1.bf16.msra.mxu0 0
  %72 = vmatprep.subr.bf16.mxu0 0
  %73 = vmatpush1.bf16.msra.mxu0 0
  %74 = vmatprep.subr.bf16.mxu0 0
  %75 = vmatpush1.bf16.msra.mxu0 0
  %76 = vmatprep.subr.bf16.mxu0 0
  %77 = vmatpush1.bf16.msra.mxu0 0
  %78 = vmatprep.subr.bf16.mxu0 0
  %79 = vmatpush1.bf16.msra.mxu0 0
  %80 = vmatprep.subr.bf16.mxu0 0
  %81 = vmatpush1.bf16.msra.mxu0 0
  %82 = vmatprep.subr.bf16.mxu0 0
  %83 = vmatpush1.bf16.msra.mxu0 0
  %84 = vmatprep.subr.bf16.mxu0 0
  %85 = vmatpush1.bf16.msra.mxu0 0
  %86 = vmatprep.subr.bf16.mxu0 0
  %87 = vmatpush1.bf16.msra.mxu0 0
  %88 = vmatprep.subr.bf16.mxu0 0
  %89 = vmatpush1.bf16.msra.mxu0 0
  %90 = vmatprep.subr.bf16.mxu0 0
  %91 = vmatpush1.bf16.msra.mxu0 0
  %92 = vmatprep.subr.bf16.mxu0 0
  %93 = vmatpush1.bf16.msra.mxu0 0
  %94 = vmatprep.subr.bf16.mxu0 0
  %95 = vmatpush1.bf16.msra.mxu0 0
  %96 = vmatprep.subr.bf16.mxu0 0
  %97 = vmatpush1.bf16.msra.mxu0 0
  %98 = vmatprep.mubr.bf16.mxu0 0
  %99 = vmatmul.mubr.bf16.gmra.mrb[0].mxu0 %v55
  %v100 = vpop.f32.mrb[0].mxu0
  %v101 = vadd.f32 %v39, %v100
  %v102 = vpop.f32.mrb[0].mxu0
  %v103 = vpop.f32.mrb[0].mxu0
  %v104 = vadd.f32 %v39, %v103
  %v105 = vpop.f32.mrb[0].mxu0
  %106 = vmatprep.mubr.bf16.mxu0 0
  %107 = vmatmul.mubr.bf16.gmra.mrb[0].mxu0 %v58
  %v108 = vpop.f32.mrb[0].mxu0
  %v109 = vadd.f32 %v39, %v108
  %v110 = vpop.f32.mrb[0].mxu0
  %v111 = vpop.f32.mrb[0].mxu0
  %v112 = vadd.f32 %v39, %v111
  %v113 = vpop.f32.mrb[0].mxu0
  %114 = vmatprep.mubr.bf16.mxu0 0
  %115 = vmatmul.mubr.bf16.gmra.mrb[0].mxu0 %v61
  %v116 = vpop.f32.mrb[0].mxu0
  %v117 = vadd.f32 %v39, %v116
  %v118 = vpop.f32.mrb[0].mxu0
  %v119 = vpop.f32.mrb[0].mxu0
  %v120 = vadd.f32 %v39, %v119
  %v121 = vpop.f32.mrb[0].mxu0
  %122 = vmatprep.mubr.bf16.mxu0 0
  %123 = vmatmul.mubr.bf16.gmra.mrb[0].mxu0 %v64
  %v124 = vpop.f32.mrb[0].mxu0
  %v125 = vadd.f32 %v39, %v124
  %v126 = vpop.f32.mrb[0].mxu0
  %v127 = vpop.f32.mrb[0].mxu0
  %v128 = vadd.f32 %v39, %v127
  %v129 = vpop.f32.mrb[0].mxu0
  %130 = vdwg.mxu0
  %v131 = vld [vmem:[%s3] sm:$0xff]
  %v132 = vld [vmem:[%s3 + $0x8] sm:$0xff]
  %v133 = vld [vmem:[%s3 + $0x10] sm:$0xff]
  %v134 = vld [vmem:[%s3 + $0x18] sm:$0xff]
  %v135 = vld [vmem:[%s3 + $0x20] sm:$0xff]
  %v136 = vld [vmem:[%s3 + $0x28] sm:$0xff]
  %v137 = vld [vmem:[%s3 + $0x30] sm:$0xff]
  %v138 = vld [vmem:[%s3 + $0x38] sm:$0xff]
  %v139 = vadd.f32 %v131, %v101
  %v140 = vadd.f32 %v132, %v104
  %v141 = vadd.f32 %v133, %v109
  %v142 = vadd.f32 %v134, %v112
  %v143 = vadd.f32 %v135, %v117
  %v144 = vadd.f32 %v136, %v120
  %v145 = vadd.f32 %v137, %v125
  %v146 = vadd.f32 %v138, %v128
  %147 = vst.msk [vmem:[%s4] sm:$0xff] %vm53, %v139
  %148 = vst.msk [vmem:[%s4 + $0x8] sm:$0xff] %vm53, %v140
  %149 = vst.msk [vmem:[%s4 + $0x10] sm:$0xff] %vm53, %v141
  %150 = vst.msk [vmem:[%s4 + $0x18] sm:$0xff] %vm53, %v142
  %151 = vst.msk [vmem:[%s4 + $0x20] sm:$0xff] %vm53, %v143
  %152 = vst.msk [vmem:[%s4 + $0x28] sm:$0xff] %vm53, %v144
  %153 = vst.msk [vmem:[%s4 + $0x30] sm:$0xff] %vm53, %v145
  %154 = vst.msk [vmem:[%s4 + $0x38] sm:$0xff] %vm53, %v146
  // Predicated region
  $region18: #{transformer_nn_forward.19} parent=0 // pred_check
    _
  $region19: #{transformer_nn_forward.19} parent=0 // pred_check_branch
    %156 = sbr.rel (0) target = $region21
  $region20: #{transformer_nn_forward.19} parent=0 // pred_region
    _
  $region21: #{transformer_nn_forward.19} parent=0 // pred_fallthru
    _
  // Predicated region
  $region22: #{transformer_nn_forward.19} parent=0 // pred_check
    _
  $region23: #{transformer_nn_forward.19} parent=0 // pred_check_branch
    %158 = sbr.rel (0) target = $region25
  $region24: #{transformer_nn_forward.19} parent=0 // pred_region
    _
  $region25: #{transformer_nn_forward.19} parent=0 // pred_fallthru
    _

// kernel: transformer_nn_forward.20
$region0: #{transformer_nn_forward.20}
  #allocation0 [shape = 'u32[]', space=smem, size = 0x4, offset = 0x4, fixed_abs, tag = 'smem constant byte address 0x4 - core index']
  #allocation1 [shape = 'u32[144,128]{1,0:T(1,128)}', space=vmem, size = 0x12000, scoped, tag = 'internal scratch']
  %s0 = inlined_call_operand.vmem [shape: f32[64,32], index: 0, kind: input, shape index: {}]
  %s1 = inlined_call_operand.vmem [shape: f32[1,32], index: 1, kind: input, shape index: {}]
  %s2 = inlined_call_operand.vmem [shape: f32[1,32], index: 2, kind: input, shape index: {}]
  %s3 = inlined_call_operand.vmem [shape: bf16[32,128], index: 3, kind: input, shape index: {}]
  %s4 = inlined_call_operand.vmem [shape: f32[1,128], index: 4, kind: input, shape index: {}]
  %s5 = inlined_call_operand.vmem [shape: bf16[128,32], index: 5, kind: input, shape index: {}]
  %s6 = inlined_call_operand.vmem [shape: f32[1,32], index: 6, kind: input, shape index: {}]
  %s7 = inlined_call_operand.vmem [shape: f32[64,32], index: 7, kind: output, shape index: {}]
  %s8 = sld [smem:[#allocation0]]
  $region38: #{transformer_nn_forward.20} parent=0
    _
  %s10 = ssub.s32 1, %s8
  %s11 = scalar_select 0, %s10, %s8
  // Predicated region
  $region2: #{transformer_nn_forward.20} parent=0 // pred_check
    _
  $region3: #{transformer_nn_forward.20} parent=0 // pred_check_branch
    %13 = sbr.rel (0) target = $region5
  $region4: #{transformer_nn_forward.20} parent=0 // pred_region
    _
  $region5: #{transformer_nn_forward.20} parent=0 // pred_fallthru
    _
  // Predicated region
  $region6: #{transformer_nn_forward.20} parent=0 // pred_check
    _
  $region7: #{transformer_nn_forward.20} parent=0 // pred_check_branch
    %15 = sbr.rel (0) target = $region9
  $region8: #{transformer_nn_forward.20} parent=0 // pred_region
    _
  $region9: #{transformer_nn_forward.20} parent=0 // pred_fallthru
    _
  // Predicated region
  $region10: #{transformer_nn_forward.20} parent=0 // pred_check
    _
  $region11: #{transformer_nn_forward.20} parent=0 // pred_check_branch
    %17 = sbr.rel (0) target = $region13
  $region12: #{transformer_nn_forward.20} parent=0 // pred_region
    _
  $region13: #{transformer_nn_forward.20} parent=0 // pred_fallthru
    _
  // Predicated region
  $region14: #{transformer_nn_forward.20} parent=0 // pred_check
    _
  $region15: #{transformer_nn_forward.20} parent=0 // pred_check_branch
    %19 = sbr.rel (0) target = $region17
  $region16: #{transformer_nn_forward.20} parent=0 // pred_region
    _
  $region17: #{transformer_nn_forward.20} parent=0 // pred_fallthru
    _
  // Predicated region
  $region18: #{transformer_nn_forward.20} parent=0 // pred_check
    _
  $region19: #{transformer_nn_forward.20} parent=0 // pred_check_branch
    %21 = sbr.rel (0) target = $region21
  $region20: #{transformer_nn_forward.20} parent=0 // pred_region
    _
  $region21: #{transformer_nn_forward.20} parent=0 // pred_fallthru
    _
  // Predicated region
  $region22: #{transformer_nn_forward.20} parent=0 // pred_check
    _
  $region23: #{transformer_nn_forward.20} parent=0 // pred_check_branch
    %23 = sbr.rel (0) target = $region25
  $region24: #{transformer_nn_forward.20} parent=0 // pred_region
    _
  $region25: #{transformer_nn_forward.20} parent=0 // pred_fallthru
    _
  // Predicated region
  $region26: #{transformer_nn_forward.20} parent=0 // pred_check
    _
  $region27: #{transformer_nn_forward.20} parent=0 // pred_check_branch
    %25 = sbr.rel (0) target = $region29
  $region28: #{transformer_nn_forward.20} parent=0 // pred_region
    _
  $region29: #{transformer_nn_forward.20} parent=0 // pred_fallthru
    _
  %v27 = vld [vmem:[%s0] sm:$0xff]
  %v28 = vld [vmem:[%s0 + $0x8] sm:$0xff]
  %v29 = vld [vmem:[%s0 + $0x10] sm:$0xff]
  %v30 = vld [vmem:[%s0 + $0x18] sm:$0xff]
  %v31 = vld [vmem:[%s0 + $0x20] sm:$0xff]
  %v32 = vld [vmem:[%s0 + $0x28] sm:$0xff]
  %v33 = vld [vmem:[%s0 + $0x30] sm:$0xff]
  %v34 = vld [vmem:[%s0 + $0x38] sm:$0xff]
  %v35 = vld [vmem:[%s1] sm:$0x1]
  %v36 = vld [vmem:[%s2] sm:$0x1]
  %vm37 = vcmask 261120
  %v38 = vsel %vm37, %v27, 0.0
  %39 = vadd.xlane.f32.xlu0 %v38
  %v40 = vpop.xlane.xlu0 %39
  %v41 = vsel %vm37, %v28, 0.0
  %42 = vadd.xlane.f32.xlu0 %v41
  %v43 = vpop.xlane.xlu0 %42
  %v44 = vsel %vm37, %v29, 0.0
  %45 = vadd.xlane.f32.xlu0 %v44
  %v46 = vpop.xlane.xlu0 %45
  %v47 = vsel %vm37, %v30, 0.0
  %48 = vadd.xlane.f32.xlu0 %v47
  %v49 = vpop.xlane.xlu0 %48
  %v50 = vsel %vm37, %v31, 0.0
  %51 = vadd.xlane.f32.xlu0 %v50
  %v52 = vpop.xlane.xlu0 %51
  %v53 = vsel %vm37, %v32, 0.0
  %54 = vadd.xlane.f32.xlu0 %v53
  %v55 = vpop.xlane.xlu0 %54
  %v56 = vsel %vm37, %v33, 0.0
  %57 = vadd.xlane.f32.xlu0 %v56
  %v58 = vpop.xlane.xlu0 %57
  %v59 = vsel %vm37, %v34, 0.0
  %60 = vadd.xlane.f32.xlu0 %v59
  %v61 = vpop.xlane.xlu0 %60
  %v62 = vrcp.pop 32.0
  %v63 = vmul.f32 %v40, %v62
  %v64 = vmul.f32 %v43, %v62
  %v65 = vmul.f32 %v46, %v62
  %v66 = vmul.f32 %v49, %v62
  %v67 = vmul.f32 %v52, %v62
  %v68 = vmul.f32 %v55, %v62
  %v69 = vmul.f32 %v58, %v62
  %v70 = vmul.f32 %v61, %v62
  %v71 = vsub.f32 %v27, %v63
  %v72 = vsub.f32 %v28, %v64
  %v73 = vsub.f32 %v29, %v65
  %v74 = vsub.f32 %v30, %v66
  %v75 = vsub.f32 %v31, %v67
  %v76 = vsub.f32 %v32, %v68
  %v77 = vsub.f32 %v33, %v69
  %v78 = vsub.f32 %v34, %v70
  %v79 = vmul.f32 %v71, %v71
  %v80 = vmul.f32 %v72, %v72
  %v81 = vmul.f32 %v73, %v73
  %v82 = vmul.f32 %v74, %v74
  %v83 = vmul.f32 %v75, %v75
  %v84 = vmul.f32 %v76, %v76
  %v85 = vmul.f32 %v77, %v77
  %v86 = vmul.f32 %v78, %v78
  %v87 = vsel %vm37, %v79, 0.0
  %88 = vadd.xlane.f32.xlu0 %v87
  %v89 = vpop.xlane.xlu0 %88
  %v90 = vsel %vm37, %v80, 0.0
  %91 = vadd.xlane.f32.xlu0 %v90
  %v92 = vpop.xlane.xlu0 %91
  %v93 = vsel %vm37, %v81, 0.0
  %94 = vadd.xlane.f32.xlu0 %v93
  %v95 = vpop.xlane.xlu0 %94
  %v96 = vsel %vm37, %v82, 0.0
  %97 = vadd.xlane.f32.xlu0 %v96
  %v98 = vpop.xlane.xlu0 %97
  %v99 = vsel %vm37, %v83, 0.0
  %100 = vadd.xlane.f32.xlu0 %v99
  %v101 = vpop.xlane.xlu0 %100
  %v102 = vsel %vm37, %v84, 0.0
  %103 = vadd.xlane.f32.xlu0 %v102
  %v104 = vpop.xlane.xlu0 %103
  %v105 = vsel %vm37, %v85, 0.0
  %106 = vadd.xlane.f32.xlu0 %v105
  %v107 = vpop.xlane.xlu0 %106
  %v108 = vsel %vm37, %v86, 0.0
  %109 = vadd.xlane.f32.xlu0 %v108
  %v110 = vpop.xlane.xlu0 %109
  %v111 = vmul.f32 %v89, %v62
  %v112 = vmul.f32 %v92, %v62
  %v113 = vmul.f32 %v95, %v62
  %v114 = vmul.f32 %v98, %v62
  %v115 = vmul.f32 %v101, %v62
  %v116 = vmul.f32 %v104, %v62
  %v117 = vmul.f32 %v107, %v62
  %v118 = vmul.f32 %v110, %v62
  %v119 = vadd.f32 %v111, 1e-05
  %v120 = vadd.f32 %v112, 1e-05
  %v121 = vadd.f32 %v113, 1e-05
  %v122 = vadd.f32 %v114, 1e-05
  %v123 = vadd.f32 %v115, 1e-05
  %v124 = vadd.f32 %v116, 1e-05
  %v125 = vadd.f32 %v117, 1e-05
  %v126 = vadd.f32 %v118, 1e-05
  %v127 = vrsqrt.pop %v119
  %v128 = vrsqrt.pop %v120
  %v129 = vrsqrt.pop %v121
  %v130 = vrsqrt.pop %v122
  %v131 = vrsqrt.pop %v123
  %v132 = vrsqrt.pop %v124
  %v133 = vrsqrt.pop %v125
  %v134 = vrsqrt.pop %v126
  %v135 = vmul.f32 %v71, %v127
  %v136 = vmul.f32 %v72, %v128
  %v137 = vmul.f32 %v73, %v129
  %v138 = vmul.f32 %v74, %v130
  %v139 = vmul.f32 %v75, %v131
  %v140 = vmul.f32 %v76, %v132
  %v141 = vmul.f32 %v77, %v133
  %v142 = vmul.f32 %v78, %v134
  %v144 = vlaneseq
  %v145 = vshrl.u32 %v144, 7
  %v146 = vsub.s32 0, %v145
  %v147 = vrot.slane %v35, %v146
  %v149 = vmul.f32 %v135, %v147
  %v150 = vmul.f32 %v136, %v147
  %v151 = vmul.f32 %v137, %v147
  %v152 = vmul.f32 %v138, %v147
  %v153 = vmul.f32 %v139, %v147
  %v154 = vmul.f32 %v140, %v147
  %v155 = vmul.f32 %v141, %v147
  %v156 = vmul.f32 %v142, %v147
  %v158 = vlaneseq
  %v159 = vshrl.u32 %v158, 7
  %v160 = vsub.s32 0, %v159
  %v161 = vrot.slane %v36, %v160
  %v163 = vadd.f32 %v149, %v161
  %v164 = vadd.f32 %v150, %v161
  %v165 = vadd.f32 %v151, %v161
  %v166 = vadd.f32 %v152, %v161
  %v167 = vadd.f32 %v153, %v161
  %v168 = vadd.f32 %v154, %v161
  %v169 = vadd.f32 %v155, %v161
  %v170 = vadd.f32 %v156, %v161
  %v171 = vpack.c.bf16 %v164, %v163
  %v172 = vpack.c.bf16 %v166, %v165
  %v173 = vpack.c.bf16 %v168, %v167
  %v174 = vpack.c.bf16 %v170, %v169
  %v175 = vld [vmem:[%s3] sm:$0xf]
  %v176 = vld [vmem:[%s3 + $0x4] sm:$0xf]
  %v177 = vld [vmem:[%s3 + $0x8] sm:$0xf]
  %v178 = vld [vmem:[%s3 + $0xc] sm:$0xf]
  %v179 = vld [vmem:[%s4] sm:$0x1]
  %v181 = vlaneseq
  %v182 = vshrl.u32 %v181, 7
  %v183 = vsub.s32 0, %v182
  %v184 = vrot.slane %v179, %v183
  %v190 = vunpack.c.l.b16 %v175
  %v191 = vunpack.c.l.b16 %v176
  %v192 = vunpack.c.l.b16 %v177
  %v193 = vunpack.c.l.b16 %v178
  %v194 = vpack.c.b16 %v191, %v190
  %v195 = vpack.c.b16 %v193, %v192
  %v199 = vsel %vm37, %v171, 0
  %v202 = vsel %vm37, %v172, 0
  %v205 = vsel %vm37, %v173, 0
  %v208 = vsel %vm37, %v174, 0
  %210 = vmatprep.subr.bf16.mxu0 0
  %211 = vmatpush1.bf16.msra.mxu0 %v194
  %212 = vmatprep.subr.bf16.mxu0 0
  %213 = vmatpush1.bf16.msra.mxu0 %v195
  %214 = vmatprep.subr.bf16.mxu0 0
  %215 = vmatpush1.bf16.msra.mxu0 0
  %216 = vmatprep.subr.bf16.mxu0 0
  %217 = vmatpush1.bf16.msra.mxu0 0
  %218 = vmatprep.subr.bf16.mxu0 0
  %219 = vmatpush1.bf16.msra.mxu0 0
  %220 = vmatprep.subr.bf16.mxu0 0
  %221 = vmatpush1.bf16.msra.mxu0 0
  %222 = vmatprep.subr.bf16.mxu0 0
  %223 = vmatpush1.bf16.msra.mxu0 0
  %224 = vmatprep.subr.bf16.mxu0 0
  %225 = vmatpush1.bf16.msra.mxu0 0
  %226 = vmatprep.subr.bf16.mxu0 0
  %227 = vmatpush1.bf16.msra.mxu0 0
  %228 = vmatprep.subr.bf16.mxu0 0
  %229 = vmatpush1.bf16.msra.mxu0 0
  %230 = vmatprep.subr.bf16.mxu0 0
  %231 = vmatpush1.bf16.msra.mxu0 0
  %232 = vmatprep.subr.bf16.mxu0 0
  %233 = vmatpush1.bf16.msra.mxu0 0
  %234 = vmatprep.subr.bf16.mxu0 0
  %235 = vmatpush1.bf16.msra.mxu0 0
  %236 = vmatprep.subr.bf16.mxu0 0
  %237 = vmatpush1.bf16.msra.mxu0 0
  %238 = vmatprep.subr.bf16.mxu0 0
  %239 = vmatpush1.bf16.msra.mxu0 0
  %240 = vmatprep.subr.bf16.mxu0 0
  %241 = vmatpush1.bf16.msra.mxu0 0
  %242 = vmatprep.mubr.bf16.mxu0 0
  %243 = vmatmul.mubr.bf16.gmra.mrb[0].mxu0 %v199
  %v244 = vpop.f32.mrb[0].mxu0
  %v245 = vadd.f32 %v184, %v244
  %v246 = vpop.f32.mrb[0].mxu0
  %v247 = vpop.f32.mrb[0].mxu0
  %v248 = vadd.f32 %v184, %v247
  %v249 = vpop.f32.mrb[0].mxu0
  %250 = vmatprep.mubr.bf16.mxu0 0
  %251 = vmatmul.mubr.bf16.gmra.mrb[0].mxu0 %v202
  %v252 = vpop.f32.mrb[0].mxu0
  %v253 = vadd.f32 %v184, %v252
  %v254 = vpop.f32.mrb[0].mxu0
  %v255 = vpop.f32.mrb[0].mxu0
  %v256 = vadd.f32 %v184, %v255
  %v257 = vpop.f32.mrb[0].mxu0
  %258 = vmatprep.mubr.bf16.mxu0 0
  %259 = vmatmul.mubr.bf16.gmra.mrb[0].mxu0 %v205
  %v260 = vpop.f32.mrb[0].mxu0
  %v261 = vadd.f32 %v184, %v260
  %v262 = vpop.f32.mrb[0].mxu0
  %v263 = vpop.f32.mrb[0].mxu0
  %v264 = vadd.f32 %v184, %v263
  %v265 = vpop.f32.mrb[0].mxu0
  %266 = vmatprep.mubr.bf16.mxu0 0
  %267 = vmatmul.mubr.bf16.gmra.mrb[0].mxu0 %v208
  %v268 = vpop.f32.mrb[0].mxu0
  %v269 = vadd.f32 %v184, %v268
  %v270 = vpop.f32.mrb[0].mxu0
  %v271 = vpop.f32.mrb[0].mxu0
  %v272 = vadd.f32 %v184, %v271
  %v273 = vpop.f32.mrb[0].mxu0
  %274 = vdwg.mxu0
  %v275 = vmul.f32 %v245, 0.5
  %v276 = vmul.f32 %v248, 0.5
  %v277 = vmul.f32 %v253, 0.5
  %v278 = vmul.f32 %v256, 0.5
  %v279 = vmul.f32 %v261, 0.5
  %v280 = vmul.f32 %v264, 0.5
  %v281 = vmul.f32 %v269, 0.5
  %v282 = vmul.f32 %v272, 0.5
  %v283 = vmul.f32 %v245, 0.044715
  %v284 = vmul.f32 %v248, 0.044715
  %v285 = vmul.f32 %v253, 0.044715
  %v286 = vmul.f32 %v256, 0.044715
  %v287 = vmul.f32 %v261, 0.044715
  %v288 = vmul.f32 %v264, 0.044715
  %v289 = vmul.f32 %v269, 0.044715
  %v290 = vmul.f32 %v272, 0.044715
  %v291 = vmul.f32 %v283, %v245
  %v292 = vmul.f32 %v284, %v248
  %v293 = vmul.f32 %v285, %v253
  %v294 = vmul.f32 %v286, %v256
  %v295 = vmul.f32 %v287, %v261
  %v296 = vmul.f32 %v288, %v264
  %v297 = vmul.f32 %v289, %v269
  %v298 = vmul.f32 %v290, %v272
  %v299 = vmul.f32 %v291, %v245
  %v300 = vmul.f32 %v292, %v248
  %v301 = vmul.f32 %v293, %v253
  %v302 = vmul.f32 %v294, %v256
  %v303 = vmul.f32 %v295, %v261
  %v304 = vmul.f32 %v296, %v264
  %v305 = vmul.f32 %v297, %v269
  %v306 = vmul.f32 %v298, %v272
  %v307 = vadd.f32 %v245, %v299
  %v308 = vadd.f32 %v248, %v300
  %v309 = vadd.f32 %v253, %v301
  %v310 = vadd.f32 %v256, %v302
  %v311 = vadd.f32 %v261, %v303
  %v312 = vadd.f32 %v264, %v304
  %v313 = vadd.f32 %v269, %v305
  %v314 = vadd.f32 %v272, %v306
  %v315 = vmul.f32 %v307, 0.7978846
  %v316 = vmul.f32 %v308, 0.7978846
  %v317 = vmul.f32 %v309, 0.7978846
  %v318 = vmul.f32 %v310, 0.7978846
  %v319 = vmul.f32 %v311, 0.7978846
  %v320 = vmul.f32 %v312, 0.7978846
  %v321 = vmul.f32 %v313, 0.7978846
  %v322 = vmul.f32 %v314, 0.7978846
  %v323 = vtanh.pop %v315
  %v324 = vtanh.pop %v316
  %v325 = vtanh.pop %v317
  %v326 = vtanh.pop %v318
  %v327 = vtanh.pop %v319
  %v328 = vtanh.pop %v320
  %v329 = vtanh.pop %v321
  %v330 = vtanh.pop %v322
  %v331 = vadd.f32 %v323, 1.0
  %v332 = vadd.f32 %v324, 1.0
  %v333 = vadd.f32 %v325, 1.0
  %v334 = vadd.f32 %v326, 1.0
  %v335 = vadd.f32 %v327, 1.0
  %v336 = vadd.f32 %v328, 1.0
  %v337 = vadd.f32 %v329, 1.0
  %v338 = vadd.f32 %v330, 1.0
  %v339 = vmul.f32 %v275, %v331
  %v340 = vmul.f32 %v276, %v332
  %v341 = vmul.f32 %v277, %v333
  %v342 = vmul.f32 %v278, %v334
  %v343 = vmul.f32 %v279, %v335
  %v344 = vmul.f32 %v280, %v336
  %v345 = vmul.f32 %v281, %v337
  %v346 = vmul.f32 %v282, %v338
  %v347 = vpack.c.bf16 %v340, %v339
  %v348 = vpack.c.bf16 %v342, %v341
  %v349 = vpack.c.bf16 %v344, %v343
  %v350 = vpack.c.bf16 %v346, %v345
  %v351 = vld [vmem:[%s5] sm:$0xf]
  %v352 = vld [vmem:[%s5 + $0x4] sm:$0xf]
  %v353 = vld [vmem:[%s5 + $0x8] sm:$0xf]
  %v354 = vld [vmem:[%s5 + $0xc] sm:$0xf]
  %v355 = vld [vmem:[%s5 + $0x10] sm:$0xf]
  %v356 = vld [vmem:[%s5 + $0x14] sm:$0xf]
  %v357 = vld [vmem:[%s5 + $0x18] sm:$0xf]
  %v358 = vld [vmem:[%s5 + $0x1c] sm:$0xf]
  %v359 = vld [vmem:[%s5 + $0x20] sm:$0xf]
  %v360 = vld [vmem:[%s5 + $0x24] sm:$0xf]
  %v361 = vld [vmem:[%s5 + $0x28] sm:$0xf]
  %v362 = vld [vmem:[%s5 + $0x2c] sm:$0xf]
  %v363 = vld [vmem:[%s5 + $0x30] sm:$0xf]
  %v364 = vld [vmem:[%s5 + $0x34] sm:$0xf]
  %v365 = vld [vmem:[%s5 + $0x38] sm:$0xf]
  %v366 = vld [vmem:[%s5 + $0x3c] sm:$0xf]
  %v367 = vld [vmem:[%s6] sm:$0x1]
  %v369 = vlaneseq
  %v370 = vshrl.u32 %v369, 7
  %v371 = vsub.s32 0, %v370
  %v372 = vrot.slane %v367, %v371
  %v390 = vunpack.c.l.b16 %v351
  %v391 = vunpack.c.l.b16 %v352
  %v392 = vunpack.c.l.b16 %v353
  %v393 = vunpack.c.l.b16 %v354
  %v394 = vunpack.c.l.b16 %v355
  %v395 = vunpack.c.l.b16 %v356
  %v396 = vunpack.c.l.b16 %v357
  %v397 = vunpack.c.l.b16 %v358
  %v398 = vunpack.c.l.b16 %v359
  %v399 = vunpack.c.l.b16 %v360
  %v400 = vunpack.c.l.b16 %v361
  %v401 = vunpack.c.l.b16 %v362
  %v402 = vunpack.c.l.b16 %v363
  %v403 = vunpack.c.l.b16 %v364
  %v404 = vunpack.c.l.b16 %v365
  %v405 = vunpack.c.l.b16 %v366
  %v406 = vpack.c.b16 %v391, %v390
  %v407 = vpack.c.b16 %v393, %v392
  %v408 = vpack.c.b16 %v395, %v394
  %v409 = vpack.c.b16 %v397, %v396
  %v410 = vpack.c.b16 %v399, %v398
  %v411 = vpack.c.b16 %v401, %v400
  %v412 = vpack.c.b16 %v403, %v402
  %v413 = vpack.c.b16 %v405, %v404
  %422 = vmatprep.subr.bf16.mxu0 0
  %423 = vmatpush1.bf16.msra.mxu0 %v406
  %424 = vmatprep.subr.bf16.mxu0 0
  %425 = vmatpush1.bf16.msra.mxu0 %v407
  %426 = vmatprep.subr.bf16.mxu0 0
  %427 = vmatpush1.bf16.msra.mxu0 %v408
  %428 = vmatprep.subr.bf16.mxu0 0
  %429 = vmatpush1.bf16.msra.mxu0 %v409
  %430 = vmatprep.subr.bf16.mxu0 0
  %431 = vmatpush1.bf16.msra.mxu0 %v410
  %432 = vmatprep.subr.bf16.mxu0 0
  %433 = vmatpush1.bf16.msra.mxu0 %v411
  %434 = vmatprep.subr.bf16.mxu0 0
  %435 = vmatpush1.bf16.msra.mxu0 %v412
  %436 = vmatprep.subr.bf16.mxu0 0
  %437 = vmatpush1.bf16.msra.mxu0 %v413
  %438 = vmatprep.subr.bf16.mxu0 0
  %439 = vmatpush1.bf16.msra.mxu0 0
  %440 = vmatprep.subr.bf16.mxu0 0
  %441 = vmatpush1.bf16.msra.mxu0 0
  %442 = vmatprep.subr.bf16.mxu0 0
  %443 = vmatpush1.bf16.msra.mxu0 0
  %444 = vmatprep.subr.bf16.mxu0 0
  %445 = vmatpush1.bf16.msra.mxu0 0
  %446 = vmatprep.subr.bf16.mxu0 0
  %447 = vmatpush1.bf16.msra.mxu0 0
  %448 = vmatprep.subr.bf16.mxu0 0
  %449 = vmatpush1.bf16.msra.mxu0 0
  %450 = vmatprep.subr.bf16.mxu0 0
  %451 = vmatpush1.bf16.msra.mxu0 0
  %452 = vmatprep.subr.bf16.mxu0 0
  %453 = vmatpush1.bf16.msra.mxu0 0
  %454 = vmatprep.mubr.bf16.mxu0 0
  %455 = vmatmul.mubr.bf16.gmra.mrb[0].mxu0 %v347
  %v456 = vpop.f32.mrb[0].mxu0
  %v457 = vadd.f32 %v372, %v456
  %v458 = vpop.f32.mrb[0].mxu0
  %v459 = vpop.f32.mrb[0].mxu0
  %v460 = vadd.f32 %v372, %v459
  %v461 = vpop.f32.mrb[0].mxu0
  %462 = vmatprep.mubr.bf16.mxu0 0
  %463 = vmatmul.mubr.bf16.gmra.mrb[0].mxu0 %v348
  %v464 = vpop.f32.mrb[0].mxu0
  %v465 = vadd.f32 %v372, %v464
  %v466 = vpop.f32.mrb[0].mxu0
  %v467 = vpop.f32.mrb[0].mxu0
  %v468 = vadd.f32 %v372, %v467
  %v469 = vpop.f32.mrb[0].mxu0
  %470 = vmatprep.mubr.bf16.mxu0 0
  %471 = vmatmul.mubr.bf16.gmra.mrb[0].mxu0 %v349
  %v472 = vpop.f32.mrb[0].mxu0
  %v473 = vadd.f32 %v372, %v472
  %v474 = vpop.f32.mrb[0].mxu0
  %v475 = vpop.f32.mrb[0].mxu0
  %v476 = vadd.f32 %v372, %v475
  %v477 = vpop.f32.mrb[0].mxu0
  %478 = vmatprep.mubr.bf16.mxu0 0
  %479 = vmatmul.mubr.bf16.gmra.mrb[0].mxu0 %v350
  %v480 = vpop.f32.mrb[0].mxu0
  %v481 = vadd.f32 %v372, %v480
  %v482 = vpop.f32.mrb[0].mxu0
  %v483 = vpop.f32.mrb[0].mxu0
  %v484 = vadd.f32 %v372, %v483
  %v485 = vpop.f32.mrb[0].mxu0
  %486 = vdwg.mxu0
  %v487 = vadd.f32 %v27, %v457
  %v488 = vadd.f32 %v28, %v460
  %v489 = vadd.f32 %v29, %v465
  %v490 = vadd.f32 %v30, %v468
  %v491 = vadd.f32 %v31, %v473
  %v492 = vadd.f32 %v32, %v476
  %v493 = vadd.f32 %v33, %v481
  %v494 = vadd.f32 %v34, %v484
  %495 = vst.msk [vmem:[%s7] sm:$0xff] %vm37, %v487
  %496 = vst.msk [vmem:[%s7 + $0x8] sm:$0xff] %vm37, %v488
  %497 = vst.msk [vmem:[%s7 + $0x10] sm:$0xff] %vm37, %v489
  %498 = vst.msk [vmem:[%s7 + $0x18] sm:$0xff] %vm37, %v490
  %499 = vst.msk [vmem:[%s7 + $0x20] sm:$0xff] %vm37, %v491
  %500 = vst.msk [vmem:[%s7 + $0x28] sm:$0xff] %vm37, %v492
  %501 = vst.msk [vmem:[%s7 + $0x30] sm:$0xff] %vm37, %v493
  %502 = vst.msk [vmem:[%s7 + $0x38] sm:$0xff] %vm37, %v494
  // Predicated region
  $region30: #{transformer_nn_forward.20} parent=0 // pred_check
    _
  $region31: #{transformer_nn_forward.20} parent=0 // pred_check_branch
    %504 = sbr.rel (0) target = $region33
  $region32: #{transformer_nn_forward.20} parent=0 // pred_region
    _
  $region33: #{transformer_nn_forward.20} parent=0 // pred_fallthru
    _
  // Predicated region
  $region34: #{transformer_nn_forward.20} parent=0 // pred_check
    _
  $region35: #{transformer_nn_forward.20} parent=0 // pred_check_branch
    %506 = sbr.rel (0) target = $region37
  $region36: #{transformer_nn_forward.20} parent=0 // pred_region
    _
  $region37: #{transformer_nn_forward.20} parent=0 // pred_fallthru
    _

</llo_original>
